<compile_context>
chip_gen: v7x
topology: tpu7x:2x2x1
jax: 0.10.0
libtpu: 0.0.40
codegen_flags: <defaults>
</compile_context>

<pallas_src>
import functools

import jax
import jax.numpy as jnp
from jax import lax
from jax.experimental import pallas as pl
from jax.experimental.pallas import tpu as pltpu


def _round_up(x, m):
    return (x + m - 1) // m * m


def _choose_tile_h(h_out, n_images, per_row_bytes, fixed_bytes, budget_bytes):
    """Largest divisor of h_out whose working set fits the byte budget,
    keeping at least 2 grid steps (megacore) when possible."""
    divisors = [d for d in range(1, h_out + 1) if h_out % d == 0]
    best = 1
    for th in divisors:
        if fixed_bytes + th * per_row_bytes <= budget_bytes:
            best = th
    if n_images * (h_out // best) < 2:
        smaller = [d for d in divisors if d < best]
        if smaller:
            best = smaller[-1]
    return best


def _conv_stats_kernel(x_ref, w_ref, conv_ref, stats_ref, *,
                       KH, KW, dilation, W_out, Cin, TH):
    # x_ref:     (1, Hp, Wp, Cin)        padded input, resident per image
    # w_ref:     (KH*KW*Cin, Cout_pad)   im2col-ordered conv weight
    # conv_ref:  (1, TH, W_out, Cout_pad) conv output tile
    # stats_ref: (1, 1, 2, Cout_pad)     per-tile [sum, M2]
    t = pl.program_id(1)
    R = TH * W_out
    Cout_pad = w_ref.shape[1]

    acc = jnp.zeros((R, Cout_pad), jnp.float32)
    for kh in range(KH):
        # Overlapping row window for this kernel row, sliced from the
        # resident padded input (no HBM replication).
        rows = x_ref[0, pl.ds(t * TH + kh * dilation, TH), :, :]  # (TH, Wp, Cin)
        for kw in range(KW):
            start = kw * dilation
            slab = rows[:, start:start + W_out, :]                # (TH, W_out, Cin)
            slab2 = slab.reshape(R, Cin)
            j = kh * KW + kw
            w_tap = w_ref[j * Cin:(j + 1) * Cin, :]               # (Cin, Cout_pad)
            acc = acc + jnp.dot(slab2, w_tap,
                                preferred_element_type=jnp.float32)

    conv_ref[0] = acc.reshape(TH, W_out, Cout_pad).astype(conv_ref.dtype)

    # Per-tile partial batch statistics from the f32 accumulator:
    # [sum, M2 = sum((x - tile_mean)^2)] (combined with Chan's formula later).
    tile_sum = jnp.sum(acc, axis=0, keepdims=True)                # (1, Cout_pad)
    tile_mean = tile_sum * (1.0 / R)
    m2 = jnp.sum((acc - tile_mean) ** 2, axis=0, keepdims=True)
    stats_ref[0, 0, 0:1, :] = tile_sum
    stats_ref[0, 0, 1:2, :] = m2


def _bn_relu_kernel(conv_ref, scale_ref, shift_ref, out_ref):
    # conv_ref: (1, TH, W_out, Cout_pad); scale/shift: (1, Cout_pad)
    y = conv_ref[0].astype(jnp.float32) * scale_ref[0] + shift_ref[0]
    out_ref[0] = jnp.maximum(y, 0.0).astype(out_ref.dtype)


@functools.partial(jax.jit,
                   static_argnames=("padding", "dilation", "eps",
                                    "use_bf16_matmul"))
def aspp_forward(x_nchw, weight_oihw, gamma, beta, *, padding, dilation,
                 eps=1e-5, use_bf16_matmul=True):
    """Forward pass of _ASPPModule. Input/output are NCHW (PyTorch layout)."""
    N, Cin, H, W = x_nchw.shape
    Cout, _, KH, KW = weight_oihw.shape

    # stride = 1
    H_out = H + 2 * padding - dilation * (KH - 1)
    W_out = W + 2 * padding - dilation * (KW - 1)
    Hp = H + 2 * padding
    Wp = W + 2 * padding

    Cout_pad = _round_up(Cout, 128)
    Kdim = KH * KW * Cin
    matmul_dtype = jnp.bfloat16 if use_bf16_matmul else x_nchw.dtype
    conv_dtype = matmul_dtype
    in_item = 2 if use_bf16_matmul else 4
    conv_item = in_item

    # NCHW -> NHWC, zero-pad spatial dims, cast matmul inputs.
    x_nhwc = jnp.transpose(x_nchw, (0, 2, 3, 1))
    xp = jnp.pad(x_nhwc,
                 ((0, 0), (padding, padding), (padding, padding), (0, 0)))
    xp = xp.astype(matmul_dtype)

    # (O, I, KH, KW) -> (KH*KW*Cin, Cout), zero-padded to Cout_pad lanes.
    w2 = jnp.transpose(weight_oihw, (2, 3, 1, 0)).reshape(Kdim, Cout)
    w2 = jnp.pad(w2, ((0, 0), (0, Cout_pad - Cout))).astype(matmul_dtype)

    # Generation-aware VMEM budgets.
    try:
        vmem_cap = int(pltpu.get_tpu_info().vmem_capacity_bytes)
    except Exception:  # pragma: no cover - conservative fallback
        vmem_cap = 64 * 1024 * 1024
    tile_budget = max(vmem_cap // 8, 6 * 1024 * 1024)

    # Working-set accounting (double-buffered conv output + f32 accumulator +
    # slab temporaries per row; resident input + double-buffered weight fixed).
    per_row_bytes = W_out * (Cout_pad * (2 * conv_item + 4) + 2 * Cin * in_item)
    fixed_bytes = (2 * Hp * Wp * Cin * in_item
                   + 2 * Kdim * Cout_pad * in_item
                   + 4 * 2 * Cout_pad * 4)
    TH = _choose_tile_h(H_out, N, per_row_bytes, fixed_bytes, tile_budget)
    num_ht = H_out // TH

    vmem_need = fixed_bytes + TH * per_row_bytes
    vmem_limit = int(max(16 * 1024 * 1024,
                         min(2 * vmem_need + (4 << 20),
                             int(0.6 * vmem_cap))))

    conv_kernel = functools.partial(
        _conv_stats_kernel, KH=KH, KW=KW, dilation=dilation,
        W_out=W_out, Cin=Cin, TH=TH)

    conv, stats = pl.pallas_call(
        conv_kernel,
        grid=(N, num_ht),
        in_specs=[
            # Padded input: index_map ignores the row-tile index, so the block
            # is fetched once per image and stays resident across row tiles.
            pl.BlockSpec((1, Hp, Wp, Cin), lambda n, t: (n, 0, 0, 0)),
            pl.BlockSpec((Kdim, Cout_pad), lambda n, t: (0, 0)),
        ],
        out_specs=(
            pl.BlockSpec((1, TH, W_out, Cout_pad), lambda n, t: (n, t, 0, 0)),
            pl.BlockSpec((1, 1, 2, Cout_pad), lambda n, t: (n, t, 0, 0)),
        ),
        out_shape=(
            jax.ShapeDtypeStruct((N, H_out, W_out, Cout_pad), conv_dtype),
            jax.ShapeDtypeStruct((N, num_ht, 2, Cout_pad), jnp.float32),
        ),
        compiler_params=pltpu.CompilerParams(
            dimension_semantics=("parallel", "parallel"),
            vmem_limit_bytes=vmem_limit),
        cost_estimate=pl.CostEstimate(
            flops=2 * N * H_out * W_out * Kdim * Cout_pad,
            transcendentals=0,
            bytes_accessed=int(xp.size * in_item + w2.size * in_item
                               + N * H_out * W_out * Cout_pad * conv_item
                               + N * num_ht * 2 * Cout_pad * 4)),
    )(xp, w2)

    # Global training-mode batch statistics (Chan parallel-variance combine).
    count = N * H_out * W_out
    R = TH * W_out
    tile_sums = stats[:, :, 0, :]                      # (N, num_ht, Cout_pad)
    tile_m2s = stats[:, :, 1, :]
    mean = jnp.sum(tile_sums, axis=(0, 1)) / count
    tile_means = tile_sums / R
    m2 = (jnp.sum(tile_m2s, axis=(0, 1))
          + R * jnp.sum((tile_means - mean[None, None, :]) ** 2, axis=(0, 1)))
    var = jnp.maximum(m2 / count, 0.0)                 # biased variance

    gamma_pad = jnp.pad(gamma.astype(jnp.float32), (0, Cout_pad - Cout))
    beta_pad = jnp.pad(beta.astype(jnp.float32), (0, Cout_pad - Cout))
    scale = gamma_pad * lax.rsqrt(var + eps)
    shift = beta_pad - mean * scale
    scale = scale.reshape(1, Cout_pad)
    shift = shift.reshape(1, Cout_pad)

    out_nhwc = pl.pallas_call(
        _bn_relu_kernel,
        grid=(N, num_ht),
        in_specs=[
            pl.BlockSpec((1, TH, W_out, Cout_pad), lambda n, t: (n, t, 0, 0)),
            pl.BlockSpec((1, Cout_pad), lambda n, t: (0, 0)),
            pl.BlockSpec((1, Cout_pad), lambda n, t: (0, 0)),
        ],
        out_specs=pl.BlockSpec((1, TH, W_out, Cout_pad),
                               lambda n, t: (n, t, 0, 0)),
        out_shape=jax.ShapeDtypeStruct((N, H_out, W_out, Cout_pad),
                                       x_nchw.dtype),
        compiler_params=pltpu.CompilerParams(
            dimension_semantics=("parallel", "parallel"),
            vmem_limit_bytes=vmem_limit),
    )(conv, scale, shift)

    out = out_nhwc[:, :, :, :Cout]
    return jnp.transpose(out, (0, 3, 1, 2)).astype(x_nchw.dtype)


def _reference(x, w, gamma, beta, *, padding, dilation, eps=1e-5):
    """Pure-JAX reference matching the PyTorch forward (training-mode BN)."""
    conv = lax.conv_general_dilated(
        x, w, window_strides=(1, 1),
        padding=((padding, padding), (padding, padding)),
        rhs_dilation=(dilation, dilation),
        dimension_numbers=("NCHW", "OIHW", "NCHW"))
    mean = conv.mean(axis=(0, 2, 3), keepdims=True)
    var = ((conv - mean) ** 2).mean(axis=(0, 2, 3), keepdims=True)
    y = (conv - mean) / jnp.sqrt(var + eps)
    y = y * gamma[None, :, None, None] + beta[None, :, None, None]
    return jnp.maximum(y, 0.0)


if __name__ == "__main__":
    # inplanes=4, planes=8, kernel_size=3, padding=2, dilation=2, groups=1
    N, Cin, H, W = 2, 4, 16, 16
    Cout, K, padding, dilation = 8, 3, 2, 2

    key = jax.random.PRNGKey(0)
    kx, kw, kg, kb = jax.random.split(key, 4)

    x = jax.random.normal(kx, (N, Cin, H, W), jnp.float32)
    weight = jax.random.normal(kw, (Cout, Cin, K, K), jnp.float32) * 0.1
    gamma = 1.0 + 0.1 * jax.random.normal(kg, (Cout,), jnp.float32)
    beta = 0.1 * jax.random.normal(kb, (Cout,), jnp.float32)

    ref = _reference(x, weight, gamma, beta, padding=padding,
                     dilation=dilation)

    # f32 matmul path: tight correctness check.
    out_f32 = aspp_forward(x, weight, gamma, beta, padding=padding,
                           dilation=dilation, use_bf16_matmul=False)
    jax.block_until_ready(out_f32)
    assert out_f32.shape == ref.shape == (N, Cout, H, W)
    err_f32 = float(jnp.max(jnp.abs(out_f32 - ref)))
    assert err_f32 < 1e-3, err_f32

    # bf16 matmul path (production default): looser tolerance (bf16 inputs +
    # bf16 conv intermediate, f32 accumulation and stats).
    out_bf16 = aspp_forward(x, weight, gamma, beta, padding=padding,
                            dilation=dilation, use_bf16_matmul=True)
    jax.block_until_ready(out_bf16)
    assert out_bf16.shape == ref.shape
    err_bf16 = float(jnp.max(jnp.abs(out_bf16 - ref)))
    assert err_bf16 < 1e-1, err_bf16

    print("KERNEL_OK")
</pallas_src>

<mosaic_0001>
module attributes {stable_mosaic.version = 11 : i64} {
  func.func @_conv_stats_kernel(%arg0: i32, %arg1: i32, %arg2: memref<1x20x20x4xf32, #tpu.memory_space<vmem>>, %arg3: memref<36x128xf32, #tpu.memory_space<vmem>>, %arg4: memref<1x16x16x128xf32, #tpu.memory_space<vmem>>, %arg5: memref<1x1x2x128xf32, #tpu.memory_space<vmem>>) attributes {dimension_semantics = [#tpu.dimension_semantics<parallel>, #tpu.dimension_semantics<parallel>], iteration_bounds = array<i64: 2, 1>, scalar_prefetch = 0 : i64, scratch_operands = 0 : i64, tpu.core_type = #tpu.core_type<tc>, window_params = [{transform_indices = @transform_0, window_bounds = array<i64: 1, 20, 20, 4>}, {pipeline_mode = #tpu.pipeline_mode<synchronous>, transform_indices = @transform_1, window_bounds = array<i64: 36, 128>}, {transform_indices = @transform_2, window_bounds = array<i64: 1, 16, 16, 128>}, {transform_indices = @transform_3, window_bounds = array<i64: 1, 1, 2, 128>}]} {
    %cst = arith.constant 0.000000e+00 : f32
    %0 = vector.broadcast %cst : f32 to vector<256x128xf32>
    %c16_i32 = arith.constant 16 : i32
    %1 = arith.muli %arg1, %c16_i32 : i32
    %c0_i32 = arith.constant 0 : i32
    %2 = arith.addi %1, %c0_i32 : i32
    %c0 = arith.constant 0 : index
    %3 = arith.index_cast %2 : i32 to index
    %c0_0 = arith.constant 0 : index
    %c0_1 = arith.constant 0 : index
    %4 = vector.load %arg2[%c0, %3, %c0_0, %c0_1] : memref<1x20x20x4xf32, #tpu.memory_space<vmem>>, vector<1x16x20x4xf32>
    %5 = vector.shape_cast %4 : vector<1x16x20x4xf32> to vector<16x20x4xf32>
    %6 = vector.extract_strided_slice %5 {offsets = [0, 0, 0], sizes = [16, 16, 4], strides = [1, 1, 1]} : vector<16x20x4xf32> to vector<16x16x4xf32>
    %7 = vector.shape_cast %6 : vector<16x16x4xf32> to vector<256x4xf32>
    %c0_2 = arith.constant 0 : index
    %c0_3 = arith.constant 0 : index
    %8 = vector.load %arg3[%c0_2, %c0_3] : memref<36x128xf32, #tpu.memory_space<vmem>>, vector<4x128xf32>
    %cst_4 = arith.constant dense<0.000000e+00> : vector<256x128xf32>
    %9 = tpu.matmul %7, %8, %cst_4 {dimension_numbers = #tpu.dot_dimension_numbers<[1], [0], [0], [1], [0, 0, 1, 1], [], []>} : vector<256x4xf32>, vector<4x128xf32>, vector<256x128xf32> -> vector<256x128xf32>
    %10 = arith.addf %0, %9 : vector<256x128xf32>
    %11 = vector.extract_strided_slice %5 {offsets = [0, 2, 0], sizes = [16, 16, 4], strides = [1, 1, 1]} : vector<16x20x4xf32> to vector<16x16x4xf32>
    %12 = vector.shape_cast %11 : vector<16x16x4xf32> to vector<256x4xf32>
    %c4 = arith.constant 4 : index
    %c0_5 = arith.constant 0 : index
    %13 = vector.load %arg3[%c4, %c0_5] : memref<36x128xf32, #tpu.memory_space<vmem>>, vector<4x128xf32>
    %cst_6 = arith.constant dense<0.000000e+00> : vector<256x128xf32>
    %14 = tpu.matmul %12, %13, %cst_6 {dimension_numbers = #tpu.dot_dimension_numbers<[1], [0], [0], [1], [0, 0, 1, 1], [], []>} : vector<256x4xf32>, vector<4x128xf32>, vector<256x128xf32> -> vector<256x128xf32>
    %15 = arith.addf %10, %14 : vector<256x128xf32>
    %16 = vector.extract_strided_slice %5 {offsets = [0, 4, 0], sizes = [16, 16, 4], strides = [1, 1, 1]} : vector<16x20x4xf32> to vector<16x16x4xf32>
    %17 = vector.shape_cast %16 : vector<16x16x4xf32> to vector<256x4xf32>
    %c8 = arith.constant 8 : index
    %c0_7 = arith.constant 0 : index
    %18 = vector.load %arg3[%c8, %c0_7] : memref<36x128xf32, #tpu.memory_space<vmem>>, vector<4x128xf32>
    %cst_8 = arith.constant dense<0.000000e+00> : vector<256x128xf32>
    %19 = tpu.matmul %17, %18, %cst_8 {dimension_numbers = #tpu.dot_dimension_numbers<[1], [0], [0], [1], [0, 0, 1, 1], [], []>} : vector<256x4xf32>, vector<4x128xf32>, vector<256x128xf32> -> vector<256x128xf32>
    %20 = arith.addf %15, %19 : vector<256x128xf32>
    %c16_i32_9 = arith.constant 16 : i32
    %21 = arith.muli %arg1, %c16_i32_9 : i32
    %c2_i32 = arith.constant 2 : i32
    %22 = arith.addi %21, %c2_i32 : i32
    %c0_10 = arith.constant 0 : index
    %23 = arith.index_cast %22 : i32 to index
    %c0_11 = arith.constant 0 : index
    %c0_12 = arith.constant 0 : index
    %24 = vector.load %arg2[%c0_10, %23, %c0_11, %c0_12] : memref<1x20x20x4xf32, #tpu.memory_space<vmem>>, vector<1x16x20x4xf32>
    %25 = vector.shape_cast %24 : vector<1x16x20x4xf32> to vector<16x20x4xf32>
    %26 = vector.extract_strided_slice %25 {offsets = [0, 0, 0], sizes = [16, 16, 4], strides = [1, 1, 1]} : vector<16x20x4xf32> to vector<16x16x4xf32>
    %27 = vector.shape_cast %26 : vector<16x16x4xf32> to vector<256x4xf32>
    %c12 = arith.constant 12 : index
    %c0_13 = arith.constant 0 : index
    %28 = vector.load %arg3[%c12, %c0_13] : memref<36x128xf32, #tpu.memory_space<vmem>>, vector<4x128xf32>
    %cst_14 = arith.constant dense<0.000000e+00> : vector<256x128xf32>
    %29 = tpu.matmul %27, %28, %cst_14 {dimension_numbers = #tpu.dot_dimension_numbers<[1], [0], [0], [1], [0, 0, 1, 1], [], []>} : vector<256x4xf32>, vector<4x128xf32>, vector<256x128xf32> -> vector<256x128xf32>
    %30 = arith.addf %20, %29 : vector<256x128xf32>
    %31 = vector.extract_strided_slice %25 {offsets = [0, 2, 0], sizes = [16, 16, 4], strides = [1, 1, 1]} : vector<16x20x4xf32> to vector<16x16x4xf32>
    %32 = vector.shape_cast %31 : vector<16x16x4xf32> to vector<256x4xf32>
    %c16 = arith.constant 16 : index
    %c0_15 = arith.constant 0 : index
    %33 = vector.load %arg3[%c16, %c0_15] : memref<36x128xf32, #tpu.memory_space<vmem>>, vector<4x128xf32>
    %cst_16 = arith.constant dense<0.000000e+00> : vector<256x128xf32>
    %34 = tpu.matmul %32, %33, %cst_16 {dimension_numbers = #tpu.dot_dimension_numbers<[1], [0], [0], [1], [0, 0, 1, 1], [], []>} : vector<256x4xf32>, vector<4x128xf32>, vector<256x128xf32> -> vector<256x128xf32>
    %35 = arith.addf %30, %34 : vector<256x128xf32>
    %36 = vector.extract_strided_slice %25 {offsets = [0, 4, 0], sizes = [16, 16, 4], strides = [1, 1, 1]} : vector<16x20x4xf32> to vector<16x16x4xf32>
    %37 = vector.shape_cast %36 : vector<16x16x4xf32> to vector<256x4xf32>
    %c20 = arith.constant 20 : index
    %c0_17 = arith.constant 0 : index
    %38 = vector.load %arg3[%c20, %c0_17] : memref<36x128xf32, #tpu.memory_space<vmem>>, vector<4x128xf32>
    %cst_18 = arith.constant dense<0.000000e+00> : vector<256x128xf32>
    %39 = tpu.matmul %37, %38, %cst_18 {dimension_numbers = #tpu.dot_dimension_numbers<[1], [0], [0], [1], [0, 0, 1, 1], [], []>} : vector<256x4xf32>, vector<4x128xf32>, vector<256x128xf32> -> vector<256x128xf32>
    %40 = arith.addf %35, %39 : vector<256x128xf32>
    %c16_i32_19 = arith.constant 16 : i32
    %41 = arith.muli %arg1, %c16_i32_19 : i32
    %c4_i32 = arith.constant 4 : i32
    %42 = arith.addi %41, %c4_i32 : i32
    %c0_20 = arith.constant 0 : index
    %43 = arith.index_cast %42 : i32 to index
    %c0_21 = arith.constant 0 : index
    %c0_22 = arith.constant 0 : index
    %44 = vector.load %arg2[%c0_20, %43, %c0_21, %c0_22] : memref<1x20x20x4xf32, #tpu.memory_space<vmem>>, vector<1x16x20x4xf32>
    %45 = vector.shape_cast %44 : vector<1x16x20x4xf32> to vector<16x20x4xf32>
    %46 = vector.extract_strided_slice %45 {offsets = [0, 0, 0], sizes = [16, 16, 4], strides = [1, 1, 1]} : vector<16x20x4xf32> to vector<16x16x4xf32>
    %47 = vector.shape_cast %46 : vector<16x16x4xf32> to vector<256x4xf32>
    %c24 = arith.constant 24 : index
    %c0_23 = arith.constant 0 : index
    %48 = vector.load %arg3[%c24, %c0_23] : memref<36x128xf32, #tpu.memory_space<vmem>>, vector<4x128xf32>
    %cst_24 = arith.constant dense<0.000000e+00> : vector<256x128xf32>
    %49 = tpu.matmul %47, %48, %cst_24 {dimension_numbers = #tpu.dot_dimension_numbers<[1], [0], [0], [1], [0, 0, 1, 1], [], []>} : vector<256x4xf32>, vector<4x128xf32>, vector<256x128xf32> -> vector<256x128xf32>
    %50 = arith.addf %40, %49 : vector<256x128xf32>
    %51 = vector.extract_strided_slice %45 {offsets = [0, 2, 0], sizes = [16, 16, 4], strides = [1, 1, 1]} : vector<16x20x4xf32> to vector<16x16x4xf32>
    %52 = vector.shape_cast %51 : vector<16x16x4xf32> to vector<256x4xf32>
    %c28 = arith.constant 28 : index
    %c0_25 = arith.constant 0 : index
    %53 = vector.load %arg3[%c28, %c0_25] : memref<36x128xf32, #tpu.memory_space<vmem>>, vector<4x128xf32>
    %cst_26 = arith.constant dense<0.000000e+00> : vector<256x128xf32>
    %54 = tpu.matmul %52, %53, %cst_26 {dimension_numbers = #tpu.dot_dimension_numbers<[1], [0], [0], [1], [0, 0, 1, 1], [], []>} : vector<256x4xf32>, vector<4x128xf32>, vector<256x128xf32> -> vector<256x128xf32>
    %55 = arith.addf %50, %54 : vector<256x128xf32>
    %56 = vector.extract_strided_slice %45 {offsets = [0, 4, 0], sizes = [16, 16, 4], strides = [1, 1, 1]} : vector<16x20x4xf32> to vector<16x16x4xf32>
    %57 = vector.shape_cast %56 : vector<16x16x4xf32> to vector<256x4xf32>
    %c32 = arith.constant 32 : index
    %c0_27 = arith.constant 0 : index
    %58 = vector.load %arg3[%c32, %c0_27] : memref<36x128xf32, #tpu.memory_space<vmem>>, vector<4x128xf32>
    %cst_28 = arith.constant dense<0.000000e+00> : vector<256x128xf32>
    %59 = tpu.matmul %57, %58, %cst_28 {dimension_numbers = #tpu.dot_dimension_numbers<[1], [0], [0], [1], [0, 0, 1, 1], [], []>} : vector<256x4xf32>, vector<4x128xf32>, vector<256x128xf32> -> vector<256x128xf32>
    %60 = arith.addf %55, %59 : vector<256x128xf32>
    %61 = vector.shape_cast %60 : vector<256x128xf32> to vector<16x16x128xf32>
    %c0_29 = arith.constant 0 : index
    %c0_30 = arith.constant 0 : index
    %c0_31 = arith.constant 0 : index
    %c0_32 = arith.constant 0 : index
    %62 = vector.load %arg4[%c0_29, %c0_30, %c0_31, %c0_32] : memref<1x16x16x128xf32, #tpu.memory_space<vmem>>, vector<1x16x16x128xf32>
    %63 = vector.shape_cast %62 : vector<1x16x16x128xf32> to vector<16x16x128xf32>
    %64 = vector.shape_cast %61 : vector<16x16x128xf32> to vector<1x16x16x128xf32>
    tpu.vector_store %arg4[%c0_29, %c0_30, %c0_31, %c0_32], %64 {strides = array<i32>} : memref<1x16x16x128xf32, #tpu.memory_space<vmem>>, vector<1x16x16x128xf32>,
    %cst_33 = arith.constant dense<0.000000e+00> : vector<128xf32>
    %65 = vector.multi_reduction <add>, %60, %cst_33 [0] : vector<256x128xf32> to vector<128xf32>
    %66 = vector.shape_cast %65 : vector<128xf32> to vector<1x128xf32>
    %cst_34 = arith.constant 3.906250e-03 : f32
    %67 = vector.broadcast %cst_34 : f32 to vector<1x128xf32>
    %68 = arith.mulf %66, %67 : vector<1x128xf32>
    %69 = vector.broadcast %68 : vector<1x128xf32> to vector<256x128xf32>
    %70 = arith.subf %60, %69 : vector<256x128xf32>
    %71 = arith.mulf %70, %70 : vector<256x128xf32>
    %cst_35 = arith.constant dense<0.000000e+00> : vector<128xf32>
    %72 = vector.multi_reduction <add>, %71, %cst_35 [0] : vector<256x128xf32> to vector<128xf32>
    %73 = vector.shape_cast %72 : vector<128xf32> to vector<1x128xf32>
    %c0_36 = arith.constant 0 : index
    %c0_37 = arith.constant 0 : index
    %c0_38 = arith.constant 0 : index
    %c0_39 = arith.constant 0 : index
    %74 = vector.load %arg5[%c0_36, %c0_37, %c0_38, %c0_39] : memref<1x1x2x128xf32, #tpu.memory_space<vmem>>, vector<1x1x1x128xf32>
    %75 = vector.shape_cast %74 : vector<1x1x1x128xf32> to vector<1x128xf32>
    %76 = vector.shape_cast %66 : vector<1x128xf32> to vector<1x1x1x128xf32>
    tpu.vector_store %arg5[%c0_36, %c0_37, %c0_38, %c0_39], %76 {strides = array<i32>} : memref<1x1x2x128xf32, #tpu.memory_space<vmem>>, vector<1x1x1x128xf32>,
    %c0_40 = arith.constant 0 : index
    %c0_41 = arith.constant 0 : index
    %c1 = arith.constant 1 : index
    %c0_42 = arith.constant 0 : index
    %77 = vector.load %arg5[%c0_40, %c0_41, %c1, %c0_42] : memref<1x1x2x128xf32, #tpu.memory_space<vmem>>, vector<1x1x1x128xf32>
    %78 = vector.shape_cast %77 : vector<1x1x1x128xf32> to vector<1x128xf32>
    %79 = vector.shape_cast %73 : vector<1x128xf32> to vector<1x1x1x128xf32>
    tpu.vector_store %arg5[%c0_40, %c0_41, %c1, %c0_42], %79 {strides = array<i32>} : memref<1x1x2x128xf32, #tpu.memory_space<vmem>>, vector<1x1x1x128xf32>,
    return
  }
  func.func @transform_0(%arg0: i32, %arg1: i32) -> (i32, i32, i32, i32) {
    %c0_i32 = arith.constant 0 : i32
    %c0_i32_0 = arith.constant 0 : i32
    %c0_i32_1 = arith.constant 0 : i32
    %c0_i32_2 = arith.constant 0 : i32
    return %arg0, %c0_i32, %c0_i32_0, %c0_i32_1 : i32, i32, i32, i32
  }
  func.func @transform_1(%arg0: i32, %arg1: i32) -> (i32, i32) {
    %c0_i32 = arith.constant 0 : i32
    %c0_i32_0 = arith.constant 0 : i32
    %c0_i32_1 = arith.constant 0 : i32
    return %c0_i32, %c0_i32_0 : i32, i32
  }
  func.func @transform_2(%arg0: i32, %arg1: i32) -> (i32, i32, i32, i32) {
    %c0_i32 = arith.constant 0 : i32
    %c0_i32_0 = arith.constant 0 : i32
    %c0_i32_1 = arith.constant 0 : i32
    return %arg0, %arg1, %c0_i32, %c0_i32_0 : i32, i32, i32, i32
  }
  func.func @transform_3(%arg0: i32, %arg1: i32) -> (i32, i32, i32, i32) {
    %c0_i32 = arith.constant 0 : i32
    %c0_i32_0 = arith.constant 0 : i32
    %c0_i32_1 = arith.constant 0 : i32
    return %arg0, %arg1, %c0_i32, %c0_i32_0 : i32, i32, i32, i32
  }
}

module attributes {stable_mosaic.version = 11 : i64} {
  func.func @_bn_relu_kernel(%arg0: i32, %arg1: i32, %arg2: memref<1x16x16x128xf32, #tpu.memory_space<vmem>>, %arg3: memref<1x128xf32, #tpu.memory_space<vmem>>, %arg4: memref<1x128xf32, #tpu.memory_space<vmem>>, %arg5: memref<1x16x16x128xf32, #tpu.memory_space<vmem>>) attributes {dimension_semantics = [#tpu.dimension_semantics<parallel>, #tpu.dimension_semantics<parallel>], iteration_bounds = array<i64: 2, 1>, scalar_prefetch = 0 : i64, scratch_operands = 0 : i64, tpu.core_type = #tpu.core_type<tc>, window_params = [{transform_indices = @transform_0, window_bounds = array<i64: 1, 16, 16, 128>}, {pipeline_mode = #tpu.pipeline_mode<synchronous>, transform_indices = @transform_1, window_bounds = array<i64: 1, 128>}, {pipeline_mode = #tpu.pipeline_mode<synchronous>, transform_indices = @transform_2, window_bounds = array<i64: 1, 128>}, {transform_indices = @transform_3, window_bounds = array<i64: 1, 16, 16, 128>}]} {
    %c0 = arith.constant 0 : index
    %c0_0 = arith.constant 0 : index
    %c0_1 = arith.constant 0 : index
    %c0_2 = arith.constant 0 : index
    %0 = vector.load %arg2[%c0, %c0_0, %c0_1, %c0_2] : memref<1x16x16x128xf32, #tpu.memory_space<vmem>>, vector<1x16x16x128xf32>
    %1 = vector.shape_cast %0 : vector<1x16x16x128xf32> to vector<16x16x128xf32>
    %c0_3 = arith.constant 0 : index
    %c0_4 = arith.constant 0 : index
    %2 = vector.load %arg3[%c0_3, %c0_4] : memref<1x128xf32, #tpu.memory_space<vmem>>, vector<1x128xf32>
    %3 = vector.shape_cast %2 : vector<1x128xf32> to vector<128xf32>
    %4 = vector.shape_cast %3 : vector<128xf32> to vector<1x1x128xf32>
    %5 = vector.broadcast %4 : vector<1x1x128xf32> to vector<16x16x128xf32>
    %6 = arith.mulf %1, %5 : vector<16x16x128xf32>
    %c0_5 = arith.constant 0 : index
    %c0_6 = arith.constant 0 : index
    %7 = vector.load %arg4[%c0_5, %c0_6] : memref<1x128xf32, #tpu.memory_space<vmem>>, vector<1x128xf32>
    %8 = vector.shape_cast %7 : vector<1x128xf32> to vector<128xf32>
    %9 = vector.shape_cast %8 : vector<128xf32> to vector<1x1x128xf32>
    %10 = vector.broadcast %9 : vector<1x1x128xf32> to vector<16x16x128xf32>
    %11 = arith.addf %6, %10 : vector<16x16x128xf32>
    %cst = arith.constant 0.000000e+00 : f32
    %12 = vector.broadcast %cst : f32 to vector<16x16x128xf32>
    %13 = arith.maximumf %11, %12 : vector<16x16x128xf32>
    %c0_7 = arith.constant 0 : index
    %c0_8 = arith.constant 0 : index
    %c0_9 = arith.constant 0 : index
    %c0_10 = arith.constant 0 : index
    %14 = vector.load %arg5[%c0_7, %c0_8, %c0_9, %c0_10] : memref<1x16x16x128xf32, #tpu.memory_space<vmem>>, vector<1x16x16x128xf32>
    %15 = vector.shape_cast %14 : vector<1x16x16x128xf32> to vector<16x16x128xf32>
    %16 = vector.shape_cast %13 : vector<16x16x128xf32> to vector<1x16x16x128xf32>
    tpu.vector_store %arg5[%c0_7, %c0_8, %c0_9, %c0_10], %16 {strides = array<i32>} : memref<1x16x16x128xf32, #tpu.memory_space<vmem>>, vector<1x16x16x128xf32>,
    return
  }
  func.func @transform_0(%arg0: i32, %arg1: i32) -> (i32, i32, i32, i32) {
    %c0_i32 = arith.constant 0 : i32
    %c0_i32_0 = arith.constant 0 : i32
    %c0_i32_1 = arith.constant 0 : i32
    return %arg0, %arg1, %c0_i32, %c0_i32_0 : i32, i32, i32, i32
  }
  func.func @transform_1(%arg0: i32, %arg1: i32) -> (i32, i32) {
    %c0_i32 = arith.constant 0 : i32
    %c0_i32_0 = arith.constant 0 : i32
    %c0_i32_1 = arith.constant 0 : i32
    return %c0_i32, %c0_i32_0 : i32, i32
  }
  func.func @transform_2(%arg0: i32, %arg1: i32) -> (i32, i32) {
    %c0_i32 = arith.constant 0 : i32
    %c0_i32_0 = arith.constant 0 : i32
    %c0_i32_1 = arith.constant 0 : i32
    return %c0_i32, %c0_i32_0 : i32, i32
  }
  func.func @transform_3(%arg0: i32, %arg1: i32) -> (i32, i32, i32, i32) {
    %c0_i32 = arith.constant 0 : i32
    %c0_i32_0 = arith.constant 0 : i32
    %c0_i32_1 = arith.constant 0 : i32
    return %arg0, %arg1, %c0_i32, %c0_i32_0 : i32, i32, i32, i32
  }
}

</mosaic_0001>

<llo_original>
// kernel: aspp_forward.3
$region0: #{aspp_forward.3}
  #allocation0 [shape = 'u32[]', space=smem, size = 0x4, offset = 0x4, fixed_abs, tag = 'smem constant byte address 0x4 - core index']
  #allocation1 [shape = 'u32[144,128]{1,0:T(1,128)}', space=vmem, size = 0x12000, scoped, tag = 'internal scratch']
  %s0 = inlined_call_operand.vmem [shape: f32[2,16,16,128], index: 0, kind: input, shape index: {}]
  %s1 = inlined_call_operand.vmem [shape: f32[1,128], index: 1, kind: input, shape index: {}]
  %s2 = inlined_call_operand.vmem [shape: f32[1,128], index: 2, kind: input, shape index: {}]
  %s3 = inlined_call_operand.vmem [shape: f32[2,16,16,128], index: 3, kind: output, shape index: {}]
  %s4 = sld [smem:[#allocation0]]
  $region45: #{aspp_forward.3} parent=0
    _
  %s6 = ssub.s32 1, %s4
  %s7 = scalar_select 0, %s6, %s4
  loop: start=0, step=1, limit=4
  $region2: #{aspp_forward.3} parent=0 // loop_pre_header
    _
  $region3: #{aspp_forward.3} parent=0 // loop_header
    %s9 = sphi 0, %s13
    %p10 = scmp.ge.s32.totalorder %s9, 4
    %s16 = sphi 0, %s28
    %s17 = sphi 0, %s24
    %s18 = sphi 0, %s16
    %s19 = sphi 0, %s17
    %s20 = sphi 0, %s18
    %s21 = sphi 0, %s19
    %s33 = sphi 0, %s35
    %s36 = sphi 0, %s33
    %s37 = sphi 0, %s36
    %s53 = sphi 0, %s37
    %s57 = sphi 0, %s57
    %s59 = sphi 0, %s57
    %s60 = sphi 0, %s59
    %s74 = sphi 0, %s60
    %s78 = sphi 0, %s78
    %s80 = sphi 0, %s78
    %s81 = sphi 0, %s80
    %s95 = sphi 0, %s81
    %s103 = sphi 0, %s105
    %s106 = sphi 0, %s103
    %s107 = sphi 0, %s106
    %s123 = sphi 0, %s107
  $region4: #{aspp_forward.3} parent=0 // loop_header_branch
    %12 = sbr.rel (%p10) target = $region8
  $region5: #{aspp_forward.3} parent=0 // loop_body
    %s14 = ssub.s32 %s9, 1
    %s15 = ssub.s32 %s9, 2
    %s22 = sadd.s32 1, %s17
    %p23 = scmp.ge.s32.totalorder %s22, 1
    %s24 = scalar_select %p23, 0, %s22
    %s25 = sadd.s32 1, %s16
    %s26 = scalar_select %p23, %s25, %s16
    %p27 = scmp.ge.s32.totalorder %s26, 2
    %s28 = scalar_select %p27, 0, %s26
    %s29 = ssub.s32 %s16, %s28
    %s30 = ssub.s32 %s17, %s24
    %s31 = sor.u32 %s29, %s30
    %p32 = scmp.eq.s32.totalorder %s31, 0
    %s34 = sadd.s32 %s33, 1
    %s35 = scalar_select %p32, %s33, %s34
    %p38 = pneg %p32
    %p39 = scmp.eq.s32.totalorder %s9, 1
    %p40 = por %p38, %p39
    %p41 = scmp.ne.s32.totalorder %s33, %s36
    %p42 = scmp.eq.s32.totalorder %s9, 0
    %p43 = por %p41, %p42
    %p44 = scmp.ne.s32.totalorder %s33, %s36
    %p45 = scmp.eq.s32.totalorder %s14, 1
    %p46 = por %p44, %p45
    %p47 = scmp.ne.s32.totalorder %s36, %s37
    %p48 = scmp.eq.s32.totalorder %s14, 0
    %p49 = por %p47, %p48
    %p50 = scmp.ne.s32.totalorder %s36, %s37
    %p51 = scmp.eq.s32.totalorder %s15, 1
    %p52 = por %p50, %p51
    %p54 = scmp.ne.s32.totalorder %s37, %s53
    %p55 = scmp.eq.s32.totalorder %s15, 0
    %p56 = por %p54, %p55
    %s58 = sadd.s32 %s57, 1
    %p61 = scmp.eq.s32.totalorder %s9, 1
    %p62 = scmp.ne.s32.totalorder %s57, %s59
    %p63 = scmp.eq.s32.totalorder %s9, 0
    %p64 = por %p62, %p63
    %p65 = scmp.ne.s32.totalorder %s57, %s59
    %p66 = scmp.eq.s32.totalorder %s14, 1
    %p67 = por %p65, %p66
    %p68 = scmp.ne.s32.totalorder %s59, %s60
    %p69 = scmp.eq.s32.totalorder %s14, 0
    %p70 = por %p68, %p69
    %p71 = scmp.ne.s32.totalorder %s59, %s60
    %p72 = scmp.eq.s32.totalorder %s15, 1
    %p73 = por %p71, %p72
    %p75 = scmp.ne.s32.totalorder %s60, %s74
    %p76 = scmp.eq.s32.totalorder %s15, 0
    %p77 = por %p75, %p76
    %s79 = sadd.s32 %s78, 1
    %p82 = scmp.eq.s32.totalorder %s9, 1
    %p83 = scmp.ne.s32.totalorder %s78, %s80
    %p84 = scmp.eq.s32.totalorder %s9, 0
    %p85 = por %p83, %p84
    %p86 = scmp.ne.s32.totalorder %s78, %s80
    %p87 = scmp.eq.s32.totalorder %s14, 1
    %p88 = por %p86, %p87
    %p89 = scmp.ne.s32.totalorder %s80, %s81
    %p90 = scmp.eq.s32.totalorder %s14, 0
    %p91 = por %p89, %p90
    %p92 = scmp.ne.s32.totalorder %s80, %s81
    %p93 = scmp.eq.s32.totalorder %s15, 1
    %p94 = por %p92, %p93
    %p96 = scmp.ne.s32.totalorder %s81, %s95
    %p97 = scmp.eq.s32.totalorder %s15, 0
    %p98 = por %p96, %p97
    %s99 = ssub.s32 %s16, %s28
    %s100 = ssub.s32 %s17, %s24
    %s101 = sor.u32 %s99, %s100
    %p102 = scmp.eq.s32.totalorder %s101, 0
    %s104 = sadd.s32 %s103, 1
    %s105 = scalar_select %p102, %s103, %s104
    %p108 = pneg %p102
    %p109 = scmp.eq.s32.totalorder %s9, 1
    %p110 = por %p108, %p109
    %p111 = scmp.ne.s32.totalorder %s103, %s106
    %p112 = scmp.eq.s32.totalorder %s9, 0
    %p113 = por %p111, %p112
    %p114 = scmp.ne.s32.totalorder %s103, %s106
    %p115 = scmp.eq.s32.totalorder %s14, 1
    %p116 = por %p114, %p115
    %p117 = scmp.ne.s32.totalorder %s106, %s107
    %p118 = scmp.eq.s32.totalorder %s14, 0
    %p119 = por %p117, %p118
    %p120 = scmp.ne.s32.totalorder %s106, %s107
    %p121 = scmp.eq.s32.totalorder %s15, 1
    %p122 = por %p120, %p121
    %p124 = scmp.ne.s32.totalorder %s107, %s123
    %p125 = scmp.eq.s32.totalorder %s15, 0
    %p126 = por %p124, %p125
    %p127 = scmp.le.s32.totalorder 1, %s9
    %p128 = scmp.lt.s32.totalorder %s9, 3
    %p129 = pnand %p127, %p128
    %p130 = pneg %p129
    // Predicated region
    $region9: #{aspp_forward.3} parent=5 // pred_check
      _
    $region10: #{aspp_forward.3} parent=5 // pred_check_branch
      %132 = sbr.rel (%p129) target = $region12
    $region11: #{aspp_forward.3} parent=5 // pred_region
      %s133 = ssub.s32 %s9, 1
      // Predicated region
      $region13: #{aspp_forward.3} parent=11 // pred_check
        %p134 = pneg %p70
      $region14: #{aspp_forward.3} parent=11 // pred_check_branch
        %136 = sbr.rel (%p134) target = $region16
      $region15: #{aspp_forward.3} parent=11 // pred_region
        _
      $region16: #{aspp_forward.3} parent=11 // pred_fallthru
        _
      // Predicated region
      $region17: #{aspp_forward.3} parent=11 // pred_check
        %p137 = pneg %p91
      $region18: #{aspp_forward.3} parent=11 // pred_check_branch
        %139 = sbr.rel (%p137) target = $region20
      $region19: #{aspp_forward.3} parent=11 // pred_region
        _
      $region20: #{aspp_forward.3} parent=11 // pred_fallthru
        _
    $region12: #{aspp_forward.3} parent=5 // pred_fallthru
      _
    %p140 = scmp.lt.s32.totalorder %s9, 2
    // Predicated region
    $region21: #{aspp_forward.3} parent=5 // pred_check
      %p141 = pneg %p140
    $region22: #{aspp_forward.3} parent=5 // pred_check_branch
      %143 = sbr.rel (%p141) target = $region24
    $region23: #{aspp_forward.3} parent=5 // pred_region
      // Predicated region
      $region25: #{aspp_forward.3} parent=23 // pred_check
        %p144 = pneg %p43
      $region26: #{aspp_forward.3} parent=23 // pred_check_branch
        %146 = sbr.rel (%p144) target = $region28
      $region27: #{aspp_forward.3} parent=23 // pred_region
        %s147 = smul.u32 16, %s17
        %p148 = scmp.lt.s32.totalorder %s16, 1
        %s149 = scalar_select %p148, %s16, 1
        %p150 = scmp.lt.s32.totalorder %s147, 15
        %s151 = scalar_select %p150, %s147, 15
        %s152 = smul.addr %s151, 2
        %s153 = smul.addr %s149, 32
        %s154 = sadd.s32 %s152, %s153
        %s155 = smul.addr %s154, 8
        %s156 = scalar_lea.vmem %s0, %s155
        %s157 = smul.u32 16, %s17
      $region28: #{aspp_forward.3} parent=23 // pred_fallthru
        _
    $region24: #{aspp_forward.3} parent=5 // pred_fallthru
      _
    %p158 = scmp.le.s32.totalorder 1, %s9
    %p159 = scmp.lt.s32.totalorder %s9, 3
    %p160 = pnand %p158, %p159
    %p161 = pneg %p160
    // Predicated region
    $region29: #{aspp_forward.3} parent=5 // pred_check
      _
    $region30: #{aspp_forward.3} parent=5 // pred_check_branch
      %163 = sbr.rel (%p160) target = $region32
    $region31: #{aspp_forward.3} parent=5 // pred_region
      %s164 = ssub.s32 %s9, 1
      %s165 = smul.u32 16, %s19
      %p166 = scmp.lt.s32.totalorder %s18, 1
      %s167 = scalar_select %p166, %s18, 1
      %p168 = scmp.lt.s32.totalorder %s165, 15
      %s169 = scalar_select %p168, %s165, 15
      %s170 = smul.addr %s169, 2
      %s171 = smul.addr %s167, 32
      %s172 = sadd.s32 %s170, %s171
      %s173 = smul.addr %s172, 8
      %s174 = scalar_lea.vmem %s0, %s173
      %p175 = pneg %p49
      %p176 = pneg %p46
      %p177 = pneg %p70
      %p178 = pneg %p67
      %p179 = pneg %p91
      %p180 = pneg %p88
      %p181 = pneg %p119
      %p182 = pneg %p116
      %s183 = smul.u32 16, %s19
      %p184 = scmp.lt.s32.totalorder %s18, 1
      %s185 = scalar_select %p184, %s18, 1
      %p186 = scmp.lt.s32.totalorder %s183, 15
      %s187 = scalar_select %p186, %s183, 15
      %s188 = smul.addr %s187, 2
      %s189 = smul.addr %s185, 32
      %s190 = sadd.s32 %s188, %s189
      %s191 = smul.addr %s190, 8
      %s192 = scalar_lea.vmem %s3, %s191
      %s193 = smul.u32 16, %s19
      %p194 = scmp.lt.s32.totalorder %s18, 1
      %s195 = scalar_select %p194, %s18, 1
      %p196 = scmp.lt.s32.totalorder %s193, 15
      %s197 = scalar_select %p196, %s193, 15
      %s198 = smul.addr %s197, 2
      %s199 = smul.addr %s195, 32
      %s200 = sadd.s32 %s198, %s199
      %s201 = smul.addr %s200, 8
      %s202 = scalar_lea.vmem %s0, %s201
      %s203 = smul.u32 16, %s19
      %s204 = smul.u32 16, %s19
      %p205 = scmp.lt.s32.totalorder %s18, 1
      %s206 = scalar_select %p205, %s18, 1
      %p207 = scmp.lt.s32.totalorder %s204, 15
      %s208 = scalar_select %p207, %s204, 15
      %s209 = smul.addr %s208, 2
      %s210 = smul.addr %s206, 32
      %s211 = sadd.s32 %s209, %s210
      %s212 = smul.addr %s211, 8
      %s213 = scalar_lea.vmem %s3, %s212
      %s214 = smul.u32 16, %s19
      %v215 = vld [vmem:[%s202] sm:$0xff]
      %v216 = vld [vmem:[%s202 + $0x8] sm:$0xff]
      %v217 = vld [vmem:[%s202 + $0x10] sm:$0xff]
      %v218 = vld [vmem:[%s202 + $0x18] sm:$0xff]
      %v219 = vld [vmem:[%s202 + $0x20] sm:$0xff]
      %v220 = vld [vmem:[%s202 + $0x28] sm:$0xff]
      %v221 = vld [vmem:[%s202 + $0x30] sm:$0xff]
      %v222 = vld [vmem:[%s202 + $0x38] sm:$0xff]
      %v223 = vld [vmem:[%s202 + $0x40] sm:$0xff]
      %v224 = vld [vmem:[%s202 + $0x48] sm:$0xff]
      %v225 = vld [vmem:[%s202 + $0x50] sm:$0xff]
      %v226 = vld [vmem:[%s202 + $0x58] sm:$0xff]
      %v227 = vld [vmem:[%s202 + $0x60] sm:$0xff]
      %v228 = vld [vmem:[%s202 + $0x68] sm:$0xff]
      %v229 = vld [vmem:[%s202 + $0x70] sm:$0xff]
      %v230 = vld [vmem:[%s202 + $0x78] sm:$0xff]
      %v231 = vld [vmem:[%s202 + $0x80] sm:$0xff]
      %v232 = vld [vmem:[%s202 + $0x88] sm:$0xff]
      %v233 = vld [vmem:[%s202 + $0x90] sm:$0xff]
      %v234 = vld [vmem:[%s202 + $0x98] sm:$0xff]
      %v235 = vld [vmem:[%s202 + $0xa0] sm:$0xff]
      %v236 = vld [vmem:[%s202 + $0xa8] sm:$0xff]
      %v237 = vld [vmem:[%s202 + $0xb0] sm:$0xff]
      %v238 = vld [vmem:[%s202 + $0xb8] sm:$0xff]
      %v239 = vld [vmem:[%s202 + $0xc0] sm:$0xff]
      %v240 = vld [vmem:[%s202 + $0xc8] sm:$0xff]
      %v241 = vld [vmem:[%s202 + $0xd0] sm:$0xff]
      %v242 = vld [vmem:[%s202 + $0xd8] sm:$0xff]
      %v243 = vld [vmem:[%s202 + $0xe0] sm:$0xff]
      %v244 = vld [vmem:[%s202 + $0xe8] sm:$0xff]
      %v245 = vld [vmem:[%s202 + $0xf0] sm:$0xff]
      %v246 = vld [vmem:[%s202 + $0xf8] sm:$0xff]
      %v247 = vld [vmem:[%s1] sm:$0x1]
      %v249 = vlaneseq
      %v250 = vshrl.u32 %v249, 7
      %v251 = vsub.s32 0, %v250
      %v252 = vrot.slane %v247, %v251
      %v254 = vmul.f32 %v215, %v252
      %v255 = vmul.f32 %v216, %v252
      %v256 = vmul.f32 %v217, %v252
      %v257 = vmul.f32 %v218, %v252
      %v258 = vmul.f32 %v219, %v252
      %v259 = vmul.f32 %v220, %v252
      %v260 = vmul.f32 %v221, %v252
      %v261 = vmul.f32 %v222, %v252
      %v262 = vmul.f32 %v223, %v252
      %v263 = vmul.f32 %v224, %v252
      %v264 = vmul.f32 %v225, %v252
      %v265 = vmul.f32 %v226, %v252
      %v266 = vmul.f32 %v227, %v252
      %v267 = vmul.f32 %v228, %v252
      %v268 = vmul.f32 %v229, %v252
      %v269 = vmul.f32 %v230, %v252
      %v270 = vmul.f32 %v231, %v252
      %v271 = vmul.f32 %v232, %v252
      %v272 = vmul.f32 %v233, %v252
      %v273 = vmul.f32 %v234, %v252
      %v274 = vmul.f32 %v235, %v252
      %v275 = vmul.f32 %v236, %v252
      %v276 = vmul.f32 %v237, %v252
      %v277 = vmul.f32 %v238, %v252
      %v278 = vmul.f32 %v239, %v252
      %v279 = vmul.f32 %v240, %v252
      %v280 = vmul.f32 %v241, %v252
      %v281 = vmul.f32 %v242, %v252
      %v282 = vmul.f32 %v243, %v252
      %v283 = vmul.f32 %v244, %v252
      %v284 = vmul.f32 %v245, %v252
      %v285 = vmul.f32 %v246, %v252
      %v286 = vld [vmem:[%s2] sm:$0x1]
      %v288 = vlaneseq
      %v289 = vshrl.u32 %v288, 7
      %v290 = vsub.s32 0, %v289
      %v291 = vrot.slane %v286, %v290
      %v293 = vadd.f32 %v254, %v291
      %v294 = vadd.f32 %v255, %v291
      %v295 = vadd.f32 %v256, %v291
      %v296 = vadd.f32 %v257, %v291
      %v297 = vadd.f32 %v258, %v291
      %v298 = vadd.f32 %v259, %v291
      %v299 = vadd.f32 %v260, %v291
      %v300 = vadd.f32 %v261, %v291
      %v301 = vadd.f32 %v262, %v291
      %v302 = vadd.f32 %v263, %v291
      %v303 = vadd.f32 %v264, %v291
      %v304 = vadd.f32 %v265, %v291
      %v305 = vadd.f32 %v266, %v291
      %v306 = vadd.f32 %v267, %v291
      %v307 = vadd.f32 %v268, %v291
      %v308 = vadd.f32 %v269, %v291
      %v309 = vadd.f32 %v270, %v291
      %v310 = vadd.f32 %v271, %v291
      %v311 = vadd.f32 %v272, %v291
      %v312 = vadd.f32 %v273, %v291
      %v313 = vadd.f32 %v274, %v291
      %v314 = vadd.f32 %v275, %v291
      %v315 = vadd.f32 %v276, %v291
      %v316 = vadd.f32 %v277, %v291
      %v317 = vadd.f32 %v278, %v291
      %v318 = vadd.f32 %v279, %v291
      %v319 = vadd.f32 %v280, %v291
      %v320 = vadd.f32 %v281, %v291
      %v321 = vadd.f32 %v282, %v291
      %v322 = vadd.f32 %v283, %v291
      %v323 = vadd.f32 %v284, %v291
      %v324 = vadd.f32 %v285, %v291
      %v325 = vmax.f32 %v293, 0.0
      %v326 = vmax.f32 %v294, 0.0
      %v327 = vmax.f32 %v295, 0.0
      %v328 = vmax.f32 %v296, 0.0
      %v329 = vmax.f32 %v297, 0.0
      %v330 = vmax.f32 %v298, 0.0
      %v331 = vmax.f32 %v299, 0.0
      %v332 = vmax.f32 %v300, 0.0
      %v333 = vmax.f32 %v301, 0.0
      %v334 = vmax.f32 %v302, 0.0
      %v335 = vmax.f32 %v303, 0.0
      %v336 = vmax.f32 %v304, 0.0
      %v337 = vmax.f32 %v305, 0.0
      %v338 = vmax.f32 %v306, 0.0
      %v339 = vmax.f32 %v307, 0.0
      %v340 = vmax.f32 %v308, 0.0
      %v341 = vmax.f32 %v309, 0.0
      %v342 = vmax.f32 %v310, 0.0
      %v343 = vmax.f32 %v311, 0.0
      %v344 = vmax.f32 %v312, 0.0
      %v345 = vmax.f32 %v313, 0.0
      %v346 = vmax.f32 %v314, 0.0
      %v347 = vmax.f32 %v315, 0.0
      %v348 = vmax.f32 %v316, 0.0
      %v349 = vmax.f32 %v317, 0.0
      %v350 = vmax.f32 %v318, 0.0
      %v351 = vmax.f32 %v319, 0.0
      %v352 = vmax.f32 %v320, 0.0
      %v353 = vmax.f32 %v321, 0.0
      %v354 = vmax.f32 %v322, 0.0
      %v355 = vmax.f32 %v323, 0.0
      %v356 = vmax.f32 %v324, 0.0
      %357 = vst [vmem:[%s213] sm:$0xff] %v325
      %358 = vst [vmem:[%s213 + $0x8] sm:$0xff] %v326
      %359 = vst [vmem:[%s213 + $0x10] sm:$0xff] %v327
      %360 = vst [vmem:[%s213 + $0x18] sm:$0xff] %v328
      %361 = vst [vmem:[%s213 + $0x20] sm:$0xff] %v329
      %362 = vst [vmem:[%s213 + $0x28] sm:$0xff] %v330
      %363 = vst [vmem:[%s213 + $0x30] sm:$0xff] %v331
      %364 = vst [vmem:[%s213 + $0x38] sm:$0xff] %v332
      %365 = vst [vmem:[%s213 + $0x40] sm:$0xff] %v333
      %366 = vst [vmem:[%s213 + $0x48] sm:$0xff] %v334
      %367 = vst [vmem:[%s213 + $0x50] sm:$0xff] %v335
      %368 = vst [vmem:[%s213 + $0x58] sm:$0xff] %v336
      %369 = vst [vmem:[%s213 + $0x60] sm:$0xff] %v337
      %370 = vst [vmem:[%s213 + $0x68] sm:$0xff] %v338
      %371 = vst [vmem:[%s213 + $0x70] sm:$0xff] %v339
      %372 = vst [vmem:[%s213 + $0x78] sm:$0xff] %v340
      %373 = vst [vmem:[%s213 + $0x80] sm:$0xff] %v341
      %374 = vst [vmem:[%s213 + $0x88] sm:$0xff] %v342
      %375 = vst [vmem:[%s213 + $0x90] sm:$0xff] %v343
      %376 = vst [vmem:[%s213 + $0x98] sm:$0xff] %v344
      %377 = vst [vmem:[%s213 + $0xa0] sm:$0xff] %v345
      %378 = vst [vmem:[%s213 + $0xa8] sm:$0xff] %v346
      %379 = vst [vmem:[%s213 + $0xb0] sm:$0xff] %v347
      %380 = vst [vmem:[%s213 + $0xb8] sm:$0xff] %v348
      %381 = vst [vmem:[%s213 + $0xc0] sm:$0xff] %v349
      %382 = vst [vmem:[%s213 + $0xc8] sm:$0xff] %v350
      %383 = vst [vmem:[%s213 + $0xd0] sm:$0xff] %v351
      %384 = vst [vmem:[%s213 + $0xd8] sm:$0xff] %v352
      %385 = vst [vmem:[%s213 + $0xe0] sm:$0xff] %v353
      %386 = vst [vmem:[%s213 + $0xe8] sm:$0xff] %v354
      %387 = vst [vmem:[%s213 + $0xf0] sm:$0xff] %v355
      %388 = vst [vmem:[%s213 + $0xf8] sm:$0xff] %v356
      %s389 = smul.u32 16, %s19
      %p390 = scmp.lt.s32.totalorder %s18, 1
      %s391 = scalar_select %p390, %s18, 1
      %p392 = scmp.lt.s32.totalorder %s389, 15
      %s393 = scalar_select %p392, %s389, 15
      %s394 = smul.addr %s393, 2
      %s395 = smul.addr %s391, 32
      %s396 = sadd.s32 %s394, %s395
      %s397 = smul.addr %s396, 8
      %s398 = scalar_lea.vmem %s3, %s397
      // Predicated region
      $region33: #{aspp_forward.3} parent=31 // pred_check
        %p399 = pneg %p116
      $region34: #{aspp_forward.3} parent=31 // pred_check_branch
        %401 = sbr.rel (%p399) target = $region36
      $region35: #{aspp_forward.3} parent=31 // pred_region
        %s402 = smul.u32 16, %s19
      $region36: #{aspp_forward.3} parent=31 // pred_fallthru
        _
    $region32: #{aspp_forward.3} parent=5 // pred_fallthru
      _
    %p403 = scmp.le.s32.totalorder 2, %s9
    // Predicated region
    $region37: #{aspp_forward.3} parent=5 // pred_check
      %p404 = pneg %p403
    $region38: #{aspp_forward.3} parent=5 // pred_check_branch
      %406 = sbr.rel (%p404) target = $region40
    $region39: #{aspp_forward.3} parent=5 // pred_region
      %s407 = ssub.s32 %s9, 2
      // Predicated region
      $region41: #{aspp_forward.3} parent=39 // pred_check
        %p408 = pneg %p122
      $region42: #{aspp_forward.3} parent=39 // pred_check_branch
        %410 = sbr.rel (%p408) target = $region44
      $region43: #{aspp_forward.3} parent=39 // pred_region
        %s411 = smul.u32 16, %s21
        %p412 = scmp.lt.s32.totalorder %s20, 1
        %s413 = scalar_select %p412, %s20, 1
        %p414 = scmp.lt.s32.totalorder %s411, 15
        %s415 = scalar_select %p414, %s411, 15
        %s416 = smul.addr %s415, 2
        %s417 = smul.addr %s413, 32
        %s418 = sadd.s32 %s416, %s417
        %s419 = smul.addr %s418, 8
        %s420 = scalar_lea.vmem %s3, %s419
      $region44: #{aspp_forward.3} parent=39 // pred_fallthru
        _
    $region40: #{aspp_forward.3} parent=5 // pred_fallthru
      _
  $region6: #{aspp_forward.3} parent=0 // loop_footer
    %s13 = sadd.s32 1, %s9
  $region7: #{aspp_forward.3} parent=0 // loop_footer_branch
    %8 = sbr.rel target = $region3
  $region8: #{aspp_forward.3} parent=0 // loop_exit
    _

// kernel: aspp_forward.2
$region0: #{aspp_forward.2}
  #allocation0 [shape = 'u32[]', space=smem, size = 0x4, offset = 0x4, fixed_abs, tag = 'smem constant byte address 0x4 - core index']
  #allocation1 [shape = 'u32[144,128]{1,0:T(1,128)}', space=vmem, size = 0x12000, scoped, tag = 'internal scratch']
  %s0 = inlined_call_operand.vmem [shape: f32[2,20,20,4], index: 0, kind: input, shape index: {}]
  %s1 = inlined_call_operand.vmem [shape: f32[36,128], index: 1, kind: input, shape index: {}]
  %s2 = inlined_call_operand.vmem [shape: f32[2,16,16,128], index: 2, kind: output, shape index: {0}]
  %s3 = inlined_call_operand.vmem [shape: f32[2,1,2,128], index: 3, kind: output, shape index: {1}]
  %4 = xla_tuple %s2, %s3
  %s5 = sld [smem:[#allocation0]]
  $region49: #{aspp_forward.2} parent=0
    _
  %s7 = ssub.s32 1, %s5
  %s8 = scalar_select 0, %s7, %s5
  loop: start=0, step=1, limit=4
  $region2: #{aspp_forward.2} parent=0 // loop_pre_header
    _
  $region3: #{aspp_forward.2} parent=0 // loop_header
    %s10 = sphi 0, %s14
    %p11 = scmp.ge.s32.totalorder %s10, 4
    %s17 = sphi 0, %s29
    %s18 = sphi 0, %s25
    %s19 = sphi 0, %s17
    %s20 = sphi 0, %s18
    %s21 = sphi 0, %s19
    %s22 = sphi 0, %s20
    %s32 = sphi 0, %s34
    %s35 = sphi 0, %s32
    %s36 = sphi 0, %s35
    %s52 = sphi 0, %s36
    %s56 = sphi 0, %s56
    %s58 = sphi 0, %s56
    %s59 = sphi 0, %s58
    %s73 = sphi 0, %s59
    %s81 = sphi 0, %s83
    %s84 = sphi 0, %s81
    %s85 = sphi 0, %s84
    %s101 = sphi 0, %s85
    %s109 = sphi 0, %s111
    %s112 = sphi 0, %s109
    %s113 = sphi 0, %s112
    %s129 = sphi 0, %s113
  $region4: #{aspp_forward.2} parent=0 // loop_header_branch
    %13 = sbr.rel (%p11) target = $region8
  $region5: #{aspp_forward.2} parent=0 // loop_body
    %s15 = ssub.s32 %s10, 1
    %s16 = ssub.s32 %s10, 2
    %s23 = sadd.s32 1, %s18
    %p24 = scmp.ge.s32.totalorder %s23, 1
    %s25 = scalar_select %p24, 0, %s23
    %s26 = sadd.s32 1, %s17
    %s27 = scalar_select %p24, %s26, %s17
    %p28 = scmp.ge.s32.totalorder %s27, 2
    %s29 = scalar_select %p28, 0, %s27
    %s30 = ssub.s32 %s17, %s29
    %p31 = scmp.eq.s32.totalorder %s30, 0
    %s33 = sadd.s32 %s32, 1
    %s34 = scalar_select %p31, %s32, %s33
    %p37 = pneg %p31
    %p38 = scmp.eq.s32.totalorder %s10, 1
    %p39 = por %p37, %p38
    %p40 = scmp.ne.s32.totalorder %s32, %s35
    %p41 = scmp.eq.s32.totalorder %s10, 0
    %p42 = por %p40, %p41
    %p43 = scmp.ne.s32.totalorder %s32, %s35
    %p44 = scmp.eq.s32.totalorder %s15, 1
    %p45 = por %p43, %p44
    %p46 = scmp.ne.s32.totalorder %s35, %s36
    %p47 = scmp.eq.s32.totalorder %s15, 0
    %p48 = por %p46, %p47
    %p49 = scmp.ne.s32.totalorder %s35, %s36
    %p50 = scmp.eq.s32.totalorder %s16, 1
    %p51 = por %p49, %p50
    %p53 = scmp.ne.s32.totalorder %s36, %s52
    %p54 = scmp.eq.s32.totalorder %s16, 0
    %p55 = por %p53, %p54
    %s57 = sadd.s32 %s56, 1
    %p60 = scmp.eq.s32.totalorder %s10, 1
    %p61 = scmp.ne.s32.totalorder %s56, %s58
    %p62 = scmp.eq.s32.totalorder %s10, 0
    %p63 = por %p61, %p62
    %p64 = scmp.ne.s32.totalorder %s56, %s58
    %p65 = scmp.eq.s32.totalorder %s15, 1
    %p66 = por %p64, %p65
    %p67 = scmp.ne.s32.totalorder %s58, %s59
    %p68 = scmp.eq.s32.totalorder %s15, 0
    %p69 = por %p67, %p68
    %p70 = scmp.ne.s32.totalorder %s58, %s59
    %p71 = scmp.eq.s32.totalorder %s16, 1
    %p72 = por %p70, %p71
    %p74 = scmp.ne.s32.totalorder %s59, %s73
    %p75 = scmp.eq.s32.totalorder %s16, 0
    %p76 = por %p74, %p75
    %s77 = ssub.s32 %s17, %s29
    %s78 = ssub.s32 %s18, %s25
    %s79 = sor.u32 %s77, %s78
    %p80 = scmp.eq.s32.totalorder %s79, 0
    %s82 = sadd.s32 %s81, 1
    %s83 = scalar_select %p80, %s81, %s82
    %p86 = pneg %p80
    %p87 = scmp.eq.s32.totalorder %s10, 1
    %p88 = por %p86, %p87
    %p89 = scmp.ne.s32.totalorder %s81, %s84
    %p90 = scmp.eq.s32.totalorder %s10, 0
    %p91 = por %p89, %p90
    %p92 = scmp.ne.s32.totalorder %s81, %s84
    %p93 = scmp.eq.s32.totalorder %s15, 1
    %p94 = por %p92, %p93
    %p95 = scmp.ne.s32.totalorder %s84, %s85
    %p96 = scmp.eq.s32.totalorder %s15, 0
    %p97 = por %p95, %p96
    %p98 = scmp.ne.s32.totalorder %s84, %s85
    %p99 = scmp.eq.s32.totalorder %s16, 1
    %p100 = por %p98, %p99
    %p102 = scmp.ne.s32.totalorder %s85, %s101
    %p103 = scmp.eq.s32.totalorder %s16, 0
    %p104 = por %p102, %p103
    %s105 = ssub.s32 %s17, %s29
    %s106 = ssub.s32 %s18, %s25
    %s107 = sor.u32 %s105, %s106
    %p108 = scmp.eq.s32.totalorder %s107, 0
    %s110 = sadd.s32 %s109, 1
    %s111 = scalar_select %p108, %s109, %s110
    %p114 = pneg %p108
    %p115 = scmp.eq.s32.totalorder %s10, 1
    %p116 = por %p114, %p115
    %p117 = scmp.ne.s32.totalorder %s109, %s112
    %p118 = scmp.eq.s32.totalorder %s10, 0
    %p119 = por %p117, %p118
    %p120 = scmp.ne.s32.totalorder %s109, %s112
    %p121 = scmp.eq.s32.totalorder %s15, 1
    %p122 = por %p120, %p121
    %p123 = scmp.ne.s32.totalorder %s112, %s113
    %p124 = scmp.eq.s32.totalorder %s15, 0
    %p125 = por %p123, %p124
    %p126 = scmp.ne.s32.totalorder %s112, %s113
    %p127 = scmp.eq.s32.totalorder %s16, 1
    %p128 = por %p126, %p127
    %p130 = scmp.ne.s32.totalorder %s113, %s129
    %p131 = scmp.eq.s32.totalorder %s16, 0
    %p132 = por %p130, %p131
    %p133 = scmp.le.s32.totalorder 1, %s10
    %p134 = scmp.lt.s32.totalorder %s10, 3
    %p135 = pnand %p133, %p134
    %p136 = pneg %p135
    // Predicated region
    $region9: #{aspp_forward.2} parent=5 // pred_check
      _
    $region10: #{aspp_forward.2} parent=5 // pred_check_branch
      %138 = sbr.rel (%p135) target = $region12
    $region11: #{aspp_forward.2} parent=5 // pred_region
      %s139 = ssub.s32 %s10, 1
      // Predicated region
      $region13: #{aspp_forward.2} parent=11 // pred_check
        %p140 = pneg %p69
      $region14: #{aspp_forward.2} parent=11 // pred_check_branch
        %142 = sbr.rel (%p140) target = $region16
      $region15: #{aspp_forward.2} parent=11 // pred_region
        _
      $region16: #{aspp_forward.2} parent=11 // pred_fallthru
        _
    $region12: #{aspp_forward.2} parent=5 // pred_fallthru
      _
    %p143 = scmp.lt.s32.totalorder %s10, 2
    // Predicated region
    $region17: #{aspp_forward.2} parent=5 // pred_check
      %p144 = pneg %p143
    $region18: #{aspp_forward.2} parent=5 // pred_check_branch
      %146 = sbr.rel (%p144) target = $region20
    $region19: #{aspp_forward.2} parent=5 // pred_region
      // Predicated region
      $region21: #{aspp_forward.2} parent=19 // pred_check
        %p147 = pneg %p42
      $region22: #{aspp_forward.2} parent=19 // pred_check_branch
        %149 = sbr.rel (%p147) target = $region24
      $region23: #{aspp_forward.2} parent=19 // pred_region
        %p150 = scmp.lt.s32.totalorder %s17, 1
        %s151 = scalar_select %p150, %s17, 1
        %s152 = smul.addr %s151, 60
        %s153 = smul.addr %s152, 8
        %s154 = scalar_lea.vmem %s0, %s153
      $region24: #{aspp_forward.2} parent=19 // pred_fallthru
        _
    $region20: #{aspp_forward.2} parent=5 // pred_fallthru
      _
    %p155 = scmp.le.s32.totalorder 1, %s10
    %p156 = scmp.lt.s32.totalorder %s10, 3
    %p157 = pnand %p155, %p156
    %p158 = pneg %p157
    // Predicated region
    $region25: #{aspp_forward.2} parent=5 // pred_check
      _
    $region26: #{aspp_forward.2} parent=5 // pred_check_branch
      %160 = sbr.rel (%p157) target = $region28
    $region27: #{aspp_forward.2} parent=5 // pred_region
      %s161 = ssub.s32 %s10, 1
      %p162 = scmp.lt.s32.totalorder %s19, 1
      %s163 = scalar_select %p162, %s19, 1
      %s164 = smul.addr %s163, 60
      %s165 = smul.addr %s164, 8
      %s166 = scalar_lea.vmem %s0, %s165
      %p167 = pneg %p48
      %p168 = pneg %p45
      %p169 = pneg %p69
      %p170 = pneg %p66
      %p171 = pneg %p97
      %p172 = pneg %p94
      %s173 = smul.u32 16, %s20
      %p174 = scmp.lt.s32.totalorder %s19, 1
      %s175 = scalar_select %p174, %s19, 1
      %p176 = scmp.lt.s32.totalorder %s173, 15
      %s177 = scalar_select %p176, %s173, 15
      %s178 = smul.addr %s177, 2
      %s179 = smul.addr %s175, 32
      %s180 = sadd.s32 %s178, %s179
      %s181 = smul.addr %s180, 8
      %s182 = scalar_lea.vmem %s2, %s181
      %p183 = pneg %p125
      %p184 = pneg %p122
      %p185 = scmp.lt.s32.totalorder %s19, 1
      %s186 = scalar_select %p185, %s19, 1
      %p187 = scmp.lt.s32.totalorder %s20, 0
      %s188 = scalar_select %p187, %s20, 0
      %s189 = sadd.s32 %s188, %s186
      %s190 = smul.addr %s189, 2
      %s191 = scalar_lea.vmem %s3, %s190
      %p192 = scmp.lt.s32.totalorder %s19, 1
      %s193 = scalar_select %p192, %s19, 1
      %s194 = smul.addr %s193, 60
      %s195 = smul.addr %s194, 8
      %s196 = scalar_lea.vmem %s0, %s195
      %s197 = smul.u32 16, %s20
      %p198 = scmp.lt.s32.totalorder %s19, 1
      %s199 = scalar_select %p198, %s19, 1
      %p200 = scmp.lt.s32.totalorder %s197, 15
      %s201 = scalar_select %p200, %s197, 15
      %s202 = smul.addr %s201, 2
      %s203 = smul.addr %s199, 32
      %s204 = sadd.s32 %s202, %s203
      %s205 = smul.addr %s204, 8
      %s206 = scalar_lea.vmem %s2, %s205
      %s207 = smul.u32 16, %s20
      %p208 = scmp.lt.s32.totalorder %s19, 1
      %s209 = scalar_select %p208, %s19, 1
      %p210 = scmp.lt.s32.totalorder %s20, 0
      %s211 = scalar_select %p210, %s20, 0
      %s212 = sadd.s32 %s211, %s209
      %s213 = smul.addr %s212, 2
      %s214 = scalar_lea.vmem %s3, %s213
      %s215 = smul.u32 %s20, 16
      %s216 = smul.u32 %s215, 24
      %s217 = scalar_lea.vmem %s196, %s216
      %v218 = vld [vmem:[%s217] sm:$0xff]
      %v219 = vld [vmem:[%s217 + $0x8] sm:$0xff]
      %v220 = vld [vmem:[%s217 + $0x10] sm:$0xf]
      %v221 = vld [vmem:[%s217 + $0x18] sm:$0xff]
      %v222 = vld [vmem:[%s217 + $0x20] sm:$0xff]
      %v223 = vld [vmem:[%s217 + $0x28] sm:$0xf]
      %v224 = vld [vmem:[%s217 + $0x30] sm:$0xff]
      %v225 = vld [vmem:[%s217 + $0x38] sm:$0xff]
      %v226 = vld [vmem:[%s217 + $0x40] sm:$0xf]
      %v227 = vld [vmem:[%s217 + $0x48] sm:$0xff]
      %v228 = vld [vmem:[%s217 + $0x50] sm:$0xff]
      %v229 = vld [vmem:[%s217 + $0x58] sm:$0xf]
      %v230 = vld [vmem:[%s217 + $0x60] sm:$0xff]
      %v231 = vld [vmem:[%s217 + $0x68] sm:$0xff]
      %v232 = vld [vmem:[%s217 + $0x70] sm:$0xf]
      %v233 = vld [vmem:[%s217 + $0x78] sm:$0xff]
      %v234 = vld [vmem:[%s217 + $0x80] sm:$0xff]
      %v235 = vld [vmem:[%s217 + $0x88] sm:$0xf]
      %v236 = vld [vmem:[%s217 + $0x90] sm:$0xff]
      %v237 = vld [vmem:[%s217 + $0x98] sm:$0xff]
      %v238 = vld [vmem:[%s217 + $0xa0] sm:$0xf]
      %v239 = vld [vmem:[%s217 + $0xa8] sm:$0xff]
      %v240 = vld [vmem:[%s217 + $0xb0] sm:$0xff]
      %v241 = vld [vmem:[%s217 + $0xb8] sm:$0xf]
      %v242 = vld [vmem:[%s217 + $0xc0] sm:$0xff]
      %v243 = vld [vmem:[%s217 + $0xc8] sm:$0xff]
      %v244 = vld [vmem:[%s217 + $0xd0] sm:$0xf]
      %v245 = vld [vmem:[%s217 + $0xd8] sm:$0xff]
      %v246 = vld [vmem:[%s217 + $0xe0] sm:$0xff]
      %v247 = vld [vmem:[%s217 + $0xe8] sm:$0xf]
      %v248 = vld [vmem:[%s217 + $0xf0] sm:$0xff]
      %v249 = vld [vmem:[%s217 + $0xf8] sm:$0xff]
      %v250 = vld [vmem:[%s217 + $0x100] sm:$0xf]
      %v251 = vld [vmem:[%s217 + $0x108] sm:$0xff]
      %v252 = vld [vmem:[%s217 + $0x110] sm:$0xff]
      %v253 = vld [vmem:[%s217 + $0x118] sm:$0xf]
      %v254 = vld [vmem:[%s217 + $0x120] sm:$0xff]
      %v255 = vld [vmem:[%s217 + $0x128] sm:$0xff]
      %v256 = vld [vmem:[%s217 + $0x130] sm:$0xf]
      %v257 = vld [vmem:[%s217 + $0x138] sm:$0xff]
      %v258 = vld [vmem:[%s217 + $0x140] sm:$0xff]
      %v259 = vld [vmem:[%s217 + $0x148] sm:$0xf]
      %v260 = vld [vmem:[%s217 + $0x150] sm:$0xff]
      %v261 = vld [vmem:[%s217 + $0x158] sm:$0xff]
      %v262 = vld [vmem:[%s217 + $0x160] sm:$0xf]
      %v263 = vld [vmem:[%s217 + $0x168] sm:$0xff]
      %v264 = vld [vmem:[%s217 + $0x170] sm:$0xff]
      %v265 = vld [vmem:[%s217 + $0x178] sm:$0xf]
      %v266 = vld [vmem:[%s1] sm:$0xf]
      %vm315 = vcmask 1045504
      %v316 = vrot.slane %v218, 2
      %v317 = vrot.slane %v219, 2
      %v318 = vsel %vm315, %v316, %v317
      %v319 = vrot.slane %v220, 2
      %v320 = vsel %vm315, %v317, %v319
      %v321 = vrot.slane %v221, 2
      %v322 = vrot.slane %v222, 2
      %v323 = vsel %vm315, %v321, %v322
      %v324 = vrot.slane %v223, 2
      %v325 = vsel %vm315, %v322, %v324
      %v326 = vrot.slane %v224, 2
      %v327 = vrot.slane %v225, 2
      %v328 = vsel %vm315, %v326, %v327
      %v329 = vrot.slane %v226, 2
      %v330 = vsel %vm315, %v327, %v329
      %v331 = vrot.slane %v227, 2
      %v332 = vrot.slane %v228, 2
      %v333 = vsel %vm315, %v331, %v332
      %v334 = vrot.slane %v229, 2
      %v335 = vsel %vm315, %v332, %v334
      %v336 = vrot.slane %v230, 2
      %v337 = vrot.slane %v231, 2
      %v338 = vsel %vm315, %v336, %v337
      %v339 = vrot.slane %v232, 2
      %v340 = vsel %vm315, %v337, %v339
      %v341 = vrot.slane %v233, 2
      %v342 = vrot.slane %v234, 2
      %v343 = vsel %vm315, %v341, %v342
      %v344 = vrot.slane %v235, 2
      %v345 = vsel %vm315, %v342, %v344
      %v346 = vrot.slane %v236, 2
      %v347 = vrot.slane %v237, 2
      %v348 = vsel %vm315, %v346, %v347
      %v349 = vrot.slane %v238, 2
      %v350 = vsel %vm315, %v347, %v349
      %v351 = vrot.slane %v239, 2
      %v352 = vrot.slane %v240, 2
      %v353 = vsel %vm315, %v351, %v352
      %v354 = vrot.slane %v241, 2
      %v355 = vsel %vm315, %v352, %v354
      %v356 = vrot.slane %v242, 2
      %v357 = vrot.slane %v243, 2
      %v358 = vsel %vm315, %v356, %v357
      %v359 = vrot.slane %v244, 2
      %v360 = vsel %vm315, %v357, %v359
      %v361 = vrot.slane %v245, 2
      %v362 = vrot.slane %v246, 2
      %v363 = vsel %vm315, %v361, %v362
      %v364 = vrot.slane %v247, 2
      %v365 = vsel %vm315, %v362, %v364
      %v366 = vrot.slane %v248, 2
      %v367 = vrot.slane %v249, 2
      %v368 = vsel %vm315, %v366, %v367
      %v369 = vrot.slane %v250, 2
      %v370 = vsel %vm315, %v367, %v369
      %v371 = vrot.slane %v251, 2
      %v372 = vrot.slane %v252, 2
      %v373 = vsel %vm315, %v371, %v372
      %v374 = vrot.slane %v253, 2
      %v375 = vsel %vm315, %v372, %v374
      %v376 = vrot.slane %v254, 2
      %v377 = vrot.slane %v255, 2
      %v378 = vsel %vm315, %v376, %v377
      %v379 = vrot.slane %v256, 2
      %v380 = vsel %vm315, %v377, %v379
      %v381 = vrot.slane %v257, 2
      %v382 = vrot.slane %v258, 2
      %v383 = vsel %vm315, %v381, %v382
      %v384 = vrot.slane %v259, 2
      %v385 = vsel %vm315, %v382, %v384
      %v386 = vrot.slane %v260, 2
      %v387 = vrot.slane %v261, 2
      %v388 = vsel %vm315, %v386, %v387
      %v389 = vrot.slane %v262, 2
      %v390 = vsel %vm315, %v387, %v389
      %v391 = vrot.slane %v263, 2
      %v392 = vrot.slane %v264, 2
      %v393 = vsel %vm315, %v391, %v392
      %v394 = vrot.slane %v265, 2
      %v395 = vsel %vm315, %v392, %v394
      %v396 = vld [vmem:[%s1 + $0x4] sm:$0xf]
      %vm397 = vcmask 31744
      %v398 = vsel %vm397, %v318, 0
      %v400 = vsel %vm397, %v320, 0
      %v402 = vsel %vm397, %v323, 0
      %v404 = vsel %vm397, %v325, 0
      %v406 = vsel %vm397, %v328, 0
      %v408 = vsel %vm397, %v330, 0
      %v410 = vsel %vm397, %v333, 0
      %v412 = vsel %vm397, %v335, 0
      %v414 = vsel %vm397, %v338, 0
      %v416 = vsel %vm397, %v340, 0
      %v418 = vsel %vm397, %v343, 0
      %v420 = vsel %vm397, %v345, 0
      %v422 = vsel %vm397, %v348, 0
      %v424 = vsel %vm397, %v350, 0
      %v426 = vsel %vm397, %v353, 0
      %v428 = vsel %vm397, %v355, 0
      %v430 = vsel %vm397, %v358, 0
      %v432 = vsel %vm397, %v360, 0
      %v434 = vsel %vm397, %v363, 0
      %v436 = vsel %vm397, %v365, 0
      %v438 = vsel %vm397, %v368, 0
      %v440 = vsel %vm397, %v370, 0
      %v442 = vsel %vm397, %v373, 0
      %v444 = vsel %vm397, %v375, 0
      %v446 = vsel %vm397, %v378, 0
      %v448 = vsel %vm397, %v380, 0
      %v450 = vsel %vm397, %v383, 0
      %v452 = vsel %vm397, %v385, 0
      %v454 = vsel %vm397, %v388, 0
      %v456 = vsel %vm397, %v390, 0
      %v458 = vsel %vm397, %v393, 0
      %v460 = vsel %vm397, %v395, 0
      %vm462 = vcmask 1043456
      %v464 = vsel %vm462, %v396, 0
      %466 = vmatprep.subr.mxu0 0.0
      %467 = vmatpush1.msra.mxu0 %v464
      %468 = vmatprep.subr.mxu0 0.0
      %469 = vmatpush1.msra.mxu0 0.0
      %470 = vmatprep.subr.mxu0 0.0
      %471 = vmatpush1.msra.mxu0 0.0
      %472 = vmatprep.subr.mxu0 0.0
      %473 = vmatpush1.msra.mxu0 0.0
      %474 = vmatprep.subr.mxu0 0.0
      %475 = vmatpush1.msra.mxu0 0.0
      %476 = vmatprep.subr.mxu0 0.0
      %477 = vmatpush1.msra.mxu0 0.0
      %478 = vmatprep.subr.mxu0 0.0
      %479 = vmatpush1.msra.mxu0 0.0
      %480 = vmatprep.subr.mxu0 0.0
      %481 = vmatpush1.msra.mxu0 0.0
      %482 = vmatprep.subr.mxu0 0.0
      %483 = vmatpush1.msra.mxu0 0.0
      %484 = vmatprep.subr.mxu0 0.0
      %485 = vmatpush1.msra.mxu0 0.0
      %486 = vmatprep.subr.mxu0 0.0
      %487 = vmatpush1.msra.mxu0 0.0
      %488 = vmatprep.subr.mxu0 0.0
      %489 = vmatpush1.msra.mxu0 0.0
      %490 = vmatprep.subr.mxu0 0.0
      %491 = vmatpush1.msra.mxu0 0.0
      %492 = vmatprep.subr.mxu0 0.0
      %493 = vmatpush1.msra.mxu0 0.0
      %494 = vmatprep.subr.mxu0 0.0
      %495 = vmatpush1.msra.mxu0 0.0
      %496 = vmatprep.subr.mxu0 0.0
      %497 = vmatpush1.msra.mxu0 0.0
      %498 = vmatprep.subr.mxu0 0.0
      %499 = vmatpush1.msra.mxu0 0.0
      %500 = vmatprep.subr.mxu0 0.0
      %501 = vmatpush1.msra.mxu0 0.0
      %502 = vmatprep.subr.mxu0 0.0
      %503 = vmatpush1.msra.mxu0 0.0
      %504 = vmatprep.subr.mxu0 0.0
      %505 = vmatpush1.msra.mxu0 0.0
      %506 = vmatprep.subr.mxu0 0.0
      %507 = vmatpush1.msra.mxu0 0.0
      %508 = vmatprep.subr.mxu0 0.0
      %509 = vmatpush1.msra.mxu0 0.0
      %510 = vmatprep.subr.mxu0 0.0
      %511 = vmatpush1.msra.mxu0 0.0
      %512 = vmatprep.subr.mxu0 0.0
      %513 = vmatpush1.msra.mxu0 0.0
      %514 = vmatprep.subr.mxu0 0.0
      %515 = vmatpush1.msra.mxu0 0.0
      %516 = vmatprep.subr.mxu0 0.0
      %517 = vmatpush1.msra.mxu0 0.0
      %518 = vmatprep.subr.mxu0 0.0
      %519 = vmatpush1.msra.mxu0 0.0
      %520 = vmatprep.subr.mxu0 0.0
      %521 = vmatpush1.msra.mxu0 0.0
      %522 = vmatprep.subr.mxu0 0.0
      %523 = vmatpush1.msra.mxu0 0.0
      %524 = vmatprep.subr.mxu0 0.0
      %525 = vmatpush1.msra.mxu0 0.0
      %526 = vmatprep.subr.mxu0 0.0
      %527 = vmatpush1.msra.mxu0 0.0
      %528 = vmatprep.subr.mxu0 0.0
      %529 = vmatpush1.msra.mxu0 0.0
      %530 = vmatprep.mubr.f32.mxu0 0.0
      %531 = vmatmul.mubr.f32.gmra.mrb[0].mxu0 %v398
      %v532 = vpop.f32.mrb[0].mxu0
      %v533 = vadd.f32 0.0, %v532
      %v534 = vpop.f32.mrb[0].mxu0
      %535 = vmatprep.mubr.f32.mxu0 0.0
      %536 = vmatmul.mubr.f32.gmra.mrb[0].mxu0 %v400
      %v537 = vpop.f32.mrb[0].mxu0
      %v538 = vadd.f32 0.0, %v537
      %v539 = vpop.f32.mrb[0].mxu0
      %540 = vmatprep.mubr.f32.mxu0 0.0
      %541 = vmatmul.mubr.f32.gmra.mrb[0].mxu0 %v402
      %v542 = vpop.f32.mrb[0].mxu0
      %v543 = vadd.f32 0.0, %v542
      %v544 = vpop.f32.mrb[0].mxu0
      %545 = vmatprep.mubr.f32.mxu0 0.0
      %546 = vmatmul.mubr.f32.gmra.mrb[0].mxu0 %v404
      %v547 = vpop.f32.mrb[0].mxu0
      %v548 = vadd.f32 0.0, %v547
      %v549 = vpop.f32.mrb[0].mxu0
      %550 = vmatprep.mubr.f32.mxu0 0.0
      %551 = vmatmul.mubr.f32.gmra.mrb[0].mxu0 %v406
      %v552 = vpop.f32.mrb[0].mxu0
      %v553 = vadd.f32 0.0, %v552
      %v554 = vpop.f32.mrb[0].mxu0
      %555 = vmatprep.mubr.f32.mxu0 0.0
      %556 = vmatmul.mubr.f32.gmra.mrb[0].mxu0 %v408
      %v557 = vpop.f32.mrb[0].mxu0
      %v558 = vadd.f32 0.0, %v557
      %v559 = vpop.f32.mrb[0].mxu0
      %560 = vmatprep.mubr.f32.mxu0 0.0
      %561 = vmatmul.mubr.f32.gmra.mrb[0].mxu0 %v410
      %v562 = vpop.f32.mrb[0].mxu0
      %v563 = vadd.f32 0.0, %v562
      %v564 = vpop.f32.mrb[0].mxu0
      %565 = vmatprep.mubr.f32.mxu0 0.0
      %566 = vmatmul.mubr.f32.gmra.mrb[0].mxu0 %v412
      %v567 = vpop.f32.mrb[0].mxu0
      %v568 = vadd.f32 0.0, %v567
      %v569 = vpop.f32.mrb[0].mxu0
      %570 = vmatprep.mubr.f32.mxu0 0.0
      %571 = vmatmul.mubr.f32.gmra.mrb[0].mxu0 %v414
      %v572 = vpop.f32.mrb[0].mxu0
      %v573 = vadd.f32 0.0, %v572
      %v574 = vpop.f32.mrb[0].mxu0
      %575 = vmatprep.mubr.f32.mxu0 0.0
      %576 = vmatmul.mubr.f32.gmra.mrb[0].mxu0 %v416
      %v577 = vpop.f32.mrb[0].mxu0
      %v578 = vadd.f32 0.0, %v577
      %v579 = vpop.f32.mrb[0].mxu0
      %580 = vmatprep.mubr.f32.mxu0 0.0
      %581 = vmatmul.mubr.f32.gmra.mrb[0].mxu0 %v418
      %v582 = vpop.f32.mrb[0].mxu0
      %v583 = vadd.f32 0.0, %v582
      %v584 = vpop.f32.mrb[0].mxu0
      %585 = vmatprep.mubr.f32.mxu0 0.0
      %586 = vmatmul.mubr.f32.gmra.mrb[0].mxu0 %v420
      %v587 = vpop.f32.mrb[0].mxu0
      %v588 = vadd.f32 0.0, %v587
      %v589 = vpop.f32.mrb[0].mxu0
      %590 = vmatprep.mubr.f32.mxu0 0.0
      %591 = vmatmul.mubr.f32.gmra.mrb[0].mxu0 %v422
      %v592 = vpop.f32.mrb[0].mxu0
      %v593 = vadd.f32 0.0, %v592
      %v594 = vpop.f32.mrb[0].mxu0
      %595 = vmatprep.mubr.f32.mxu0 0.0
      %596 = vmatmul.mubr.f32.gmra.mrb[0].mxu0 %v424
      %v597 = vpop.f32.mrb[0].mxu0
      %v598 = vadd.f32 0.0, %v597
      %v599 = vpop.f32.mrb[0].mxu0
      %600 = vmatprep.mubr.f32.mxu0 0.0
      %601 = vmatmul.mubr.f32.gmra.mrb[0].mxu0 %v426
      %v602 = vpop.f32.mrb[0].mxu0
      %v603 = vadd.f32 0.0, %v602
      %v604 = vpop.f32.mrb[0].mxu0
      %605 = vmatprep.mubr.f32.mxu0 0.0
      %606 = vmatmul.mubr.f32.gmra.mrb[0].mxu0 %v428
      %v607 = vpop.f32.mrb[0].mxu0
      %v608 = vadd.f32 0.0, %v607
      %v609 = vpop.f32.mrb[0].mxu0
      %610 = vmatprep.mubr.f32.mxu0 0.0
      %611 = vmatmul.mubr.f32.gmra.mrb[0].mxu0 %v430
      %v612 = vpop.f32.mrb[0].mxu0
      %v613 = vadd.f32 0.0, %v612
      %v614 = vpop.f32.mrb[0].mxu0
      %615 = vmatprep.mubr.f32.mxu0 0.0
      %616 = vmatmul.mubr.f32.gmra.mrb[0].mxu0 %v432
      %v617 = vpop.f32.mrb[0].mxu0
      %v618 = vadd.f32 0.0, %v617
      %v619 = vpop.f32.mrb[0].mxu0
      %620 = vmatprep.mubr.f32.mxu0 0.0
      %621 = vmatmul.mubr.f32.gmra.mrb[0].mxu0 %v434
      %v622 = vpop.f32.mrb[0].mxu0
      %v623 = vadd.f32 0.0, %v622
      %v624 = vpop.f32.mrb[0].mxu0
      %625 = vmatprep.mubr.f32.mxu0 0.0
      %626 = vmatmul.mubr.f32.gmra.mrb[0].mxu0 %v436
      %v627 = vpop.f32.mrb[0].mxu0
      %v628 = vadd.f32 0.0, %v627
      %v629 = vpop.f32.mrb[0].mxu0
      %630 = vmatprep.mubr.f32.mxu0 0.0
      %631 = vmatmul.mubr.f32.gmra.mrb[0].mxu0 %v438
      %v632 = vpop.f32.mrb[0].mxu0
      %v633 = vadd.f32 0.0, %v632
      %v634 = vpop.f32.mrb[0].mxu0
      %635 = vmatprep.mubr.f32.mxu0 0.0
      %636 = vmatmul.mubr.f32.gmra.mrb[0].mxu0 %v440
      %v637 = vpop.f32.mrb[0].mxu0
      %v638 = vadd.f32 0.0, %v637
      %v639 = vpop.f32.mrb[0].mxu0
      %640 = vmatprep.mubr.f32.mxu0 0.0
      %641 = vmatmul.mubr.f32.gmra.mrb[0].mxu0 %v442
      %v642 = vpop.f32.mrb[0].mxu0
      %v643 = vadd.f32 0.0, %v642
      %v644 = vpop.f32.mrb[0].mxu0
      %645 = vmatprep.mubr.f32.mxu0 0.0
      %646 = vmatmul.mubr.f32.gmra.mrb[0].mxu0 %v444
      %v647 = vpop.f32.mrb[0].mxu0
      %v648 = vadd.f32 0.0, %v647
      %v649 = vpop.f32.mrb[0].mxu0
      %650 = vmatprep.mubr.f32.mxu0 0.0
      %651 = vmatmul.mubr.f32.gmra.mrb[0].mxu0 %v446
      %v652 = vpop.f32.mrb[0].mxu0
      %v653 = vadd.f32 0.0, %v652
      %v654 = vpop.f32.mrb[0].mxu0
      %655 = vmatprep.mubr.f32.mxu0 0.0
      %656 = vmatmul.mubr.f32.gmra.mrb[0].mxu0 %v448
      %v657 = vpop.f32.mrb[0].mxu0
      %v658 = vadd.f32 0.0, %v657
      %v659 = vpop.f32.mrb[0].mxu0
      %660 = vmatprep.mubr.f32.mxu0 0.0
      %661 = vmatmul.mubr.f32.gmra.mrb[0].mxu0 %v450
      %v662 = vpop.f32.mrb[0].mxu0
      %v663 = vadd.f32 0.0, %v662
      %v664 = vpop.f32.mrb[0].mxu0
      %665 = vmatprep.mubr.f32.mxu0 0.0
      %666 = vmatmul.mubr.f32.gmra.mrb[0].mxu0 %v452
      %v667 = vpop.f32.mrb[0].mxu0
      %v668 = vadd.f32 0.0, %v667
      %v669 = vpop.f32.mrb[0].mxu0
      %670 = vmatprep.mubr.f32.mxu0 0.0
      %671 = vmatmul.mubr.f32.gmra.mrb[0].mxu0 %v454
      %v672 = vpop.f32.mrb[0].mxu0
      %v673 = vadd.f32 0.0, %v672
      %v674 = vpop.f32.mrb[0].mxu0
      %675 = vmatprep.mubr.f32.mxu0 0.0
      %676 = vmatmul.mubr.f32.gmra.mrb[0].mxu0 %v456
      %v677 = vpop.f32.mrb[0].mxu0
      %v678 = vadd.f32 0.0, %v677
      %v679 = vpop.f32.mrb[0].mxu0
      %680 = vmatprep.mubr.f32.mxu0 0.0
      %681 = vmatmul.mubr.f32.gmra.mrb[0].mxu0 %v458
      %v682 = vpop.f32.mrb[0].mxu0
      %v683 = vadd.f32 0.0, %v682
      %v684 = vpop.f32.mrb[0].mxu0
      %685 = vmatprep.mubr.f32.mxu0 0.0
      %686 = vmatmul.mubr.f32.gmra.mrb[0].mxu0 %v460
      %v687 = vpop.f32.mrb[0].mxu0
      %v688 = vadd.f32 0.0, %v687
      %v689 = vpop.f32.mrb[0].mxu0
      %690 = vdwg.mxu0
      %v691 = vsel %vm397, %v218, 0
      %v693 = vsel %vm397, %v219, 0
      %v695 = vsel %vm397, %v221, 0
      %v697 = vsel %vm397, %v222, 0
      %v699 = vsel %vm397, %v224, 0
      %v701 = vsel %vm397, %v225, 0
      %v703 = vsel %vm397, %v227, 0
      %v705 = vsel %vm397, %v228, 0
      %v707 = vsel %vm397, %v230, 0
      %v709 = vsel %vm397, %v231, 0
      %v711 = vsel %vm397, %v233, 0
      %v713 = vsel %vm397, %v234, 0
      %v715 = vsel %vm397, %v236, 0
      %v717 = vsel %vm397, %v237, 0
      %v719 = vsel %vm397, %v239, 0
      %v721 = vsel %vm397, %v240, 0
      %v723 = vsel %vm397, %v242, 0
      %v725 = vsel %vm397, %v243, 0
      %v727 = vsel %vm397, %v245, 0
      %v729 = vsel %vm397, %v246, 0
      %v731 = vsel %vm397, %v248, 0
      %v733 = vsel %vm397, %v249, 0
      %v735 = vsel %vm397, %v251, 0
      %v737 = vsel %vm397, %v252, 0
      %v739 = vsel %vm397, %v254, 0
      %v741 = vsel %vm397, %v255, 0
      %v743 = vsel %vm397, %v257, 0
      %v745 = vsel %vm397, %v258, 0
      %v747 = vsel %vm397, %v260, 0
      %v749 = vsel %vm397, %v261, 0
      %v751 = vsel %vm397, %v263, 0
      %v753 = vsel %vm397, %v264, 0
      %v756 = vsel %vm462, %v266, 0
      %758 = vmatprep.subr.mxu0 0.0
      %759 = vmatpush1.msra.mxu0 %v756
      %760 = vmatprep.subr.mxu0 0.0
      %761 = vmatpush1.msra.mxu0 0.0
      %762 = vmatprep.subr.mxu0 0.0
      %763 = vmatpush1.msra.mxu0 0.0
      %764 = vmatprep.subr.mxu0 0.0
      %765 = vmatpush1.msra.mxu0 0.0
      %766 = vmatprep.subr.mxu0 0.0
      %767 = vmatpush1.msra.mxu0 0.0
      %768 = vmatprep.subr.mxu0 0.0
      %769 = vmatpush1.msra.mxu0 0.0
      %770 = vmatprep.subr.mxu0 0.0
      %771 = vmatpush1.msra.mxu0 0.0
      %772 = vmatprep.subr.mxu0 0.0
      %773 = vmatpush1.msra.mxu0 0.0
      %774 = vmatprep.subr.mxu0 0.0
      %775 = vmatpush1.msra.mxu0 0.0
      %776 = vmatprep.subr.mxu0 0.0
      %777 = vmatpush1.msra.mxu0 0.0
      %778 = vmatprep.subr.mxu0 0.0
      %779 = vmatpush1.msra.mxu0 0.0
      %780 = vmatprep.subr.mxu0 0.0
      %781 = vmatpush1.msra.mxu0 0.0
      %782 = vmatprep.subr.mxu0 0.0
      %783 = vmatpush1.msra.mxu0 0.0
      %784 = vmatprep.subr.mxu0 0.0
      %785 = vmatpush1.msra.mxu0 0.0
      %786 = vmatprep.subr.mxu0 0.0
      %787 = vmatpush1.msra.mxu0 0.0
      %788 = vmatprep.subr.mxu0 0.0
      %789 = vmatpush1.msra.mxu0 0.0
      %790 = vmatprep.subr.mxu0 0.0
      %791 = vmatpush1.msra.mxu0 0.0
      %792 = vmatprep.subr.mxu0 0.0
      %793 = vmatpush1.msra.mxu0 0.0
      %794 = vmatprep.subr.mxu0 0.0
      %795 = vmatpush1.msra.mxu0 0.0
      %796 = vmatprep.subr.mxu0 0.0
      %797 = vmatpush1.msra.mxu0 0.0
      %798 = vmatprep.subr.mxu0 0.0
      %799 = vmatpush1.msra.mxu0 0.0
      %800 = vmatprep.subr.mxu0 0.0
      %801 = vmatpush1.msra.mxu0 0.0
      %802 = vmatprep.subr.mxu0 0.0
      %803 = vmatpush1.msra.mxu0 0.0
      %804 = vmatprep.subr.mxu0 0.0
      %805 = vmatpush1.msra.mxu0 0.0
      %806 = vmatprep.subr.mxu0 0.0
      %807 = vmatpush1.msra.mxu0 0.0
      %808 = vmatprep.subr.mxu0 0.0
      %809 = vmatpush1.msra.mxu0 0.0
      %810 = vmatprep.subr.mxu0 0.0
      %811 = vmatpush1.msra.mxu0 0.0
      %812 = vmatprep.subr.mxu0 0.0
      %813 = vmatpush1.msra.mxu0 0.0
      %814 = vmatprep.subr.mxu0 0.0
      %815 = vmatpush1.msra.mxu0 0.0
      %816 = vmatprep.subr.mxu0 0.0
      %817 = vmatpush1.msra.mxu0 0.0
      %818 = vmatprep.subr.mxu0 0.0
      %819 = vmatpush1.msra.mxu0 0.0
      %820 = vmatprep.subr.mxu0 0.0
      %821 = vmatpush1.msra.mxu0 0.0
      %822 = vmatprep.mubr.f32.mxu0 0.0
      %823 = vmatmul.mubr.f32.gmra.mrb[0].mxu0 %v691
      %v824 = vpop.f32.mrb[0].mxu0
      %v825 = vadd.f32 %v533, %v824
      %v826 = vpop.f32.mrb[0].mxu0
      %827 = vmatprep.mubr.f32.mxu0 0.0
      %828 = vmatmul.mubr.f32.gmra.mrb[0].mxu0 %v693
      %v829 = vpop.f32.mrb[0].mxu0
      %v830 = vadd.f32 %v538, %v829
      %v831 = vpop.f32.mrb[0].mxu0
      %832 = vmatprep.mubr.f32.mxu0 0.0
      %833 = vmatmul.mubr.f32.gmra.mrb[0].mxu0 %v695
      %v834 = vpop.f32.mrb[0].mxu0
      %v835 = vadd.f32 %v543, %v834
      %v836 = vpop.f32.mrb[0].mxu0
      %837 = vmatprep.mubr.f32.mxu0 0.0
      %838 = vmatmul.mubr.f32.gmra.mrb[0].mxu0 %v697
      %v839 = vpop.f32.mrb[0].mxu0
      %v840 = vadd.f32 %v548, %v839
      %v841 = vpop.f32.mrb[0].mxu0
      %842 = vmatprep.mubr.f32.mxu0 0.0
      %843 = vmatmul.mubr.f32.gmra.mrb[0].mxu0 %v699
      %v844 = vpop.f32.mrb[0].mxu0
      %v845 = vadd.f32 %v553, %v844
      %v846 = vpop.f32.mrb[0].mxu0
      %847 = vmatprep.mubr.f32.mxu0 0.0
      %848 = vmatmul.mubr.f32.gmra.mrb[0].mxu0 %v701
      %v849 = vpop.f32.mrb[0].mxu0
      %v850 = vadd.f32 %v558, %v849
      %v851 = vpop.f32.mrb[0].mxu0
      %852 = vmatprep.mubr.f32.mxu0 0.0
      %853 = vmatmul.mubr.f32.gmra.mrb[0].mxu0 %v703
      %v854 = vpop.f32.mrb[0].mxu0
      %v855 = vadd.f32 %v563, %v854
      %v856 = vpop.f32.mrb[0].mxu0
      %857 = vmatprep.mubr.f32.mxu0 0.0
      %858 = vmatmul.mubr.f32.gmra.mrb[0].mxu0 %v705
      %v859 = vpop.f32.mrb[0].mxu0
      %v860 = vadd.f32 %v568, %v859
      %v861 = vpop.f32.mrb[0].mxu0
      %862 = vmatprep.mubr.f32.mxu0 0.0
      %863 = vmatmul.mubr.f32.gmra.mrb[0].mxu0 %v707
      %v864 = vpop.f32.mrb[0].mxu0
      %v865 = vadd.f32 %v573, %v864
      %v866 = vpop.f32.mrb[0].mxu0
      %867 = vmatprep.mubr.f32.mxu0 0.0
      %868 = vmatmul.mubr.f32.gmra.mrb[0].mxu0 %v709
      %v869 = vpop.f32.mrb[0].mxu0
      %v870 = vadd.f32 %v578, %v869
      %v871 = vpop.f32.mrb[0].mxu0
      %872 = vmatprep.mubr.f32.mxu0 0.0
      %873 = vmatmul.mubr.f32.gmra.mrb[0].mxu0 %v711
      %v874 = vpop.f32.mrb[0].mxu0
      %v875 = vadd.f32 %v583, %v874
      %v876 = vpop.f32.mrb[0].mxu0
      %877 = vmatprep.mubr.f32.mxu0 0.0
      %878 = vmatmul.mubr.f32.gmra.mrb[0].mxu0 %v713
      %v879 = vpop.f32.mrb[0].mxu0
      %v880 = vadd.f32 %v588, %v879
      %v881 = vpop.f32.mrb[0].mxu0
      %882 = vmatprep.mubr.f32.mxu0 0.0
      %883 = vmatmul.mubr.f32.gmra.mrb[0].mxu0 %v715
      %v884 = vpop.f32.mrb[0].mxu0
      %v885 = vadd.f32 %v593, %v884
      %v886 = vpop.f32.mrb[0].mxu0
      %887 = vmatprep.mubr.f32.mxu0 0.0
      %888 = vmatmul.mubr.f32.gmra.mrb[0].mxu0 %v717
      %v889 = vpop.f32.mrb[0].mxu0
      %v890 = vadd.f32 %v598, %v889
      %v891 = vpop.f32.mrb[0].mxu0
      %892 = vmatprep.mubr.f32.mxu0 0.0
      %893 = vmatmul.mubr.f32.gmra.mrb[0].mxu0 %v719
      %v894 = vpop.f32.mrb[0].mxu0
      %v895 = vadd.f32 %v603, %v894
      %v896 = vpop.f32.mrb[0].mxu0
      %897 = vmatprep.mubr.f32.mxu0 0.0
      %898 = vmatmul.mubr.f32.gmra.mrb[0].mxu0 %v721
      %v899 = vpop.f32.mrb[0].mxu0
      %v900 = vadd.f32 %v608, %v899
      %v901 = vpop.f32.mrb[0].mxu0
      %902 = vmatprep.mubr.f32.mxu0 0.0
      %903 = vmatmul.mubr.f32.gmra.mrb[0].mxu0 %v723
      %v904 = vpop.f32.mrb[0].mxu0
      %v905 = vadd.f32 %v613, %v904
      %v906 = vpop.f32.mrb[0].mxu0
      %907 = vmatprep.mubr.f32.mxu0 0.0
      %908 = vmatmul.mubr.f32.gmra.mrb[0].mxu0 %v725
      %v909 = vpop.f32.mrb[0].mxu0
      %v910 = vadd.f32 %v618, %v909
      %v911 = vpop.f32.mrb[0].mxu0
      %912 = vmatprep.mubr.f32.mxu0 0.0
      %913 = vmatmul.mubr.f32.gmra.mrb[0].mxu0 %v727
      %v914 = vpop.f32.mrb[0].mxu0
      %v915 = vadd.f32 %v623, %v914
      %v916 = vpop.f32.mrb[0].mxu0
      %917 = vmatprep.mubr.f32.mxu0 0.0
      %918 = vmatmul.mubr.f32.gmra.mrb[0].mxu0 %v729
      %v919 = vpop.f32.mrb[0].mxu0
      %v920 = vadd.f32 %v628, %v919
      %v921 = vpop.f32.mrb[0].mxu0
      %922 = vmatprep.mubr.f32.mxu0 0.0
      %923 = vmatmul.mubr.f32.gmra.mrb[0].mxu0 %v731
      %v924 = vpop.f32.mrb[0].mxu0
      %v925 = vadd.f32 %v633, %v924
      %v926 = vpop.f32.mrb[0].mxu0
      %927 = vmatprep.mubr.f32.mxu0 0.0
      %928 = vmatmul.mubr.f32.gmra.mrb[0].mxu0 %v733
      %v929 = vpop.f32.mrb[0].mxu0
      %v930 = vadd.f32 %v638, %v929
      %v931 = vpop.f32.mrb[0].mxu0
      %932 = vmatprep.mubr.f32.mxu0 0.0
      %933 = vmatmul.mubr.f32.gmra.mrb[0].mxu0 %v735
      %v934 = vpop.f32.mrb[0].mxu0
      %v935 = vadd.f32 %v643, %v934
      %v936 = vpop.f32.mrb[0].mxu0
      %937 = vmatprep.mubr.f32.mxu0 0.0
      %938 = vmatmul.mubr.f32.gmra.mrb[0].mxu0 %v737
      %v939 = vpop.f32.mrb[0].mxu0
      %v940 = vadd.f32 %v648, %v939
      %v941 = vpop.f32.mrb[0].mxu0
      %942 = vmatprep.mubr.f32.mxu0 0.0
      %943 = vmatmul.mubr.f32.gmra.mrb[0].mxu0 %v739
      %v944 = vpop.f32.mrb[0].mxu0
      %v945 = vadd.f32 %v653, %v944
      %v946 = vpop.f32.mrb[0].mxu0
      %947 = vmatprep.mubr.f32.mxu0 0.0
      %948 = vmatmul.mubr.f32.gmra.mrb[0].mxu0 %v741
      %v949 = vpop.f32.mrb[0].mxu0
      %v950 = vadd.f32 %v658, %v949
      %v951 = vpop.f32.mrb[0].mxu0
      %952 = vmatprep.mubr.f32.mxu0 0.0
      %953 = vmatmul.mubr.f32.gmra.mrb[0].mxu0 %v743
      %v954 = vpop.f32.mrb[0].mxu0
      %v955 = vadd.f32 %v663, %v954
      %v956 = vpop.f32.mrb[0].mxu0
      %957 = vmatprep.mubr.f32.mxu0 0.0
      %958 = vmatmul.mubr.f32.gmra.mrb[0].mxu0 %v745
      %v959 = vpop.f32.mrb[0].mxu0
      %v960 = vadd.f32 %v668, %v959
      %v961 = vpop.f32.mrb[0].mxu0
      %962 = vmatprep.mubr.f32.mxu0 0.0
      %963 = vmatmul.mubr.f32.gmra.mrb[0].mxu0 %v747
      %v964 = vpop.f32.mrb[0].mxu0
      %v965 = vadd.f32 %v673, %v964
      %v966 = vpop.f32.mrb[0].mxu0
      %967 = vmatprep.mubr.f32.mxu0 0.0
      %968 = vmatmul.mubr.f32.gmra.mrb[0].mxu0 %v749
      %v969 = vpop.f32.mrb[0].mxu0
      %v970 = vadd.f32 %v678, %v969
      %v971 = vpop.f32.mrb[0].mxu0
      %972 = vmatprep.mubr.f32.mxu0 0.0
      %973 = vmatmul.mubr.f32.gmra.mrb[0].mxu0 %v751
      %v974 = vpop.f32.mrb[0].mxu0
      %v975 = vadd.f32 %v683, %v974
      %v976 = vpop.f32.mrb[0].mxu0
      %977 = vmatprep.mubr.f32.mxu0 0.0
      %978 = vmatmul.mubr.f32.gmra.mrb[0].mxu0 %v753
      %v979 = vpop.f32.mrb[0].mxu0
      %v980 = vadd.f32 %v688, %v979
      %v981 = vpop.f32.mrb[0].mxu0
      %982 = vdwg.mxu0
      %v983 = vrot.slane %v218, 4
      %v984 = vrot.slane %v219, 4
      %v985 = vsel %vm462, %v983, %v984
      %v986 = vrot.slane %v220, 4
      %v987 = vsel %vm462, %v984, %v986
      %v988 = vrot.slane %v221, 4
      %v989 = vrot.slane %v222, 4
      %v990 = vsel %vm462, %v988, %v989
      %v991 = vrot.slane %v223, 4
      %v992 = vsel %vm462, %v989, %v991
      %v993 = vrot.slane %v224, 4
      %v994 = vrot.slane %v225, 4
      %v995 = vsel %vm462, %v993, %v994
      %v996 = vrot.slane %v226, 4
      %v997 = vsel %vm462, %v994, %v996
      %v998 = vrot.slane %v227, 4
      %v999 = vrot.slane %v228, 4
      %v1000 = vsel %vm462, %v998, %v999
      %v1001 = vrot.slane %v229, 4
      %v1002 = vsel %vm462, %v999, %v1001
      %v1003 = vrot.slane %v230, 4
      %v1004 = vrot.slane %v231, 4
      %v1005 = vsel %vm462, %v1003, %v1004
      %v1006 = vrot.slane %v232, 4
      %v1007 = vsel %vm462, %v1004, %v1006
      %v1008 = vrot.slane %v233, 4
      %v1009 = vrot.slane %v234, 4
      %v1010 = vsel %vm462, %v1008, %v1009
      %v1011 = vrot.slane %v235, 4
      %v1012 = vsel %vm462, %v1009, %v1011
      %v1013 = vrot.slane %v236, 4
      %v1014 = vrot.slane %v237, 4
      %v1015 = vsel %vm462, %v1013, %v1014
      %v1016 = vrot.slane %v238, 4
      %v1017 = vsel %vm462, %v1014, %v1016
      %v1018 = vrot.slane %v239, 4
      %v1019 = vrot.slane %v240, 4
      %v1020 = vsel %vm462, %v1018, %v1019
      %v1021 = vrot.slane %v241, 4
      %v1022 = vsel %vm462, %v1019, %v1021
      %v1023 = vrot.slane %v242, 4
      %v1024 = vrot.slane %v243, 4
      %v1025 = vsel %vm462, %v1023, %v1024
      %v1026 = vrot.slane %v244, 4
      %v1027 = vsel %vm462, %v1024, %v1026
      %v1028 = vrot.slane %v245, 4
      %v1029 = vrot.slane %v246, 4
      %v1030 = vsel %vm462, %v1028, %v1029
      %v1031 = vrot.slane %v247, 4
      %v1032 = vsel %vm462, %v1029, %v1031
      %v1033 = vrot.slane %v248, 4
      %v1034 = vrot.slane %v249, 4
      %v1035 = vsel %vm462, %v1033, %v1034
      %v1036 = vrot.slane %v250, 4
      %v1037 = vsel %vm462, %v1034, %v1036
      %v1038 = vrot.slane %v251, 4
      %v1039 = vrot.slane %v252, 4
      %v1040 = vsel %vm462, %v1038, %v1039
      %v1041 = vrot.slane %v253, 4
      %v1042 = vsel %vm462, %v1039, %v1041
      %v1043 = vrot.slane %v254, 4
      %v1044 = vrot.slane %v255, 4
      %v1045 = vsel %vm462, %v1043, %v1044
      %v1046 = vrot.slane %v256, 4
      %v1047 = vsel %vm462, %v1044, %v1046
      %v1048 = vrot.slane %v257, 4
      %v1049 = vrot.slane %v258, 4
      %v1050 = vsel %vm462, %v1048, %v1049
      %v1051 = vrot.slane %v259, 4
      %v1052 = vsel %vm462, %v1049, %v1051
      %v1053 = vrot.slane %v260, 4
      %v1054 = vrot.slane %v261, 4
      %v1055 = vsel %vm462, %v1053, %v1054
      %v1056 = vrot.slane %v262, 4
      %v1057 = vsel %vm462, %v1054, %v1056
      %v1058 = vrot.slane %v263, 4
      %v1059 = vrot.slane %v264, 4
      %v1060 = vsel %vm462, %v1058, %v1059
      %v1061 = vrot.slane %v265, 4
      %v1062 = vsel %vm462, %v1059, %v1061
      %v1063 = vld [vmem:[%s1 + $0x8] sm:$0xf]
      %v1064 = vsel %vm397, %v985, 0
      %v1066 = vsel %vm397, %v987, 0
      %v1068 = vsel %vm397, %v990, 0
      %v1070 = vsel %vm397, %v992, 0
      %v1072 = vsel %vm397, %v995, 0
      %v1074 = vsel %vm397, %v997, 0
      %v1076 = vsel %vm397, %v1000, 0
      %v1078 = vsel %vm397, %v1002, 0
      %v1080 = vsel %vm397, %v1005, 0
      %v1082 = vsel %vm397, %v1007, 0
      %v1084 = vsel %vm397, %v1010, 0
      %v1086 = vsel %vm397, %v1012, 0
      %v1088 = vsel %vm397, %v1015, 0
      %v1090 = vsel %vm397, %v1017, 0
      %v1092 = vsel %vm397, %v1020, 0
      %v1094 = vsel %vm397, %v1022, 0
      %v1096 = vsel %vm397, %v1025, 0
      %v1098 = vsel %vm397, %v1027, 0
      %v1100 = vsel %vm397, %v1030, 0
      %v1102 = vsel %vm397, %v1032, 0
      %v1104 = vsel %vm397, %v1035, 0
      %v1106 = vsel %vm397, %v1037, 0
      %v1108 = vsel %vm397, %v1040, 0
      %v1110 = vsel %vm397, %v1042, 0
      %v1112 = vsel %vm397, %v1045, 0
      %v1114 = vsel %vm397, %v1047, 0
      %v1116 = vsel %vm397, %v1050, 0
      %v1118 = vsel %vm397, %v1052, 0
      %v1120 = vsel %vm397, %v1055, 0
      %v1122 = vsel %vm397, %v1057, 0
      %v1124 = vsel %vm397, %v1060, 0
      %v1126 = vsel %vm397, %v1062, 0
      %v1129 = vsel %vm462, %v1063, 0
      %1131 = vmatprep.subr.mxu0 0.0
      %1132 = vmatpush1.msra.mxu0 %v1129
      %1133 = vmatprep.subr.mxu0 0.0
      %1134 = vmatpush1.msra.mxu0 0.0
      %1135 = vmatprep.subr.mxu0 0.0
      %1136 = vmatpush1.msra.mxu0 0.0
      %1137 = vmatprep.subr.mxu0 0.0
      %1138 = vmatpush1.msra.mxu0 0.0
      %1139 = vmatprep.subr.mxu0 0.0
      %1140 = vmatpush1.msra.mxu0 0.0
      %1141 = vmatprep.subr.mxu0 0.0
      %1142 = vmatpush1.msra.mxu0 0.0
      %1143 = vmatprep.subr.mxu0 0.0
      %1144 = vmatpush1.msra.mxu0 0.0
      %1145 = vmatprep.subr.mxu0 0.0
      %1146 = vmatpush1.msra.mxu0 0.0
      %1147 = vmatprep.subr.mxu0 0.0
      %1148 = vmatpush1.msra.mxu0 0.0
      %1149 = vmatprep.subr.mxu0 0.0
      %1150 = vmatpush1.msra.mxu0 0.0
      %1151 = vmatprep.subr.mxu0 0.0
      %1152 = vmatpush1.msra.mxu0 0.0
      %1153 = vmatprep.subr.mxu0 0.0
      %1154 = vmatpush1.msra.mxu0 0.0
      %1155 = vmatprep.subr.mxu0 0.0
      %1156 = vmatpush1.msra.mxu0 0.0
      %1157 = vmatprep.subr.mxu0 0.0
      %1158 = vmatpush1.msra.mxu0 0.0
      %1159 = vmatprep.subr.mxu0 0.0
      %1160 = vmatpush1.msra.mxu0 0.0
      %1161 = vmatprep.subr.mxu0 0.0
      %1162 = vmatpush1.msra.mxu0 0.0
      %1163 = vmatprep.subr.mxu0 0.0
      %1164 = vmatpush1.msra.mxu0 0.0
      %1165 = vmatprep.subr.mxu0 0.0
      %1166 = vmatpush1.msra.mxu0 0.0
      %1167 = vmatprep.subr.mxu0 0.0
      %1168 = vmatpush1.msra.mxu0 0.0
      %1169 = vmatprep.subr.mxu0 0.0
      %1170 = vmatpush1.msra.mxu0 0.0
      %1171 = vmatprep.subr.mxu0 0.0
      %1172 = vmatpush1.msra.mxu0 0.0
      %1173 = vmatprep.subr.mxu0 0.0
      %1174 = vmatpush1.msra.mxu0 0.0
      %1175 = vmatprep.subr.mxu0 0.0
      %1176 = vmatpush1.msra.mxu0 0.0
      %1177 = vmatprep.subr.mxu0 0.0
      %1178 = vmatpush1.msra.mxu0 0.0
      %1179 = vmatprep.subr.mxu0 0.0
      %1180 = vmatpush1.msra.mxu0 0.0
      %1181 = vmatprep.subr.mxu0 0.0
      %1182 = vmatpush1.msra.mxu0 0.0
      %1183 = vmatprep.subr.mxu0 0.0
      %1184 = vmatpush1.msra.mxu0 0.0
      %1185 = vmatprep.subr.mxu0 0.0
      %1186 = vmatpush1.msra.mxu0 0.0
      %1187 = vmatprep.subr.mxu0 0.0
      %1188 = vmatpush1.msra.mxu0 0.0
      %1189 = vmatprep.subr.mxu0 0.0
      %1190 = vmatpush1.msra.mxu0 0.0
      %1191 = vmatprep.subr.mxu0 0.0
      %1192 = vmatpush1.msra.mxu0 0.0
      %1193 = vmatprep.subr.mxu0 0.0
      %1194 = vmatpush1.msra.mxu0 0.0
      %1195 = vmatprep.mubr.f32.mxu0 0.0
      %1196 = vmatmul.mubr.f32.gmra.mrb[0].mxu0 %v1064
      %v1197 = vpop.f32.mrb[0].mxu0
      %v1198 = vadd.f32 0.0, %v1197
      %v1199 = vpop.f32.mrb[0].mxu0
      %1200 = vmatprep.mubr.f32.mxu0 0.0
      %1201 = vmatmul.mubr.f32.gmra.mrb[0].mxu0 %v1066
      %v1202 = vpop.f32.mrb[0].mxu0
      %v1203 = vadd.f32 0.0, %v1202
      %v1204 = vpop.f32.mrb[0].mxu0
      %1205 = vmatprep.mubr.f32.mxu0 0.0
      %1206 = vmatmul.mubr.f32.gmra.mrb[0].mxu0 %v1068
      %v1207 = vpop.f32.mrb[0].mxu0
      %v1208 = vadd.f32 0.0, %v1207
      %v1209 = vpop.f32.mrb[0].mxu0
      %1210 = vmatprep.mubr.f32.mxu0 0.0
      %1211 = vmatmul.mubr.f32.gmra.mrb[0].mxu0 %v1070
      %v1212 = vpop.f32.mrb[0].mxu0
      %v1213 = vadd.f32 0.0, %v1212
      %v1214 = vpop.f32.mrb[0].mxu0
      %1215 = vmatprep.mubr.f32.mxu0 0.0
      %1216 = vmatmul.mubr.f32.gmra.mrb[0].mxu0 %v1072
      %v1217 = vpop.f32.mrb[0].mxu0
      %v1218 = vadd.f32 0.0, %v1217
      %v1219 = vpop.f32.mrb[0].mxu0
      %1220 = vmatprep.mubr.f32.mxu0 0.0
      %1221 = vmatmul.mubr.f32.gmra.mrb[0].mxu0 %v1074
      %v1222 = vpop.f32.mrb[0].mxu0
      %v1223 = vadd.f32 0.0, %v1222
      %v1224 = vpop.f32.mrb[0].mxu0
      %1225 = vmatprep.mubr.f32.mxu0 0.0
      %1226 = vmatmul.mubr.f32.gmra.mrb[0].mxu0 %v1076
      %v1227 = vpop.f32.mrb[0].mxu0
      %v1228 = vadd.f32 0.0, %v1227
      %v1229 = vpop.f32.mrb[0].mxu0
      %1230 = vmatprep.mubr.f32.mxu0 0.0
      %1231 = vmatmul.mubr.f32.gmra.mrb[0].mxu0 %v1078
      %v1232 = vpop.f32.mrb[0].mxu0
      %v1233 = vadd.f32 0.0, %v1232
      %v1234 = vpop.f32.mrb[0].mxu0
      %1235 = vmatprep.mubr.f32.mxu0 0.0
      %1236 = vmatmul.mubr.f32.gmra.mrb[0].mxu0 %v1080
      %v1237 = vpop.f32.mrb[0].mxu0
      %v1238 = vadd.f32 0.0, %v1237
      %v1239 = vpop.f32.mrb[0].mxu0
      %1240 = vmatprep.mubr.f32.mxu0 0.0
      %1241 = vmatmul.mubr.f32.gmra.mrb[0].mxu0 %v1082
      %v1242 = vpop.f32.mrb[0].mxu0
      %v1243 = vadd.f32 0.0, %v1242
      %v1244 = vpop.f32.mrb[0].mxu0
      %1245 = vmatprep.mubr.f32.mxu0 0.0
      %1246 = vmatmul.mubr.f32.gmra.mrb[0].mxu0 %v1084
      %v1247 = vpop.f32.mrb[0].mxu0
      %v1248 = vadd.f32 0.0, %v1247
      %v1249 = vpop.f32.mrb[0].mxu0
      %1250 = vmatprep.mubr.f32.mxu0 0.0
      %1251 = vmatmul.mubr.f32.gmra.mrb[0].mxu0 %v1086
      %v1252 = vpop.f32.mrb[0].mxu0
      %v1253 = vadd.f32 0.0, %v1252
      %v1254 = vpop.f32.mrb[0].mxu0
      %1255 = vmatprep.mubr.f32.mxu0 0.0
      %1256 = vmatmul.mubr.f32.gmra.mrb[0].mxu0 %v1088
      %v1257 = vpop.f32.mrb[0].mxu0
      %v1258 = vadd.f32 0.0, %v1257
      %v1259 = vpop.f32.mrb[0].mxu0
      %1260 = vmatprep.mubr.f32.mxu0 0.0
      %1261 = vmatmul.mubr.f32.gmra.mrb[0].mxu0 %v1090
      %v1262 = vpop.f32.mrb[0].mxu0
      %v1263 = vadd.f32 0.0, %v1262
      %v1264 = vpop.f32.mrb[0].mxu0
      %1265 = vmatprep.mubr.f32.mxu0 0.0
      %1266 = vmatmul.mubr.f32.gmra.mrb[0].mxu0 %v1092
      %v1267 = vpop.f32.mrb[0].mxu0
      %v1268 = vadd.f32 0.0, %v1267
      %v1269 = vpop.f32.mrb[0].mxu0
      %1270 = vmatprep.mubr.f32.mxu0 0.0
      %1271 = vmatmul.mubr.f32.gmra.mrb[0].mxu0 %v1094
      %v1272 = vpop.f32.mrb[0].mxu0
      %v1273 = vadd.f32 0.0, %v1272
      %v1274 = vpop.f32.mrb[0].mxu0
      %1275 = vmatprep.mubr.f32.mxu0 0.0
      %1276 = vmatmul.mubr.f32.gmra.mrb[0].mxu0 %v1096
      %v1277 = vpop.f32.mrb[0].mxu0
      %v1278 = vadd.f32 0.0, %v1277
      %v1279 = vpop.f32.mrb[0].mxu0
      %1280 = vmatprep.mubr.f32.mxu0 0.0
      %1281 = vmatmul.mubr.f32.gmra.mrb[0].mxu0 %v1098
      %v1282 = vpop.f32.mrb[0].mxu0
      %v1283 = vadd.f32 0.0, %v1282
      %v1284 = vpop.f32.mrb[0].mxu0
      %1285 = vmatprep.mubr.f32.mxu0 0.0
      %1286 = vmatmul.mubr.f32.gmra.mrb[0].mxu0 %v1100
      %v1287 = vpop.f32.mrb[0].mxu0
      %v1288 = vadd.f32 0.0, %v1287
      %v1289 = vpop.f32.mrb[0].mxu0
      %1290 = vmatprep.mubr.f32.mxu0 0.0
      %1291 = vmatmul.mubr.f32.gmra.mrb[0].mxu0 %v1102
      %v1292 = vpop.f32.mrb[0].mxu0
      %v1293 = vadd.f32 0.0, %v1292
      %v1294 = vpop.f32.mrb[0].mxu0
      %1295 = vmatprep.mubr.f32.mxu0 0.0
      %1296 = vmatmul.mubr.f32.gmra.mrb[0].mxu0 %v1104
      %v1297 = vpop.f32.mrb[0].mxu0
      %v1298 = vadd.f32 0.0, %v1297
      %v1299 = vpop.f32.mrb[0].mxu0
      %1300 = vmatprep.mubr.f32.mxu0 0.0
      %1301 = vmatmul.mubr.f32.gmra.mrb[0].mxu0 %v1106
      %v1302 = vpop.f32.mrb[0].mxu0
      %v1303 = vadd.f32 0.0, %v1302
      %v1304 = vpop.f32.mrb[0].mxu0
      %1305 = vmatprep.mubr.f32.mxu0 0.0
      %1306 = vmatmul.mubr.f32.gmra.mrb[0].mxu0 %v1108
      %v1307 = vpop.f32.mrb[0].mxu0
      %v1308 = vadd.f32 0.0, %v1307
      %v1309 = vpop.f32.mrb[0].mxu0
      %1310 = vmatprep.mubr.f32.mxu0 0.0
      %1311 = vmatmul.mubr.f32.gmra.mrb[0].mxu0 %v1110
      %v1312 = vpop.f32.mrb[0].mxu0
      %v1313 = vadd.f32 0.0, %v1312
      %v1314 = vpop.f32.mrb[0].mxu0
      %1315 = vmatprep.mubr.f32.mxu0 0.0
      %1316 = vmatmul.mubr.f32.gmra.mrb[0].mxu0 %v1112
      %v1317 = vpop.f32.mrb[0].mxu0
      %v1318 = vadd.f32 0.0, %v1317
      %v1319 = vpop.f32.mrb[0].mxu0
      %1320 = vmatprep.mubr.f32.mxu0 0.0
      %1321 = vmatmul.mubr.f32.gmra.mrb[0].mxu0 %v1114
      %v1322 = vpop.f32.mrb[0].mxu0
      %v1323 = vadd.f32 0.0, %v1322
      %v1324 = vpop.f32.mrb[0].mxu0
      %1325 = vmatprep.mubr.f32.mxu0 0.0
      %1326 = vmatmul.mubr.f32.gmra.mrb[0].mxu0 %v1116
      %v1327 = vpop.f32.mrb[0].mxu0
      %v1328 = vadd.f32 0.0, %v1327
      %v1329 = vpop.f32.mrb[0].mxu0
      %1330 = vmatprep.mubr.f32.mxu0 0.0
      %1331 = vmatmul.mubr.f32.gmra.mrb[0].mxu0 %v1118
      %v1332 = vpop.f32.mrb[0].mxu0
      %v1333 = vadd.f32 0.0, %v1332
      %v1334 = vpop.f32.mrb[0].mxu0
      %1335 = vmatprep.mubr.f32.mxu0 0.0
      %1336 = vmatmul.mubr.f32.gmra.mrb[0].mxu0 %v1120
      %v1337 = vpop.f32.mrb[0].mxu0
      %v1338 = vadd.f32 0.0, %v1337
      %v1339 = vpop.f32.mrb[0].mxu0
      %1340 = vmatprep.mubr.f32.mxu0 0.0
      %1341 = vmatmul.mubr.f32.gmra.mrb[0].mxu0 %v1122
      %v1342 = vpop.f32.mrb[0].mxu0
      %v1343 = vadd.f32 0.0, %v1342
      %v1344 = vpop.f32.mrb[0].mxu0
      %1345 = vmatprep.mubr.f32.mxu0 0.0
      %1346 = vmatmul.mubr.f32.gmra.mrb[0].mxu0 %v1124
      %v1347 = vpop.f32.mrb[0].mxu0
      %v1348 = vadd.f32 0.0, %v1347
      %v1349 = vpop.f32.mrb[0].mxu0
      %1350 = vmatprep.mubr.f32.mxu0 0.0
      %1351 = vmatmul.mubr.f32.gmra.mrb[0].mxu0 %v1126
      %v1352 = vpop.f32.mrb[0].mxu0
      %v1353 = vadd.f32 0.0, %v1352
      %v1354 = vpop.f32.mrb[0].mxu0
      %1355 = vdwg.mxu0
      %v1356 = vadd.f32 %v825, %v1198
      %v1357 = vadd.f32 %v830, %v1203
      %v1358 = vadd.f32 %v835, %v1208
      %v1359 = vadd.f32 %v840, %v1213
      %v1360 = vadd.f32 %v845, %v1218
      %v1361 = vadd.f32 %v850, %v1223
      %v1362 = vadd.f32 %v855, %v1228
      %v1363 = vadd.f32 %v860, %v1233
      %v1364 = vadd.f32 %v865, %v1238
      %v1365 = vadd.f32 %v870, %v1243
      %v1366 = vadd.f32 %v875, %v1248
      %v1367 = vadd.f32 %v880, %v1253
      %v1368 = vadd.f32 %v885, %v1258
      %v1369 = vadd.f32 %v890, %v1263
      %v1370 = vadd.f32 %v895, %v1268
      %v1371 = vadd.f32 %v900, %v1273
      %v1372 = vadd.f32 %v905, %v1278
      %v1373 = vadd.f32 %v910, %v1283
      %v1374 = vadd.f32 %v915, %v1288
      %v1375 = vadd.f32 %v920, %v1293
      %v1376 = vadd.f32 %v925, %v1298
      %v1377 = vadd.f32 %v930, %v1303
      %v1378 = vadd.f32 %v935, %v1308
      %v1379 = vadd.f32 %v940, %v1313
      %v1380 = vadd.f32 %v945, %v1318
      %v1381 = vadd.f32 %v950, %v1323
      %v1382 = vadd.f32 %v955, %v1328
      %v1383 = vadd.f32 %v960, %v1333
      %v1384 = vadd.f32 %v965, %v1338
      %v1385 = vadd.f32 %v970, %v1343
      %v1386 = vadd.f32 %v975, %v1348
      %v1387 = vadd.f32 %v980, %v1353
      %s1388 = sadd.s32 %s215, 2
      %s1389 = smul.u32 %s1388, 24
      %s1390 = scalar_lea.vmem %s196, %s1389
      %v1391 = vld [vmem:[%s1390] sm:$0xff]
      %v1392 = vld [vmem:[%s1390 + $0x8] sm:$0xff]
      %v1393 = vld [vmem:[%s1390 + $0x10] sm:$0xf]
      %v1394 = vld [vmem:[%s1390 + $0x18] sm:$0xff]
      %v1395 = vld [vmem:[%s1390 + $0x20] sm:$0xff]
      %v1396 = vld [vmem:[%s1390 + $0x28] sm:$0xf]
      %v1397 = vld [vmem:[%s1390 + $0x30] sm:$0xff]
      %v1398 = vld [vmem:[%s1390 + $0x38] sm:$0xff]
      %v1399 = vld [vmem:[%s1390 + $0x40] sm:$0xf]
      %v1400 = vld [vmem:[%s1390 + $0x48] sm:$0xff]
      %v1401 = vld [vmem:[%s1390 + $0x50] sm:$0xff]
      %v1402 = vld [vmem:[%s1390 + $0x58] sm:$0xf]
      %v1403 = vld [vmem:[%s1390 + $0x60] sm:$0xff]
      %v1404 = vld [vmem:[%s1390 + $0x68] sm:$0xff]
      %v1405 = vld [vmem:[%s1390 + $0x70] sm:$0xf]
      %v1406 = vld [vmem:[%s1390 + $0x78] sm:$0xff]
      %v1407 = vld [vmem:[%s1390 + $0x80] sm:$0xff]
      %v1408 = vld [vmem:[%s1390 + $0x88] sm:$0xf]
      %v1409 = vld [vmem:[%s1390 + $0x90] sm:$0xff]
      %v1410 = vld [vmem:[%s1390 + $0x98] sm:$0xff]
      %v1411 = vld [vmem:[%s1390 + $0xa0] sm:$0xf]
      %v1412 = vld [vmem:[%s1390 + $0xa8] sm:$0xff]
      %v1413 = vld [vmem:[%s1390 + $0xb0] sm:$0xff]
      %v1414 = vld [vmem:[%s1390 + $0xb8] sm:$0xf]
      %v1415 = vld [vmem:[%s1390 + $0xc0] sm:$0xff]
      %v1416 = vld [vmem:[%s1390 + $0xc8] sm:$0xff]
      %v1417 = vld [vmem:[%s1390 + $0xd0] sm:$0xf]
      %v1418 = vld [vmem:[%s1390 + $0xd8] sm:$0xff]
      %v1419 = vld [vmem:[%s1390 + $0xe0] sm:$0xff]
      %v1420 = vld [vmem:[%s1390 + $0xe8] sm:$0xf]
      %v1421 = vld [vmem:[%s1390 + $0xf0] sm:$0xff]
      %v1422 = vld [vmem:[%s1390 + $0xf8] sm:$0xff]
      %v1423 = vld [vmem:[%s1390 + $0x100] sm:$0xf]
      %v1424 = vld [vmem:[%s1390 + $0x108] sm:$0xff]
      %v1425 = vld [vmem:[%s1390 + $0x110] sm:$0xff]
      %v1426 = vld [vmem:[%s1390 + $0x118] sm:$0xf]
      %v1427 = vld [vmem:[%s1390 + $0x120] sm:$0xff]
      %v1428 = vld [vmem:[%s1390 + $0x128] sm:$0xff]
      %v1429 = vld [vmem:[%s1390 + $0x130] sm:$0xf]
      %v1430 = vld [vmem:[%s1390 + $0x138] sm:$0xff]
      %v1431 = vld [vmem:[%s1390 + $0x140] sm:$0xff]
      %v1432 = vld [vmem:[%s1390 + $0x148] sm:$0xf]
      %v1433 = vld [vmem:[%s1390 + $0x150] sm:$0xff]
      %v1434 = vld [vmem:[%s1390 + $0x158] sm:$0xff]
      %v1435 = vld [vmem:[%s1390 + $0x160] sm:$0xf]
      %v1436 = vld [vmem:[%s1390 + $0x168] sm:$0xff]
      %v1437 = vld [vmem:[%s1390 + $0x170] sm:$0xff]
      %v1438 = vld [vmem:[%s1390 + $0x178] sm:$0xf]
      %v1439 = vld [vmem:[%s1 + $0xc] sm:$0xf]
      %v1441 = vsel %vm397, %v1391, 0
      %v1444 = vsel %vm397, %v1392, 0
      %v1447 = vsel %vm397, %v1394, 0
      %v1450 = vsel %vm397, %v1395, 0
      %v1453 = vsel %vm397, %v1397, 0
      %v1456 = vsel %vm397, %v1398, 0
      %v1459 = vsel %vm397, %v1400, 0
      %v1462 = vsel %vm397, %v1401, 0
      %v1465 = vsel %vm397, %v1403, 0
      %v1468 = vsel %vm397, %v1404, 0
      %v1471 = vsel %vm397, %v1406, 0
      %v1474 = vsel %vm397, %v1407, 0
      %v1477 = vsel %vm397, %v1409, 0
      %v1480 = vsel %vm397, %v1410, 0
      %v1483 = vsel %vm397, %v1412, 0
      %v1486 = vsel %vm397, %v1413, 0
      %v1489 = vsel %vm397, %v1415, 0
      %v1492 = vsel %vm397, %v1416, 0
      %v1495 = vsel %vm397, %v1418, 0
      %v1498 = vsel %vm397, %v1419, 0
      %v1501 = vsel %vm397, %v1421, 0
      %v1504 = vsel %vm397, %v1422, 0
      %v1507 = vsel %vm397, %v1424, 0
      %v1510 = vsel %vm397, %v1425, 0
      %v1513 = vsel %vm397, %v1427, 0
      %v1516 = vsel %vm397, %v1428, 0
      %v1519 = vsel %vm397, %v1430, 0
      %v1522 = vsel %vm397, %v1431, 0
      %v1525 = vsel %vm397, %v1433, 0
      %v1528 = vsel %vm397, %v1434, 0
      %v1531 = vsel %vm397, %v1436, 0
      %v1534 = vsel %vm397, %v1437, 0
      %v1537 = vsel %vm462, %v1439, 0
      %1539 = vmatprep.subr.mxu0 0.0
      %1540 = vmatpush1.msra.mxu0 %v1537
      %1541 = vmatprep.subr.mxu0 0.0
      %1542 = vmatpush1.msra.mxu0 0.0
      %1543 = vmatprep.subr.mxu0 0.0
      %1544 = vmatpush1.msra.mxu0 0.0
      %1545 = vmatprep.subr.mxu0 0.0
      %1546 = vmatpush1.msra.mxu0 0.0
      %1547 = vmatprep.subr.mxu0 0.0
      %1548 = vmatpush1.msra.mxu0 0.0
      %1549 = vmatprep.subr.mxu0 0.0
      %1550 = vmatpush1.msra.mxu0 0.0
      %1551 = vmatprep.subr.mxu0 0.0
      %1552 = vmatpush1.msra.mxu0 0.0
      %1553 = vmatprep.subr.mxu0 0.0
      %1554 = vmatpush1.msra.mxu0 0.0
      %1555 = vmatprep.subr.mxu0 0.0
      %1556 = vmatpush1.msra.mxu0 0.0
      %1557 = vmatprep.subr.mxu0 0.0
      %1558 = vmatpush1.msra.mxu0 0.0
      %1559 = vmatprep.subr.mxu0 0.0
      %1560 = vmatpush1.msra.mxu0 0.0
      %1561 = vmatprep.subr.mxu0 0.0
      %1562 = vmatpush1.msra.mxu0 0.0
      %1563 = vmatprep.subr.mxu0 0.0
      %1564 = vmatpush1.msra.mxu0 0.0
      %1565 = vmatprep.subr.mxu0 0.0
      %1566 = vmatpush1.msra.mxu0 0.0
      %1567 = vmatprep.subr.mxu0 0.0
      %1568 = vmatpush1.msra.mxu0 0.0
      %1569 = vmatprep.subr.mxu0 0.0
      %1570 = vmatpush1.msra.mxu0 0.0
      %1571 = vmatprep.subr.mxu0 0.0
      %1572 = vmatpush1.msra.mxu0 0.0
      %1573 = vmatprep.subr.mxu0 0.0
      %1574 = vmatpush1.msra.mxu0 0.0
      %1575 = vmatprep.subr.mxu0 0.0
      %1576 = vmatpush1.msra.mxu0 0.0
      %1577 = vmatprep.subr.mxu0 0.0
      %1578 = vmatpush1.msra.mxu0 0.0
      %1579 = vmatprep.subr.mxu0 0.0
      %1580 = vmatpush1.msra.mxu0 0.0
      %1581 = vmatprep.subr.mxu0 0.0
      %1582 = vmatpush1.msra.mxu0 0.0
      %1583 = vmatprep.subr.mxu0 0.0
      %1584 = vmatpush1.msra.mxu0 0.0
      %1585 = vmatprep.subr.mxu0 0.0
      %1586 = vmatpush1.msra.mxu0 0.0
      %1587 = vmatprep.subr.mxu0 0.0
      %1588 = vmatpush1.msra.mxu0 0.0
      %1589 = vmatprep.subr.mxu0 0.0
      %1590 = vmatpush1.msra.mxu0 0.0
      %1591 = vmatprep.subr.mxu0 0.0
      %1592 = vmatpush1.msra.mxu0 0.0
      %1593 = vmatprep.subr.mxu0 0.0
      %1594 = vmatpush1.msra.mxu0 0.0
      %1595 = vmatprep.subr.mxu0 0.0
      %1596 = vmatpush1.msra.mxu0 0.0
      %1597 = vmatprep.subr.mxu0 0.0
      %1598 = vmatpush1.msra.mxu0 0.0
      %1599 = vmatprep.subr.mxu0 0.0
      %1600 = vmatpush1.msra.mxu0 0.0
      %1601 = vmatprep.subr.mxu0 0.0
      %1602 = vmatpush1.msra.mxu0 0.0
      %1603 = vmatprep.mubr.f32.mxu0 0.0
      %1604 = vmatmul.mubr.f32.gmra.mrb[0].mxu0 %v1441
      %v1605 = vpop.f32.mrb[0].mxu0
      %v1606 = vadd.f32 0.0, %v1605
      %v1607 = vpop.f32.mrb[0].mxu0
      %1608 = vmatprep.mubr.f32.mxu0 0.0
      %1609 = vmatmul.mubr.f32.gmra.mrb[0].mxu0 %v1444
      %v1610 = vpop.f32.mrb[0].mxu0
      %v1611 = vadd.f32 0.0, %v1610
      %v1612 = vpop.f32.mrb[0].mxu0
      %1613 = vmatprep.mubr.f32.mxu0 0.0
      %1614 = vmatmul.mubr.f32.gmra.mrb[0].mxu0 %v1447
      %v1615 = vpop.f32.mrb[0].mxu0
      %v1616 = vadd.f32 0.0, %v1615
      %v1617 = vpop.f32.mrb[0].mxu0
      %1618 = vmatprep.mubr.f32.mxu0 0.0
      %1619 = vmatmul.mubr.f32.gmra.mrb[0].mxu0 %v1450
      %v1620 = vpop.f32.mrb[0].mxu0
      %v1621 = vadd.f32 0.0, %v1620
      %v1622 = vpop.f32.mrb[0].mxu0
      %1623 = vmatprep.mubr.f32.mxu0 0.0
      %1624 = vmatmul.mubr.f32.gmra.mrb[0].mxu0 %v1453
      %v1625 = vpop.f32.mrb[0].mxu0
      %v1626 = vadd.f32 0.0, %v1625
      %v1627 = vpop.f32.mrb[0].mxu0
      %1628 = vmatprep.mubr.f32.mxu0 0.0
      %1629 = vmatmul.mubr.f32.gmra.mrb[0].mxu0 %v1456
      %v1630 = vpop.f32.mrb[0].mxu0
      %v1631 = vadd.f32 0.0, %v1630
      %v1632 = vpop.f32.mrb[0].mxu0
      %1633 = vmatprep.mubr.f32.mxu0 0.0
      %1634 = vmatmul.mubr.f32.gmra.mrb[0].mxu0 %v1459
      %v1635 = vpop.f32.mrb[0].mxu0
      %v1636 = vadd.f32 0.0, %v1635
      %v1637 = vpop.f32.mrb[0].mxu0
      %1638 = vmatprep.mubr.f32.mxu0 0.0
      %1639 = vmatmul.mubr.f32.gmra.mrb[0].mxu0 %v1462
      %v1640 = vpop.f32.mrb[0].mxu0
      %v1641 = vadd.f32 0.0, %v1640
      %v1642 = vpop.f32.mrb[0].mxu0
      %1643 = vmatprep.mubr.f32.mxu0 0.0
      %1644 = vmatmul.mubr.f32.gmra.mrb[0].mxu0 %v1465
      %v1645 = vpop.f32.mrb[0].mxu0
      %v1646 = vadd.f32 0.0, %v1645
      %v1647 = vpop.f32.mrb[0].mxu0
      %1648 = vmatprep.mubr.f32.mxu0 0.0
      %1649 = vmatmul.mubr.f32.gmra.mrb[0].mxu0 %v1468
      %v1650 = vpop.f32.mrb[0].mxu0
      %v1651 = vadd.f32 0.0, %v1650
      %v1652 = vpop.f32.mrb[0].mxu0
      %1653 = vmatprep.mubr.f32.mxu0 0.0
      %1654 = vmatmul.mubr.f32.gmra.mrb[0].mxu0 %v1471
      %v1655 = vpop.f32.mrb[0].mxu0
      %v1656 = vadd.f32 0.0, %v1655
      %v1657 = vpop.f32.mrb[0].mxu0
      %1658 = vmatprep.mubr.f32.mxu0 0.0
      %1659 = vmatmul.mubr.f32.gmra.mrb[0].mxu0 %v1474
      %v1660 = vpop.f32.mrb[0].mxu0
      %v1661 = vadd.f32 0.0, %v1660
      %v1662 = vpop.f32.mrb[0].mxu0
      %1663 = vmatprep.mubr.f32.mxu0 0.0
      %1664 = vmatmul.mubr.f32.gmra.mrb[0].mxu0 %v1477
      %v1665 = vpop.f32.mrb[0].mxu0
      %v1666 = vadd.f32 0.0, %v1665
      %v1667 = vpop.f32.mrb[0].mxu0
      %1668 = vmatprep.mubr.f32.mxu0 0.0
      %1669 = vmatmul.mubr.f32.gmra.mrb[0].mxu0 %v1480
      %v1670 = vpop.f32.mrb[0].mxu0
      %v1671 = vadd.f32 0.0, %v1670
      %v1672 = vpop.f32.mrb[0].mxu0
      %1673 = vmatprep.mubr.f32.mxu0 0.0
      %1674 = vmatmul.mubr.f32.gmra.mrb[0].mxu0 %v1483
      %v1675 = vpop.f32.mrb[0].mxu0
      %v1676 = vadd.f32 0.0, %v1675
      %v1677 = vpop.f32.mrb[0].mxu0
      %1678 = vmatprep.mubr.f32.mxu0 0.0
      %1679 = vmatmul.mubr.f32.gmra.mrb[0].mxu0 %v1486
      %v1680 = vpop.f32.mrb[0].mxu0
      %v1681 = vadd.f32 0.0, %v1680
      %v1682 = vpop.f32.mrb[0].mxu0
      %1683 = vmatprep.mubr.f32.mxu0 0.0
      %1684 = vmatmul.mubr.f32.gmra.mrb[0].mxu0 %v1489
      %v1685 = vpop.f32.mrb[0].mxu0
      %v1686 = vadd.f32 0.0, %v1685
      %v1687 = vpop.f32.mrb[0].mxu0
      %1688 = vmatprep.mubr.f32.mxu0 0.0
      %1689 = vmatmul.mubr.f32.gmra.mrb[0].mxu0 %v1492
      %v1690 = vpop.f32.mrb[0].mxu0
      %v1691 = vadd.f32 0.0, %v1690
      %v1692 = vpop.f32.mrb[0].mxu0
      %1693 = vmatprep.mubr.f32.mxu0 0.0
      %1694 = vmatmul.mubr.f32.gmra.mrb[0].mxu0 %v1495
      %v1695 = vpop.f32.mrb[0].mxu0
      %v1696 = vadd.f32 0.0, %v1695
      %v1697 = vpop.f32.mrb[0].mxu0
      %1698 = vmatprep.mubr.f32.mxu0 0.0
      %1699 = vmatmul.mubr.f32.gmra.mrb[0].mxu0 %v1498
      %v1700 = vpop.f32.mrb[0].mxu0
      %v1701 = vadd.f32 0.0, %v1700
      %v1702 = vpop.f32.mrb[0].mxu0
      %1703 = vmatprep.mubr.f32.mxu0 0.0
      %1704 = vmatmul.mubr.f32.gmra.mrb[0].mxu0 %v1501
      %v1705 = vpop.f32.mrb[0].mxu0
      %v1706 = vadd.f32 0.0, %v1705
      %v1707 = vpop.f32.mrb[0].mxu0
      %1708 = vmatprep.mubr.f32.mxu0 0.0
      %1709 = vmatmul.mubr.f32.gmra.mrb[0].mxu0 %v1504
      %v1710 = vpop.f32.mrb[0].mxu0
      %v1711 = vadd.f32 0.0, %v1710
      %v1712 = vpop.f32.mrb[0].mxu0
      %1713 = vmatprep.mubr.f32.mxu0 0.0
      %1714 = vmatmul.mubr.f32.gmra.mrb[0].mxu0 %v1507
      %v1715 = vpop.f32.mrb[0].mxu0
      %v1716 = vadd.f32 0.0, %v1715
      %v1717 = vpop.f32.mrb[0].mxu0
      %1718 = vmatprep.mubr.f32.mxu0 0.0
      %1719 = vmatmul.mubr.f32.gmra.mrb[0].mxu0 %v1510
      %v1720 = vpop.f32.mrb[0].mxu0
      %v1721 = vadd.f32 0.0, %v1720
      %v1722 = vpop.f32.mrb[0].mxu0
      %1723 = vmatprep.mubr.f32.mxu0 0.0
      %1724 = vmatmul.mubr.f32.gmra.mrb[0].mxu0 %v1513
      %v1725 = vpop.f32.mrb[0].mxu0
      %v1726 = vadd.f32 0.0, %v1725
      %v1727 = vpop.f32.mrb[0].mxu0
      %1728 = vmatprep.mubr.f32.mxu0 0.0
      %1729 = vmatmul.mubr.f32.gmra.mrb[0].mxu0 %v1516
      %v1730 = vpop.f32.mrb[0].mxu0
      %v1731 = vadd.f32 0.0, %v1730
      %v1732 = vpop.f32.mrb[0].mxu0
      %1733 = vmatprep.mubr.f32.mxu0 0.0
      %1734 = vmatmul.mubr.f32.gmra.mrb[0].mxu0 %v1519
      %v1735 = vpop.f32.mrb[0].mxu0
      %v1736 = vadd.f32 0.0, %v1735
      %v1737 = vpop.f32.mrb[0].mxu0
      %1738 = vmatprep.mubr.f32.mxu0 0.0
      %1739 = vmatmul.mubr.f32.gmra.mrb[0].mxu0 %v1522
      %v1740 = vpop.f32.mrb[0].mxu0
      %v1741 = vadd.f32 0.0, %v1740
      %v1742 = vpop.f32.mrb[0].mxu0
      %1743 = vmatprep.mubr.f32.mxu0 0.0
      %1744 = vmatmul.mubr.f32.gmra.mrb[0].mxu0 %v1525
      %v1745 = vpop.f32.mrb[0].mxu0
      %v1746 = vadd.f32 0.0, %v1745
      %v1747 = vpop.f32.mrb[0].mxu0
      %1748 = vmatprep.mubr.f32.mxu0 0.0
      %1749 = vmatmul.mubr.f32.gmra.mrb[0].mxu0 %v1528
      %v1750 = vpop.f32.mrb[0].mxu0
      %v1751 = vadd.f32 0.0, %v1750
      %v1752 = vpop.f32.mrb[0].mxu0
      %1753 = vmatprep.mubr.f32.mxu0 0.0
      %1754 = vmatmul.mubr.f32.gmra.mrb[0].mxu0 %v1531
      %v1755 = vpop.f32.mrb[0].mxu0
      %v1756 = vadd.f32 0.0, %v1755
      %v1757 = vpop.f32.mrb[0].mxu0
      %1758 = vmatprep.mubr.f32.mxu0 0.0
      %1759 = vmatmul.mubr.f32.gmra.mrb[0].mxu0 %v1534
      %v1760 = vpop.f32.mrb[0].mxu0
      %v1761 = vadd.f32 0.0, %v1760
      %v1762 = vpop.f32.mrb[0].mxu0
      %1763 = vdwg.mxu0
      %v1764 = vadd.f32 %v1356, %v1606
      %v1765 = vadd.f32 %v1357, %v1611
      %v1766 = vadd.f32 %v1358, %v1616
      %v1767 = vadd.f32 %v1359, %v1621
      %v1768 = vadd.f32 %v1360, %v1626
      %v1769 = vadd.f32 %v1361, %v1631
      %v1770 = vadd.f32 %v1362, %v1636
      %v1771 = vadd.f32 %v1363, %v1641
      %v1772 = vadd.f32 %v1364, %v1646
      %v1773 = vadd.f32 %v1365, %v1651
      %v1774 = vadd.f32 %v1366, %v1656
      %v1775 = vadd.f32 %v1367, %v1661
      %v1776 = vadd.f32 %v1368, %v1666
      %v1777 = vadd.f32 %v1369, %v1671
      %v1778 = vadd.f32 %v1370, %v1676
      %v1779 = vadd.f32 %v1371, %v1681
      %v1780 = vadd.f32 %v1372, %v1686
      %v1781 = vadd.f32 %v1373, %v1691
      %v1782 = vadd.f32 %v1374, %v1696
      %v1783 = vadd.f32 %v1375, %v1701
      %v1784 = vadd.f32 %v1376, %v1706
      %v1785 = vadd.f32 %v1377, %v1711
      %v1786 = vadd.f32 %v1378, %v1716
      %v1787 = vadd.f32 %v1379, %v1721
      %v1788 = vadd.f32 %v1380, %v1726
      %v1789 = vadd.f32 %v1381, %v1731
      %v1790 = vadd.f32 %v1382, %v1736
      %v1791 = vadd.f32 %v1383, %v1741
      %v1792 = vadd.f32 %v1384, %v1746
      %v1793 = vadd.f32 %v1385, %v1751
      %v1794 = vadd.f32 %v1386, %v1756
      %v1795 = vadd.f32 %v1387, %v1761
      %v1812 = vrot.slane %v1391, 2
      %v1813 = vrot.slane %v1392, 2
      %v1814 = vsel %vm315, %v1812, %v1813
      %v1815 = vrot.slane %v1393, 2
      %v1816 = vsel %vm315, %v1813, %v1815
      %v1817 = vrot.slane %v1394, 2
      %v1818 = vrot.slane %v1395, 2
      %v1819 = vsel %vm315, %v1817, %v1818
      %v1820 = vrot.slane %v1396, 2
      %v1821 = vsel %vm315, %v1818, %v1820
      %v1822 = vrot.slane %v1397, 2
      %v1823 = vrot.slane %v1398, 2
      %v1824 = vsel %vm315, %v1822, %v1823
      %v1825 = vrot.slane %v1399, 2
      %v1826 = vsel %vm315, %v1823, %v1825
      %v1827 = vrot.slane %v1400, 2
      %v1828 = vrot.slane %v1401, 2
      %v1829 = vsel %vm315, %v1827, %v1828
      %v1830 = vrot.slane %v1402, 2
      %v1831 = vsel %vm315, %v1828, %v1830
      %v1832 = vrot.slane %v1403, 2
      %v1833 = vrot.slane %v1404, 2
      %v1834 = vsel %vm315, %v1832, %v1833
      %v1835 = vrot.slane %v1405, 2
      %v1836 = vsel %vm315, %v1833, %v1835
      %v1837 = vrot.slane %v1406, 2
      %v1838 = vrot.slane %v1407, 2
      %v1839 = vsel %vm315, %v1837, %v1838
      %v1840 = vrot.slane %v1408, 2
      %v1841 = vsel %vm315, %v1838, %v1840
      %v1842 = vrot.slane %v1409, 2
      %v1843 = vrot.slane %v1410, 2
      %v1844 = vsel %vm315, %v1842, %v1843
      %v1845 = vrot.slane %v1411, 2
      %v1846 = vsel %vm315, %v1843, %v1845
      %v1847 = vrot.slane %v1412, 2
      %v1848 = vrot.slane %v1413, 2
      %v1849 = vsel %vm315, %v1847, %v1848
      %v1850 = vrot.slane %v1414, 2
      %v1851 = vsel %vm315, %v1848, %v1850
      %v1852 = vrot.slane %v1415, 2
      %v1853 = vrot.slane %v1416, 2
      %v1854 = vsel %vm315, %v1852, %v1853
      %v1855 = vrot.slane %v1417, 2
      %v1856 = vsel %vm315, %v1853, %v1855
      %v1857 = vrot.slane %v1418, 2
      %v1858 = vrot.slane %v1419, 2
      %v1859 = vsel %vm315, %v1857, %v1858
      %v1860 = vrot.slane %v1420, 2
      %v1861 = vsel %vm315, %v1858, %v1860
      %v1862 = vrot.slane %v1421, 2
      %v1863 = vrot.slane %v1422, 2
      %v1864 = vsel %vm315, %v1862, %v1863
      %v1865 = vrot.slane %v1423, 2
      %v1866 = vsel %vm315, %v1863, %v1865
      %v1867 = vrot.slane %v1424, 2
      %v1868 = vrot.slane %v1425, 2
      %v1869 = vsel %vm315, %v1867, %v1868
      %v1870 = vrot.slane %v1426, 2
      %v1871 = vsel %vm315, %v1868, %v1870
      %v1872 = vrot.slane %v1427, 2
      %v1873 = vrot.slane %v1428, 2
      %v1874 = vsel %vm315, %v1872, %v1873
      %v1875 = vrot.slane %v1429, 2
      %v1876 = vsel %vm315, %v1873, %v1875
      %v1877 = vrot.slane %v1430, 2
      %v1878 = vrot.slane %v1431, 2
      %v1879 = vsel %vm315, %v1877, %v1878
      %v1880 = vrot.slane %v1432, 2
      %v1881 = vsel %vm315, %v1878, %v1880
      %v1882 = vrot.slane %v1433, 2
      %v1883 = vrot.slane %v1434, 2
      %v1884 = vsel %vm315, %v1882, %v1883
      %v1885 = vrot.slane %v1435, 2
      %v1886 = vsel %vm315, %v1883, %v1885
      %v1887 = vrot.slane %v1436, 2
      %v1888 = vrot.slane %v1437, 2
      %v1889 = vsel %vm315, %v1887, %v1888
      %v1890 = vrot.slane %v1438, 2
      %v1891 = vsel %vm315, %v1888, %v1890
      %v1892 = vld [vmem:[%s1 + $0x10] sm:$0xf]
      %v1893 = vsel %vm397, %v1814, 0
      %v1895 = vsel %vm397, %v1816, 0
      %v1897 = vsel %vm397, %v1819, 0
      %v1899 = vsel %vm397, %v1821, 0
      %v1901 = vsel %vm397, %v1824, 0
      %v1903 = vsel %vm397, %v1826, 0
      %v1905 = vsel %vm397, %v1829, 0
      %v1907 = vsel %vm397, %v1831, 0
      %v1909 = vsel %vm397, %v1834, 0
      %v1911 = vsel %vm397, %v1836, 0
      %v1913 = vsel %vm397, %v1839, 0
      %v1915 = vsel %vm397, %v1841, 0
      %v1917 = vsel %vm397, %v1844, 0
      %v1919 = vsel %vm397, %v1846, 0
      %v1921 = vsel %vm397, %v1849, 0
      %v1923 = vsel %vm397, %v1851, 0
      %v1925 = vsel %vm397, %v1854, 0
      %v1927 = vsel %vm397, %v1856, 0
      %v1929 = vsel %vm397, %v1859, 0
      %v1931 = vsel %vm397, %v1861, 0
      %v1933 = vsel %vm397, %v1864, 0
      %v1935 = vsel %vm397, %v1866, 0
      %v1937 = vsel %vm397, %v1869, 0
      %v1939 = vsel %vm397, %v1871, 0
      %v1941 = vsel %vm397, %v1874, 0
      %v1943 = vsel %vm397, %v1876, 0
      %v1945 = vsel %vm397, %v1879, 0
      %v1947 = vsel %vm397, %v1881, 0
      %v1949 = vsel %vm397, %v1884, 0
      %v1951 = vsel %vm397, %v1886, 0
      %v1953 = vsel %vm397, %v1889, 0
      %v1955 = vsel %vm397, %v1891, 0
      %v1958 = vsel %vm462, %v1892, 0
      %1960 = vmatprep.subr.mxu0 0.0
      %1961 = vmatpush1.msra.mxu0 %v1958
      %1962 = vmatprep.subr.mxu0 0.0
      %1963 = vmatpush1.msra.mxu0 0.0
      %1964 = vmatprep.subr.mxu0 0.0
      %1965 = vmatpush1.msra.mxu0 0.0
      %1966 = vmatprep.subr.mxu0 0.0
      %1967 = vmatpush1.msra.mxu0 0.0
      %1968 = vmatprep.subr.mxu0 0.0
      %1969 = vmatpush1.msra.mxu0 0.0
      %1970 = vmatprep.subr.mxu0 0.0
      %1971 = vmatpush1.msra.mxu0 0.0
      %1972 = vmatprep.subr.mxu0 0.0
      %1973 = vmatpush1.msra.mxu0 0.0
      %1974 = vmatprep.subr.mxu0 0.0
      %1975 = vmatpush1.msra.mxu0 0.0
      %1976 = vmatprep.subr.mxu0 0.0
      %1977 = vmatpush1.msra.mxu0 0.0
      %1978 = vmatprep.subr.mxu0 0.0
      %1979 = vmatpush1.msra.mxu0 0.0
      %1980 = vmatprep.subr.mxu0 0.0
      %1981 = vmatpush1.msra.mxu0 0.0
      %1982 = vmatprep.subr.mxu0 0.0
      %1983 = vmatpush1.msra.mxu0 0.0
      %1984 = vmatprep.subr.mxu0 0.0
      %1985 = vmatpush1.msra.mxu0 0.0
      %1986 = vmatprep.subr.mxu0 0.0
      %1987 = vmatpush1.msra.mxu0 0.0
      %1988 = vmatprep.subr.mxu0 0.0
      %1989 = vmatpush1.msra.mxu0 0.0
      %1990 = vmatprep.subr.mxu0 0.0
      %1991 = vmatpush1.msra.mxu0 0.0
      %1992 = vmatprep.subr.mxu0 0.0
      %1993 = vmatpush1.msra.mxu0 0.0
      %1994 = vmatprep.subr.mxu0 0.0
      %1995 = vmatpush1.msra.mxu0 0.0
      %1996 = vmatprep.subr.mxu0 0.0
      %1997 = vmatpush1.msra.mxu0 0.0
      %1998 = vmatprep.subr.mxu0 0.0
      %1999 = vmatpush1.msra.mxu0 0.0
      %2000 = vmatprep.subr.mxu0 0.0
      %2001 = vmatpush1.msra.mxu0 0.0
      %2002 = vmatprep.subr.mxu0 0.0
      %2003 = vmatpush1.msra.mxu0 0.0
      %2004 = vmatprep.subr.mxu0 0.0
      %2005 = vmatpush1.msra.mxu0 0.0
      %2006 = vmatprep.subr.mxu0 0.0
      %2007 = vmatpush1.msra.mxu0 0.0
      %2008 = vmatprep.subr.mxu0 0.0
      %2009 = vmatpush1.msra.mxu0 0.0
      %2010 = vmatprep.subr.mxu0 0.0
      %2011 = vmatpush1.msra.mxu0 0.0
      %2012 = vmatprep.subr.mxu0 0.0
      %2013 = vmatpush1.msra.mxu0 0.0
      %2014 = vmatprep.subr.mxu0 0.0
      %2015 = vmatpush1.msra.mxu0 0.0
      %2016 = vmatprep.subr.mxu0 0.0
      %2017 = vmatpush1.msra.mxu0 0.0
      %2018 = vmatprep.subr.mxu0 0.0
      %2019 = vmatpush1.msra.mxu0 0.0
      %2020 = vmatprep.subr.mxu0 0.0
      %2021 = vmatpush1.msra.mxu0 0.0
      %2022 = vmatprep.subr.mxu0 0.0
      %2023 = vmatpush1.msra.mxu0 0.0
      %2024 = vmatprep.mubr.f32.mxu0 0.0
      %2025 = vmatmul.mubr.f32.gmra.mrb[0].mxu0 %v1893
      %v2026 = vpop.f32.mrb[0].mxu0
      %v2027 = vadd.f32 0.0, %v2026
      %v2028 = vpop.f32.mrb[0].mxu0
      %2029 = vmatprep.mubr.f32.mxu0 0.0
      %2030 = vmatmul.mubr.f32.gmra.mrb[0].mxu0 %v1895
      %v2031 = vpop.f32.mrb[0].mxu0
      %v2032 = vadd.f32 0.0, %v2031
      %v2033 = vpop.f32.mrb[0].mxu0
      %2034 = vmatprep.mubr.f32.mxu0 0.0
      %2035 = vmatmul.mubr.f32.gmra.mrb[0].mxu0 %v1897
      %v2036 = vpop.f32.mrb[0].mxu0
      %v2037 = vadd.f32 0.0, %v2036
      %v2038 = vpop.f32.mrb[0].mxu0
      %2039 = vmatprep.mubr.f32.mxu0 0.0
      %2040 = vmatmul.mubr.f32.gmra.mrb[0].mxu0 %v1899
      %v2041 = vpop.f32.mrb[0].mxu0
      %v2042 = vadd.f32 0.0, %v2041
      %v2043 = vpop.f32.mrb[0].mxu0
      %2044 = vmatprep.mubr.f32.mxu0 0.0
      %2045 = vmatmul.mubr.f32.gmra.mrb[0].mxu0 %v1901
      %v2046 = vpop.f32.mrb[0].mxu0
      %v2047 = vadd.f32 0.0, %v2046
      %v2048 = vpop.f32.mrb[0].mxu0
      %2049 = vmatprep.mubr.f32.mxu0 0.0
      %2050 = vmatmul.mubr.f32.gmra.mrb[0].mxu0 %v1903
      %v2051 = vpop.f32.mrb[0].mxu0
      %v2052 = vadd.f32 0.0, %v2051
      %v2053 = vpop.f32.mrb[0].mxu0
      %2054 = vmatprep.mubr.f32.mxu0 0.0
      %2055 = vmatmul.mubr.f32.gmra.mrb[0].mxu0 %v1905
      %v2056 = vpop.f32.mrb[0].mxu0
      %v2057 = vadd.f32 0.0, %v2056
      %v2058 = vpop.f32.mrb[0].mxu0
      %2059 = vmatprep.mubr.f32.mxu0 0.0
      %2060 = vmatmul.mubr.f32.gmra.mrb[0].mxu0 %v1907
      %v2061 = vpop.f32.mrb[0].mxu0
      %v2062 = vadd.f32 0.0, %v2061
      %v2063 = vpop.f32.mrb[0].mxu0
      %2064 = vmatprep.mubr.f32.mxu0 0.0
      %2065 = vmatmul.mubr.f32.gmra.mrb[0].mxu0 %v1909
      %v2066 = vpop.f32.mrb[0].mxu0
      %v2067 = vadd.f32 0.0, %v2066
      %v2068 = vpop.f32.mrb[0].mxu0
      %2069 = vmatprep.mubr.f32.mxu0 0.0
      %2070 = vmatmul.mubr.f32.gmra.mrb[0].mxu0 %v1911
      %v2071 = vpop.f32.mrb[0].mxu0
      %v2072 = vadd.f32 0.0, %v2071
      %v2073 = vpop.f32.mrb[0].mxu0
      %2074 = vmatprep.mubr.f32.mxu0 0.0
      %2075 = vmatmul.mubr.f32.gmra.mrb[0].mxu0 %v1913
      %v2076 = vpop.f32.mrb[0].mxu0
      %v2077 = vadd.f32 0.0, %v2076
      %v2078 = vpop.f32.mrb[0].mxu0
      %2079 = vmatprep.mubr.f32.mxu0 0.0
      %2080 = vmatmul.mubr.f32.gmra.mrb[0].mxu0 %v1915
      %v2081 = vpop.f32.mrb[0].mxu0
      %v2082 = vadd.f32 0.0, %v2081
      %v2083 = vpop.f32.mrb[0].mxu0
      %2084 = vmatprep.mubr.f32.mxu0 0.0
      %2085 = vmatmul.mubr.f32.gmra.mrb[0].mxu0 %v1917
      %v2086 = vpop.f32.mrb[0].mxu0
      %v2087 = vadd.f32 0.0, %v2086
      %v2088 = vpop.f32.mrb[0].mxu0
      %2089 = vmatprep.mubr.f32.mxu0 0.0
      %2090 = vmatmul.mubr.f32.gmra.mrb[0].mxu0 %v1919
      %v2091 = vpop.f32.mrb[0].mxu0
      %v2092 = vadd.f32 0.0, %v2091
      %v2093 = vpop.f32.mrb[0].mxu0
      %2094 = vmatprep.mubr.f32.mxu0 0.0
      %2095 = vmatmul.mubr.f32.gmra.mrb[0].mxu0 %v1921
      %v2096 = vpop.f32.mrb[0].mxu0
      %v2097 = vadd.f32 0.0, %v2096
      %v2098 = vpop.f32.mrb[0].mxu0
      %2099 = vmatprep.mubr.f32.mxu0 0.0
      %2100 = vmatmul.mubr.f32.gmra.mrb[0].mxu0 %v1923
      %v2101 = vpop.f32.mrb[0].mxu0
      %v2102 = vadd.f32 0.0, %v2101
      %v2103 = vpop.f32.mrb[0].mxu0
      %2104 = vmatprep.mubr.f32.mxu0 0.0
      %2105 = vmatmul.mubr.f32.gmra.mrb[0].mxu0 %v1925
      %v2106 = vpop.f32.mrb[0].mxu0
      %v2107 = vadd.f32 0.0, %v2106
      %v2108 = vpop.f32.mrb[0].mxu0
      %2109 = vmatprep.mubr.f32.mxu0 0.0
      %2110 = vmatmul.mubr.f32.gmra.mrb[0].mxu0 %v1927
      %v2111 = vpop.f32.mrb[0].mxu0
      %v2112 = vadd.f32 0.0, %v2111
      %v2113 = vpop.f32.mrb[0].mxu0
      %2114 = vmatprep.mubr.f32.mxu0 0.0
      %2115 = vmatmul.mubr.f32.gmra.mrb[0].mxu0 %v1929
      %v2116 = vpop.f32.mrb[0].mxu0
      %v2117 = vadd.f32 0.0, %v2116
      %v2118 = vpop.f32.mrb[0].mxu0
      %2119 = vmatprep.mubr.f32.mxu0 0.0
      %2120 = vmatmul.mubr.f32.gmra.mrb[0].mxu0 %v1931
      %v2121 = vpop.f32.mrb[0].mxu0
      %v2122 = vadd.f32 0.0, %v2121
      %v2123 = vpop.f32.mrb[0].mxu0
      %2124 = vmatprep.mubr.f32.mxu0 0.0
      %2125 = vmatmul.mubr.f32.gmra.mrb[0].mxu0 %v1933
      %v2126 = vpop.f32.mrb[0].mxu0
      %v2127 = vadd.f32 0.0, %v2126
      %v2128 = vpop.f32.mrb[0].mxu0
      %2129 = vmatprep.mubr.f32.mxu0 0.0
      %2130 = vmatmul.mubr.f32.gmra.mrb[0].mxu0 %v1935
      %v2131 = vpop.f32.mrb[0].mxu0
      %v2132 = vadd.f32 0.0, %v2131
      %v2133 = vpop.f32.mrb[0].mxu0
      %2134 = vmatprep.mubr.f32.mxu0 0.0
      %2135 = vmatmul.mubr.f32.gmra.mrb[0].mxu0 %v1937
      %v2136 = vpop.f32.mrb[0].mxu0
      %v2137 = vadd.f32 0.0, %v2136
      %v2138 = vpop.f32.mrb[0].mxu0
      %2139 = vmatprep.mubr.f32.mxu0 0.0
      %2140 = vmatmul.mubr.f32.gmra.mrb[0].mxu0 %v1939
      %v2141 = vpop.f32.mrb[0].mxu0
      %v2142 = vadd.f32 0.0, %v2141
      %v2143 = vpop.f32.mrb[0].mxu0
      %2144 = vmatprep.mubr.f32.mxu0 0.0
      %2145 = vmatmul.mubr.f32.gmra.mrb[0].mxu0 %v1941
      %v2146 = vpop.f32.mrb[0].mxu0
      %v2147 = vadd.f32 0.0, %v2146
      %v2148 = vpop.f32.mrb[0].mxu0
      %2149 = vmatprep.mubr.f32.mxu0 0.0
      %2150 = vmatmul.mubr.f32.gmra.mrb[0].mxu0 %v1943
      %v2151 = vpop.f32.mrb[0].mxu0
      %v2152 = vadd.f32 0.0, %v2151
      %v2153 = vpop.f32.mrb[0].mxu0
      %2154 = vmatprep.mubr.f32.mxu0 0.0
      %2155 = vmatmul.mubr.f32.gmra.mrb[0].mxu0 %v1945
      %v2156 = vpop.f32.mrb[0].mxu0
      %v2157 = vadd.f32 0.0, %v2156
      %v2158 = vpop.f32.mrb[0].mxu0
      %2159 = vmatprep.mubr.f32.mxu0 0.0
      %2160 = vmatmul.mubr.f32.gmra.mrb[0].mxu0 %v1947
      %v2161 = vpop.f32.mrb[0].mxu0
      %v2162 = vadd.f32 0.0, %v2161
      %v2163 = vpop.f32.mrb[0].mxu0
      %2164 = vmatprep.mubr.f32.mxu0 0.0
      %2165 = vmatmul.mubr.f32.gmra.mrb[0].mxu0 %v1949
      %v2166 = vpop.f32.mrb[0].mxu0
      %v2167 = vadd.f32 0.0, %v2166
      %v2168 = vpop.f32.mrb[0].mxu0
      %2169 = vmatprep.mubr.f32.mxu0 0.0
      %2170 = vmatmul.mubr.f32.gmra.mrb[0].mxu0 %v1951
      %v2171 = vpop.f32.mrb[0].mxu0
      %v2172 = vadd.f32 0.0, %v2171
      %v2173 = vpop.f32.mrb[0].mxu0
      %2174 = vmatprep.mubr.f32.mxu0 0.0
      %2175 = vmatmul.mubr.f32.gmra.mrb[0].mxu0 %v1953
      %v2176 = vpop.f32.mrb[0].mxu0
      %v2177 = vadd.f32 0.0, %v2176
      %v2178 = vpop.f32.mrb[0].mxu0
      %2179 = vmatprep.mubr.f32.mxu0 0.0
      %2180 = vmatmul.mubr.f32.gmra.mrb[0].mxu0 %v1955
      %v2181 = vpop.f32.mrb[0].mxu0
      %v2182 = vadd.f32 0.0, %v2181
      %v2183 = vpop.f32.mrb[0].mxu0
      %2184 = vdwg.mxu0
      %v2185 = vadd.f32 %v1764, %v2027
      %v2186 = vadd.f32 %v1765, %v2032
      %v2187 = vadd.f32 %v1766, %v2037
      %v2188 = vadd.f32 %v1767, %v2042
      %v2189 = vadd.f32 %v1768, %v2047
      %v2190 = vadd.f32 %v1769, %v2052
      %v2191 = vadd.f32 %v1770, %v2057
      %v2192 = vadd.f32 %v1771, %v2062
      %v2193 = vadd.f32 %v1772, %v2067
      %v2194 = vadd.f32 %v1773, %v2072
      %v2195 = vadd.f32 %v1774, %v2077
      %v2196 = vadd.f32 %v1775, %v2082
      %v2197 = vadd.f32 %v1776, %v2087
      %v2198 = vadd.f32 %v1777, %v2092
      %v2199 = vadd.f32 %v1778, %v2097
      %v2200 = vadd.f32 %v1779, %v2102
      %v2201 = vadd.f32 %v1780, %v2107
      %v2202 = vadd.f32 %v1781, %v2112
      %v2203 = vadd.f32 %v1782, %v2117
      %v2204 = vadd.f32 %v1783, %v2122
      %v2205 = vadd.f32 %v1784, %v2127
      %v2206 = vadd.f32 %v1785, %v2132
      %v2207 = vadd.f32 %v1786, %v2137
      %v2208 = vadd.f32 %v1787, %v2142
      %v2209 = vadd.f32 %v1788, %v2147
      %v2210 = vadd.f32 %v1789, %v2152
      %v2211 = vadd.f32 %v1790, %v2157
      %v2212 = vadd.f32 %v1791, %v2162
      %v2213 = vadd.f32 %v1792, %v2167
      %v2214 = vadd.f32 %v1793, %v2172
      %v2215 = vadd.f32 %v1794, %v2177
      %v2216 = vadd.f32 %v1795, %v2182
      %v2217 = vrot.slane %v1391, 4
      %v2218 = vrot.slane %v1392, 4
      %v2219 = vsel %vm462, %v2217, %v2218
      %v2220 = vrot.slane %v1393, 4
      %v2221 = vsel %vm462, %v2218, %v2220
      %v2222 = vrot.slane %v1394, 4
      %v2223 = vrot.slane %v1395, 4
      %v2224 = vsel %vm462, %v2222, %v2223
      %v2225 = vrot.slane %v1396, 4
      %v2226 = vsel %vm462, %v2223, %v2225
      %v2227 = vrot.slane %v1397, 4
      %v2228 = vrot.slane %v1398, 4
      %v2229 = vsel %vm462, %v2227, %v2228
      %v2230 = vrot.slane %v1399, 4
      %v2231 = vsel %vm462, %v2228, %v2230
      %v2232 = vrot.slane %v1400, 4
      %v2233 = vrot.slane %v1401, 4
      %v2234 = vsel %vm462, %v2232, %v2233
      %v2235 = vrot.slane %v1402, 4
      %v2236 = vsel %vm462, %v2233, %v2235
      %v2237 = vrot.slane %v1403, 4
      %v2238 = vrot.slane %v1404, 4
      %v2239 = vsel %vm462, %v2237, %v2238
      %v2240 = vrot.slane %v1405, 4
      %v2241 = vsel %vm462, %v2238, %v2240
      %v2242 = vrot.slane %v1406, 4
      %v2243 = vrot.slane %v1407, 4
      %v2244 = vsel %vm462, %v2242, %v2243
      %v2245 = vrot.slane %v1408, 4
      %v2246 = vsel %vm462, %v2243, %v2245
      %v2247 = vrot.slane %v1409, 4
      %v2248 = vrot.slane %v1410, 4
      %v2249 = vsel %vm462, %v2247, %v2248
      %v2250 = vrot.slane %v1411, 4
      %v2251 = vsel %vm462, %v2248, %v2250
      %v2252 = vrot.slane %v1412, 4
      %v2253 = vrot.slane %v1413, 4
      %v2254 = vsel %vm462, %v2252, %v2253
      %v2255 = vrot.slane %v1414, 4
      %v2256 = vsel %vm462, %v2253, %v2255
      %v2257 = vrot.slane %v1415, 4
      %v2258 = vrot.slane %v1416, 4
      %v2259 = vsel %vm462, %v2257, %v2258
      %v2260 = vrot.slane %v1417, 4
      %v2261 = vsel %vm462, %v2258, %v2260
      %v2262 = vrot.slane %v1418, 4
      %v2263 = vrot.slane %v1419, 4
      %v2264 = vsel %vm462, %v2262, %v2263
      %v2265 = vrot.slane %v1420, 4
      %v2266 = vsel %vm462, %v2263, %v2265
      %v2267 = vrot.slane %v1421, 4
      %v2268 = vrot.slane %v1422, 4
      %v2269 = vsel %vm462, %v2267, %v2268
      %v2270 = vrot.slane %v1423, 4
      %v2271 = vsel %vm462, %v2268, %v2270
      %v2272 = vrot.slane %v1424, 4
      %v2273 = vrot.slane %v1425, 4
      %v2274 = vsel %vm462, %v2272, %v2273
      %v2275 = vrot.slane %v1426, 4
      %v2276 = vsel %vm462, %v2273, %v2275
      %v2277 = vrot.slane %v1427, 4
      %v2278 = vrot.slane %v1428, 4
      %v2279 = vsel %vm462, %v2277, %v2278
      %v2280 = vrot.slane %v1429, 4
      %v2281 = vsel %vm462, %v2278, %v2280
      %v2282 = vrot.slane %v1430, 4
      %v2283 = vrot.slane %v1431, 4
      %v2284 = vsel %vm462, %v2282, %v2283
      %v2285 = vrot.slane %v1432, 4
      %v2286 = vsel %vm462, %v2283, %v2285
      %v2287 = vrot.slane %v1433, 4
      %v2288 = vrot.slane %v1434, 4
      %v2289 = vsel %vm462, %v2287, %v2288
      %v2290 = vrot.slane %v1435, 4
      %v2291 = vsel %vm462, %v2288, %v2290
      %v2292 = vrot.slane %v1436, 4
      %v2293 = vrot.slane %v1437, 4
      %v2294 = vsel %vm462, %v2292, %v2293
      %v2295 = vrot.slane %v1438, 4
      %v2296 = vsel %vm462, %v2293, %v2295
      %v2297 = vld [vmem:[%s1 + $0x14] sm:$0xf]
      %v2298 = vsel %vm397, %v2219, 0
      %v2300 = vsel %vm397, %v2221, 0
      %v2302 = vsel %vm397, %v2224, 0
      %v2304 = vsel %vm397, %v2226, 0
      %v2306 = vsel %vm397, %v2229, 0
      %v2308 = vsel %vm397, %v2231, 0
      %v2310 = vsel %vm397, %v2234, 0
      %v2312 = vsel %vm397, %v2236, 0
      %v2314 = vsel %vm397, %v2239, 0
      %v2316 = vsel %vm397, %v2241, 0
      %v2318 = vsel %vm397, %v2244, 0
      %v2320 = vsel %vm397, %v2246, 0
      %v2322 = vsel %vm397, %v2249, 0
      %v2324 = vsel %vm397, %v2251, 0
      %v2326 = vsel %vm397, %v2254, 0
      %v2328 = vsel %vm397, %v2256, 0
      %v2330 = vsel %vm397, %v2259, 0
      %v2332 = vsel %vm397, %v2261, 0
      %v2334 = vsel %vm397, %v2264, 0
      %v2336 = vsel %vm397, %v2266, 0
      %v2338 = vsel %vm397, %v2269, 0
      %v2340 = vsel %vm397, %v2271, 0
      %v2342 = vsel %vm397, %v2274, 0
      %v2344 = vsel %vm397, %v2276, 0
      %v2346 = vsel %vm397, %v2279, 0
      %v2348 = vsel %vm397, %v2281, 0
      %v2350 = vsel %vm397, %v2284, 0
      %v2352 = vsel %vm397, %v2286, 0
      %v2354 = vsel %vm397, %v2289, 0
      %v2356 = vsel %vm397, %v2291, 0
      %v2358 = vsel %vm397, %v2294, 0
      %v2360 = vsel %vm397, %v2296, 0
      %v2363 = vsel %vm462, %v2297, 0
      %2365 = vmatprep.subr.mxu0 0.0
      %2366 = vmatpush1.msra.mxu0 %v2363
      %2367 = vmatprep.subr.mxu0 0.0
      %2368 = vmatpush1.msra.mxu0 0.0
      %2369 = vmatprep.subr.mxu0 0.0
      %2370 = vmatpush1.msra.mxu0 0.0
      %2371 = vmatprep.subr.mxu0 0.0
      %2372 = vmatpush1.msra.mxu0 0.0
      %2373 = vmatprep.subr.mxu0 0.0
      %2374 = vmatpush1.msra.mxu0 0.0
      %2375 = vmatprep.subr.mxu0 0.0
      %2376 = vmatpush1.msra.mxu0 0.0
      %2377 = vmatprep.subr.mxu0 0.0
      %2378 = vmatpush1.msra.mxu0 0.0
      %2379 = vmatprep.subr.mxu0 0.0
      %2380 = vmatpush1.msra.mxu0 0.0
      %2381 = vmatprep.subr.mxu0 0.0
      %2382 = vmatpush1.msra.mxu0 0.0
      %2383 = vmatprep.subr.mxu0 0.0
      %2384 = vmatpush1.msra.mxu0 0.0
      %2385 = vmatprep.subr.mxu0 0.0
      %2386 = vmatpush1.msra.mxu0 0.0
      %2387 = vmatprep.subr.mxu0 0.0
      %2388 = vmatpush1.msra.mxu0 0.0
      %2389 = vmatprep.subr.mxu0 0.0
      %2390 = vmatpush1.msra.mxu0 0.0
      %2391 = vmatprep.subr.mxu0 0.0
      %2392 = vmatpush1.msra.mxu0 0.0
      %2393 = vmatprep.subr.mxu0 0.0
      %2394 = vmatpush1.msra.mxu0 0.0
      %2395 = vmatprep.subr.mxu0 0.0
      %2396 = vmatpush1.msra.mxu0 0.0
      %2397 = vmatprep.subr.mxu0 0.0
      %2398 = vmatpush1.msra.mxu0 0.0
      %2399 = vmatprep.subr.mxu0 0.0
      %2400 = vmatpush1.msra.mxu0 0.0
      %2401 = vmatprep.subr.mxu0 0.0
      %2402 = vmatpush1.msra.mxu0 0.0
      %2403 = vmatprep.subr.mxu0 0.0
      %2404 = vmatpush1.msra.mxu0 0.0
      %2405 = vmatprep.subr.mxu0 0.0
      %2406 = vmatpush1.msra.mxu0 0.0
      %2407 = vmatprep.subr.mxu0 0.0
      %2408 = vmatpush1.msra.mxu0 0.0
      %2409 = vmatprep.subr.mxu0 0.0
      %2410 = vmatpush1.msra.mxu0 0.0
      %2411 = vmatprep.subr.mxu0 0.0
      %2412 = vmatpush1.msra.mxu0 0.0
      %2413 = vmatprep.subr.mxu0 0.0
      %2414 = vmatpush1.msra.mxu0 0.0
      %2415 = vmatprep.subr.mxu0 0.0
      %2416 = vmatpush1.msra.mxu0 0.0
      %2417 = vmatprep.subr.mxu0 0.0
      %2418 = vmatpush1.msra.mxu0 0.0
      %2419 = vmatprep.subr.mxu0 0.0
      %2420 = vmatpush1.msra.mxu0 0.0
      %2421 = vmatprep.subr.mxu0 0.0
      %2422 = vmatpush1.msra.mxu0 0.0
      %2423 = vmatprep.subr.mxu0 0.0
      %2424 = vmatpush1.msra.mxu0 0.0
      %2425 = vmatprep.subr.mxu0 0.0
      %2426 = vmatpush1.msra.mxu0 0.0
      %2427 = vmatprep.subr.mxu0 0.0
      %2428 = vmatpush1.msra.mxu0 0.0
      %2429 = vmatprep.mubr.f32.mxu0 0.0
      %2430 = vmatmul.mubr.f32.gmra.mrb[0].mxu0 %v2298
      %v2431 = vpop.f32.mrb[0].mxu0
      %v2432 = vadd.f32 0.0, %v2431
      %v2433 = vpop.f32.mrb[0].mxu0
      %2434 = vmatprep.mubr.f32.mxu0 0.0
      %2435 = vmatmul.mubr.f32.gmra.mrb[0].mxu0 %v2300
      %v2436 = vpop.f32.mrb[0].mxu0
      %v2437 = vadd.f32 0.0, %v2436
      %v2438 = vpop.f32.mrb[0].mxu0
      %2439 = vmatprep.mubr.f32.mxu0 0.0
      %2440 = vmatmul.mubr.f32.gmra.mrb[0].mxu0 %v2302
      %v2441 = vpop.f32.mrb[0].mxu0
      %v2442 = vadd.f32 0.0, %v2441
      %v2443 = vpop.f32.mrb[0].mxu0
      %2444 = vmatprep.mubr.f32.mxu0 0.0
      %2445 = vmatmul.mubr.f32.gmra.mrb[0].mxu0 %v2304
      %v2446 = vpop.f32.mrb[0].mxu0
      %v2447 = vadd.f32 0.0, %v2446
      %v2448 = vpop.f32.mrb[0].mxu0
      %2449 = vmatprep.mubr.f32.mxu0 0.0
      %2450 = vmatmul.mubr.f32.gmra.mrb[0].mxu0 %v2306
      %v2451 = vpop.f32.mrb[0].mxu0
      %v2452 = vadd.f32 0.0, %v2451
      %v2453 = vpop.f32.mrb[0].mxu0
      %2454 = vmatprep.mubr.f32.mxu0 0.0
      %2455 = vmatmul.mubr.f32.gmra.mrb[0].mxu0 %v2308
      %v2456 = vpop.f32.mrb[0].mxu0
      %v2457 = vadd.f32 0.0, %v2456
      %v2458 = vpop.f32.mrb[0].mxu0
      %2459 = vmatprep.mubr.f32.mxu0 0.0
      %2460 = vmatmul.mubr.f32.gmra.mrb[0].mxu0 %v2310
      %v2461 = vpop.f32.mrb[0].mxu0
      %v2462 = vadd.f32 0.0, %v2461
      %v2463 = vpop.f32.mrb[0].mxu0
      %2464 = vmatprep.mubr.f32.mxu0 0.0
      %2465 = vmatmul.mubr.f32.gmra.mrb[0].mxu0 %v2312
      %v2466 = vpop.f32.mrb[0].mxu0
      %v2467 = vadd.f32 0.0, %v2466
      %v2468 = vpop.f32.mrb[0].mxu0
      %2469 = vmatprep.mubr.f32.mxu0 0.0
      %2470 = vmatmul.mubr.f32.gmra.mrb[0].mxu0 %v2314
      %v2471 = vpop.f32.mrb[0].mxu0
      %v2472 = vadd.f32 0.0, %v2471
      %v2473 = vpop.f32.mrb[0].mxu0
      %2474 = vmatprep.mubr.f32.mxu0 0.0
      %2475 = vmatmul.mubr.f32.gmra.mrb[0].mxu0 %v2316
      %v2476 = vpop.f32.mrb[0].mxu0
      %v2477 = vadd.f32 0.0, %v2476
      %v2478 = vpop.f32.mrb[0].mxu0
      %2479 = vmatprep.mubr.f32.mxu0 0.0
      %2480 = vmatmul.mubr.f32.gmra.mrb[0].mxu0 %v2318
      %v2481 = vpop.f32.mrb[0].mxu0
      %v2482 = vadd.f32 0.0, %v2481
      %v2483 = vpop.f32.mrb[0].mxu0
      %2484 = vmatprep.mubr.f32.mxu0 0.0
      %2485 = vmatmul.mubr.f32.gmra.mrb[0].mxu0 %v2320
      %v2486 = vpop.f32.mrb[0].mxu0
      %v2487 = vadd.f32 0.0, %v2486
      %v2488 = vpop.f32.mrb[0].mxu0
      %2489 = vmatprep.mubr.f32.mxu0 0.0
      %2490 = vmatmul.mubr.f32.gmra.mrb[0].mxu0 %v2322
      %v2491 = vpop.f32.mrb[0].mxu0
      %v2492 = vadd.f32 0.0, %v2491
      %v2493 = vpop.f32.mrb[0].mxu0
      %2494 = vmatprep.mubr.f32.mxu0 0.0
      %2495 = vmatmul.mubr.f32.gmra.mrb[0].mxu0 %v2324
      %v2496 = vpop.f32.mrb[0].mxu0
      %v2497 = vadd.f32 0.0, %v2496
      %v2498 = vpop.f32.mrb[0].mxu0
      %2499 = vmatprep.mubr.f32.mxu0 0.0
      %2500 = vmatmul.mubr.f32.gmra.mrb[0].mxu0 %v2326
      %v2501 = vpop.f32.mrb[0].mxu0
      %v2502 = vadd.f32 0.0, %v2501
      %v2503 = vpop.f32.mrb[0].mxu0
      %2504 = vmatprep.mubr.f32.mxu0 0.0
      %2505 = vmatmul.mubr.f32.gmra.mrb[0].mxu0 %v2328
      %v2506 = vpop.f32.mrb[0].mxu0
      %v2507 = vadd.f32 0.0, %v2506
      %v2508 = vpop.f32.mrb[0].mxu0
      %2509 = vmatprep.mubr.f32.mxu0 0.0
      %2510 = vmatmul.mubr.f32.gmra.mrb[0].mxu0 %v2330
      %v2511 = vpop.f32.mrb[0].mxu0
      %v2512 = vadd.f32 0.0, %v2511
      %v2513 = vpop.f32.mrb[0].mxu0
      %2514 = vmatprep.mubr.f32.mxu0 0.0
      %2515 = vmatmul.mubr.f32.gmra.mrb[0].mxu0 %v2332
      %v2516 = vpop.f32.mrb[0].mxu0
      %v2517 = vadd.f32 0.0, %v2516
      %v2518 = vpop.f32.mrb[0].mxu0
      %2519 = vmatprep.mubr.f32.mxu0 0.0
      %2520 = vmatmul.mubr.f32.gmra.mrb[0].mxu0 %v2334
      %v2521 = vpop.f32.mrb[0].mxu0
      %v2522 = vadd.f32 0.0, %v2521
      %v2523 = vpop.f32.mrb[0].mxu0
      %2524 = vmatprep.mubr.f32.mxu0 0.0
      %2525 = vmatmul.mubr.f32.gmra.mrb[0].mxu0 %v2336
      %v2526 = vpop.f32.mrb[0].mxu0
      %v2527 = vadd.f32 0.0, %v2526
      %v2528 = vpop.f32.mrb[0].mxu0
      %2529 = vmatprep.mubr.f32.mxu0 0.0
      %2530 = vmatmul.mubr.f32.gmra.mrb[0].mxu0 %v2338
      %v2531 = vpop.f32.mrb[0].mxu0
      %v2532 = vadd.f32 0.0, %v2531
      %v2533 = vpop.f32.mrb[0].mxu0
      %2534 = vmatprep.mubr.f32.mxu0 0.0
      %2535 = vmatmul.mubr.f32.gmra.mrb[0].mxu0 %v2340
      %v2536 = vpop.f32.mrb[0].mxu0
      %v2537 = vadd.f32 0.0, %v2536
      %v2538 = vpop.f32.mrb[0].mxu0
      %2539 = vmatprep.mubr.f32.mxu0 0.0
      %2540 = vmatmul.mubr.f32.gmra.mrb[0].mxu0 %v2342
      %v2541 = vpop.f32.mrb[0].mxu0
      %v2542 = vadd.f32 0.0, %v2541
      %v2543 = vpop.f32.mrb[0].mxu0
      %2544 = vmatprep.mubr.f32.mxu0 0.0
      %2545 = vmatmul.mubr.f32.gmra.mrb[0].mxu0 %v2344
      %v2546 = vpop.f32.mrb[0].mxu0
      %v2547 = vadd.f32 0.0, %v2546
      %v2548 = vpop.f32.mrb[0].mxu0
      %2549 = vmatprep.mubr.f32.mxu0 0.0
      %2550 = vmatmul.mubr.f32.gmra.mrb[0].mxu0 %v2346
      %v2551 = vpop.f32.mrb[0].mxu0
      %v2552 = vadd.f32 0.0, %v2551
      %v2553 = vpop.f32.mrb[0].mxu0
      %2554 = vmatprep.mubr.f32.mxu0 0.0
      %2555 = vmatmul.mubr.f32.gmra.mrb[0].mxu0 %v2348
      %v2556 = vpop.f32.mrb[0].mxu0
      %v2557 = vadd.f32 0.0, %v2556
      %v2558 = vpop.f32.mrb[0].mxu0
      %2559 = vmatprep.mubr.f32.mxu0 0.0
      %2560 = vmatmul.mubr.f32.gmra.mrb[0].mxu0 %v2350
      %v2561 = vpop.f32.mrb[0].mxu0
      %v2562 = vadd.f32 0.0, %v2561
      %v2563 = vpop.f32.mrb[0].mxu0
      %2564 = vmatprep.mubr.f32.mxu0 0.0
      %2565 = vmatmul.mubr.f32.gmra.mrb[0].mxu0 %v2352
      %v2566 = vpop.f32.mrb[0].mxu0
      %v2567 = vadd.f32 0.0, %v2566
      %v2568 = vpop.f32.mrb[0].mxu0
      %2569 = vmatprep.mubr.f32.mxu0 0.0
      %2570 = vmatmul.mubr.f32.gmra.mrb[0].mxu0 %v2354
      %v2571 = vpop.f32.mrb[0].mxu0
      %v2572 = vadd.f32 0.0, %v2571
      %v2573 = vpop.f32.mrb[0].mxu0
      %2574 = vmatprep.mubr.f32.mxu0 0.0
      %2575 = vmatmul.mubr.f32.gmra.mrb[0].mxu0 %v2356
      %v2576 = vpop.f32.mrb[0].mxu0
      %v2577 = vadd.f32 0.0, %v2576
      %v2578 = vpop.f32.mrb[0].mxu0
      %2579 = vmatprep.mubr.f32.mxu0 0.0
      %2580 = vmatmul.mubr.f32.gmra.mrb[0].mxu0 %v2358
      %v2581 = vpop.f32.mrb[0].mxu0
      %v2582 = vadd.f32 0.0, %v2581
      %v2583 = vpop.f32.mrb[0].mxu0
      %2584 = vmatprep.mubr.f32.mxu0 0.0
      %2585 = vmatmul.mubr.f32.gmra.mrb[0].mxu0 %v2360
      %v2586 = vpop.f32.mrb[0].mxu0
      %v2587 = vadd.f32 0.0, %v2586
      %v2588 = vpop.f32.mrb[0].mxu0
      %2589 = vdwg.mxu0
      %v2590 = vadd.f32 %v2185, %v2432
      %v2591 = vadd.f32 %v2186, %v2437
      %v2592 = vadd.f32 %v2187, %v2442
      %v2593 = vadd.f32 %v2188, %v2447
      %v2594 = vadd.f32 %v2189, %v2452
      %v2595 = vadd.f32 %v2190, %v2457
      %v2596 = vadd.f32 %v2191, %v2462
      %v2597 = vadd.f32 %v2192, %v2467
      %v2598 = vadd.f32 %v2193, %v2472
      %v2599 = vadd.f32 %v2194, %v2477
      %v2600 = vadd.f32 %v2195, %v2482
      %v2601 = vadd.f32 %v2196, %v2487
      %v2602 = vadd.f32 %v2197, %v2492
      %v2603 = vadd.f32 %v2198, %v2497
      %v2604 = vadd.f32 %v2199, %v2502
      %v2605 = vadd.f32 %v2200, %v2507
      %v2606 = vadd.f32 %v2201, %v2512
      %v2607 = vadd.f32 %v2202, %v2517
      %v2608 = vadd.f32 %v2203, %v2522
      %v2609 = vadd.f32 %v2204, %v2527
      %v2610 = vadd.f32 %v2205, %v2532
      %v2611 = vadd.f32 %v2206, %v2537
      %v2612 = vadd.f32 %v2207, %v2542
      %v2613 = vadd.f32 %v2208, %v2547
      %v2614 = vadd.f32 %v2209, %v2552
      %v2615 = vadd.f32 %v2210, %v2557
      %v2616 = vadd.f32 %v2211, %v2562
      %v2617 = vadd.f32 %v2212, %v2567
      %v2618 = vadd.f32 %v2213, %v2572
      %v2619 = vadd.f32 %v2214, %v2577
      %v2620 = vadd.f32 %v2215, %v2582
      %v2621 = vadd.f32 %v2216, %v2587
      %s2622 = sadd.s32 %s215, 4
      %s2623 = smul.u32 %s2622, 24
      %s2624 = scalar_lea.vmem %s196, %s2623
      %v2625 = vld [vmem:[%s2624] sm:$0xff]
      %v2626 = vld [vmem:[%s2624 + $0x8] sm:$0xff]
      %v2627 = vld [vmem:[%s2624 + $0x10] sm:$0xf]
      %v2628 = vld [vmem:[%s2624 + $0x18] sm:$0xff]
      %v2629 = vld [vmem:[%s2624 + $0x20] sm:$0xff]
      %v2630 = vld [vmem:[%s2624 + $0x28] sm:$0xf]
      %v2631 = vld [vmem:[%s2624 + $0x30] sm:$0xff]
      %v2632 = vld [vmem:[%s2624 + $0x38] sm:$0xff]
      %v2633 = vld [vmem:[%s2624 + $0x40] sm:$0xf]
      %v2634 = vld [vmem:[%s2624 + $0x48] sm:$0xff]
      %v2635 = vld [vmem:[%s2624 + $0x50] sm:$0xff]
      %v2636 = vld [vmem:[%s2624 + $0x58] sm:$0xf]
      %v2637 = vld [vmem:[%s2624 + $0x60] sm:$0xff]
      %v2638 = vld [vmem:[%s2624 + $0x68] sm:$0xff]
      %v2639 = vld [vmem:[%s2624 + $0x70] sm:$0xf]
      %v2640 = vld [vmem:[%s2624 + $0x78] sm:$0xff]
      %v2641 = vld [vmem:[%s2624 + $0x80] sm:$0xff]
      %v2642 = vld [vmem:[%s2624 + $0x88] sm:$0xf]
      %v2643 = vld [vmem:[%s2624 + $0x90] sm:$0xff]
      %v2644 = vld [vmem:[%s2624 + $0x98] sm:$0xff]
      %v2645 = vld [vmem:[%s2624 + $0xa0] sm:$0xf]
      %v2646 = vld [vmem:[%s2624 + $0xa8] sm:$0xff]
      %v2647 = vld [vmem:[%s2624 + $0xb0] sm:$0xff]
      %v2648 = vld [vmem:[%s2624 + $0xb8] sm:$0xf]
      %v2649 = vld [vmem:[%s2624 + $0xc0] sm:$0xff]
      %v2650 = vld [vmem:[%s2624 + $0xc8] sm:$0xff]
      %v2651 = vld [vmem:[%s2624 + $0xd0] sm:$0xf]
      %v2652 = vld [vmem:[%s2624 + $0xd8] sm:$0xff]
      %v2653 = vld [vmem:[%s2624 + $0xe0] sm:$0xff]
      %v2654 = vld [vmem:[%s2624 + $0xe8] sm:$0xf]
      %v2655 = vld [vmem:[%s2624 + $0xf0] sm:$0xff]
      %v2656 = vld [vmem:[%s2624 + $0xf8] sm:$0xff]
      %v2657 = vld [vmem:[%s2624 + $0x100] sm:$0xf]
      %v2658 = vld [vmem:[%s2624 + $0x108] sm:$0xff]
      %v2659 = vld [vmem:[%s2624 + $0x110] sm:$0xff]
      %v2660 = vld [vmem:[%s2624 + $0x118] sm:$0xf]
      %v2661 = vld [vmem:[%s2624 + $0x120] sm:$0xff]
      %v2662 = vld [vmem:[%s2624 + $0x128] sm:$0xff]
      %v2663 = vld [vmem:[%s2624 + $0x130] sm:$0xf]
      %v2664 = vld [vmem:[%s2624 + $0x138] sm:$0xff]
      %v2665 = vld [vmem:[%s2624 + $0x140] sm:$0xff]
      %v2666 = vld [vmem:[%s2624 + $0x148] sm:$0xf]
      %v2667 = vld [vmem:[%s2624 + $0x150] sm:$0xff]
      %v2668 = vld [vmem:[%s2624 + $0x158] sm:$0xff]
      %v2669 = vld [vmem:[%s2624 + $0x160] sm:$0xf]
      %v2670 = vld [vmem:[%s2624 + $0x168] sm:$0xff]
      %v2671 = vld [vmem:[%s2624 + $0x170] sm:$0xff]
      %v2672 = vld [vmem:[%s2624 + $0x178] sm:$0xf]
      %v2673 = vld [vmem:[%s1 + $0x18] sm:$0xf]
      %v2675 = vsel %vm397, %v2625, 0
      %v2678 = vsel %vm397, %v2626, 0
      %v2681 = vsel %vm397, %v2628, 0
      %v2684 = vsel %vm397, %v2629, 0
      %v2687 = vsel %vm397, %v2631, 0
      %v2690 = vsel %vm397, %v2632, 0
      %v2693 = vsel %vm397, %v2634, 0
      %v2696 = vsel %vm397, %v2635, 0
      %v2699 = vsel %vm397, %v2637, 0
      %v2702 = vsel %vm397, %v2638, 0
      %v2705 = vsel %vm397, %v2640, 0
      %v2708 = vsel %vm397, %v2641, 0
      %v2711 = vsel %vm397, %v2643, 0
      %v2714 = vsel %vm397, %v2644, 0
      %v2717 = vsel %vm397, %v2646, 0
      %v2720 = vsel %vm397, %v2647, 0
      %v2723 = vsel %vm397, %v2649, 0
      %v2726 = vsel %vm397, %v2650, 0
      %v2729 = vsel %vm397, %v2652, 0
      %v2732 = vsel %vm397, %v2653, 0
      %v2735 = vsel %vm397, %v2655, 0
      %v2738 = vsel %vm397, %v2656, 0
      %v2741 = vsel %vm397, %v2658, 0
      %v2744 = vsel %vm397, %v2659, 0
      %v2747 = vsel %vm397, %v2661, 0
      %v2750 = vsel %vm397, %v2662, 0
      %v2753 = vsel %vm397, %v2664, 0
      %v2756 = vsel %vm397, %v2665, 0
      %v2759 = vsel %vm397, %v2667, 0
      %v2762 = vsel %vm397, %v2668, 0
      %v2765 = vsel %vm397, %v2670, 0
      %v2768 = vsel %vm397, %v2671, 0
      %v2771 = vsel %vm462, %v2673, 0
      %2773 = vmatprep.subr.mxu0 0.0
      %2774 = vmatpush1.msra.mxu0 %v2771
      %2775 = vmatprep.subr.mxu0 0.0
      %2776 = vmatpush1.msra.mxu0 0.0
      %2777 = vmatprep.subr.mxu0 0.0
      %2778 = vmatpush1.msra.mxu0 0.0
      %2779 = vmatprep.subr.mxu0 0.0
      %2780 = vmatpush1.msra.mxu0 0.0
      %2781 = vmatprep.subr.mxu0 0.0
      %2782 = vmatpush1.msra.mxu0 0.0
      %2783 = vmatprep.subr.mxu0 0.0
      %2784 = vmatpush1.msra.mxu0 0.0
      %2785 = vmatprep.subr.mxu0 0.0
      %2786 = vmatpush1.msra.mxu0 0.0
      %2787 = vmatprep.subr.mxu0 0.0
      %2788 = vmatpush1.msra.mxu0 0.0
      %2789 = vmatprep.subr.mxu0 0.0
      %2790 = vmatpush1.msra.mxu0 0.0
      %2791 = vmatprep.subr.mxu0 0.0
      %2792 = vmatpush1.msra.mxu0 0.0
      %2793 = vmatprep.subr.mxu0 0.0
      %2794 = vmatpush1.msra.mxu0 0.0
      %2795 = vmatprep.subr.mxu0 0.0
      %2796 = vmatpush1.msra.mxu0 0.0
      %2797 = vmatprep.subr.mxu0 0.0
      %2798 = vmatpush1.msra.mxu0 0.0
      %2799 = vmatprep.subr.mxu0 0.0
      %2800 = vmatpush1.msra.mxu0 0.0
      %2801 = vmatprep.subr.mxu0 0.0
      %2802 = vmatpush1.msra.mxu0 0.0
      %2803 = vmatprep.subr.mxu0 0.0
      %2804 = vmatpush1.msra.mxu0 0.0
      %2805 = vmatprep.subr.mxu0 0.0
      %2806 = vmatpush1.msra.mxu0 0.0
      %2807 = vmatprep.subr.mxu0 0.0
      %2808 = vmatpush1.msra.mxu0 0.0
      %2809 = vmatprep.subr.mxu0 0.0
      %2810 = vmatpush1.msra.mxu0 0.0
      %2811 = vmatprep.subr.mxu0 0.0
      %2812 = vmatpush1.msra.mxu0 0.0
      %2813 = vmatprep.subr.mxu0 0.0
      %2814 = vmatpush1.msra.mxu0 0.0
      %2815 = vmatprep.subr.mxu0 0.0
      %2816 = vmatpush1.msra.mxu0 0.0
      %2817 = vmatprep.subr.mxu0 0.0
      %2818 = vmatpush1.msra.mxu0 0.0
      %2819 = vmatprep.subr.mxu0 0.0
      %2820 = vmatpush1.msra.mxu0 0.0
      %2821 = vmatprep.subr.mxu0 0.0
      %2822 = vmatpush1.msra.mxu0 0.0
      %2823 = vmatprep.subr.mxu0 0.0
      %2824 = vmatpush1.msra.mxu0 0.0
      %2825 = vmatprep.subr.mxu0 0.0
      %2826 = vmatpush1.msra.mxu0 0.0
      %2827 = vmatprep.subr.mxu0 0.0
      %2828 = vmatpush1.msra.mxu0 0.0
      %2829 = vmatprep.subr.mxu0 0.0
      %2830 = vmatpush1.msra.mxu0 0.0
      %2831 = vmatprep.subr.mxu0 0.0
      %2832 = vmatpush1.msra.mxu0 0.0
      %2833 = vmatprep.subr.mxu0 0.0
      %2834 = vmatpush1.msra.mxu0 0.0
      %2835 = vmatprep.subr.mxu0 0.0
      %2836 = vmatpush1.msra.mxu0 0.0
      %2837 = vmatprep.mubr.f32.mxu0 0.0
      %2838 = vmatmul.mubr.f32.gmra.mrb[0].mxu0 %v2675
      %v2839 = vpop.f32.mrb[0].mxu0
      %v2840 = vadd.f32 0.0, %v2839
      %v2841 = vpop.f32.mrb[0].mxu0
      %2842 = vmatprep.mubr.f32.mxu0 0.0
      %2843 = vmatmul.mubr.f32.gmra.mrb[0].mxu0 %v2678
      %v2844 = vpop.f32.mrb[0].mxu0
      %v2845 = vadd.f32 0.0, %v2844
      %v2846 = vpop.f32.mrb[0].mxu0
      %2847 = vmatprep.mubr.f32.mxu0 0.0
      %2848 = vmatmul.mubr.f32.gmra.mrb[0].mxu0 %v2681
      %v2849 = vpop.f32.mrb[0].mxu0
      %v2850 = vadd.f32 0.0, %v2849
      %v2851 = vpop.f32.mrb[0].mxu0
      %2852 = vmatprep.mubr.f32.mxu0 0.0
      %2853 = vmatmul.mubr.f32.gmra.mrb[0].mxu0 %v2684
      %v2854 = vpop.f32.mrb[0].mxu0
      %v2855 = vadd.f32 0.0, %v2854
      %v2856 = vpop.f32.mrb[0].mxu0
      %2857 = vmatprep.mubr.f32.mxu0 0.0
      %2858 = vmatmul.mubr.f32.gmra.mrb[0].mxu0 %v2687
      %v2859 = vpop.f32.mrb[0].mxu0
      %v2860 = vadd.f32 0.0, %v2859
      %v2861 = vpop.f32.mrb[0].mxu0
      %2862 = vmatprep.mubr.f32.mxu0 0.0
      %2863 = vmatmul.mubr.f32.gmra.mrb[0].mxu0 %v2690
      %v2864 = vpop.f32.mrb[0].mxu0
      %v2865 = vadd.f32 0.0, %v2864
      %v2866 = vpop.f32.mrb[0].mxu0
      %2867 = vmatprep.mubr.f32.mxu0 0.0
      %2868 = vmatmul.mubr.f32.gmra.mrb[0].mxu0 %v2693
      %v2869 = vpop.f32.mrb[0].mxu0
      %v2870 = vadd.f32 0.0, %v2869
      %v2871 = vpop.f32.mrb[0].mxu0
      %2872 = vmatprep.mubr.f32.mxu0 0.0
      %2873 = vmatmul.mubr.f32.gmra.mrb[0].mxu0 %v2696
      %v2874 = vpop.f32.mrb[0].mxu0
      %v2875 = vadd.f32 0.0, %v2874
      %v2876 = vpop.f32.mrb[0].mxu0
      %2877 = vmatprep.mubr.f32.mxu0 0.0
      %2878 = vmatmul.mubr.f32.gmra.mrb[0].mxu0 %v2699
      %v2879 = vpop.f32.mrb[0].mxu0
      %v2880 = vadd.f32 0.0, %v2879
      %v2881 = vpop.f32.mrb[0].mxu0
      %2882 = vmatprep.mubr.f32.mxu0 0.0
      %2883 = vmatmul.mubr.f32.gmra.mrb[0].mxu0 %v2702
      %v2884 = vpop.f32.mrb[0].mxu0
      %v2885 = vadd.f32 0.0, %v2884
      %v2886 = vpop.f32.mrb[0].mxu0
      %2887 = vmatprep.mubr.f32.mxu0 0.0
      %2888 = vmatmul.mubr.f32.gmra.mrb[0].mxu0 %v2705
      %v2889 = vpop.f32.mrb[0].mxu0
      %v2890 = vadd.f32 0.0, %v2889
      %v2891 = vpop.f32.mrb[0].mxu0
      %2892 = vmatprep.mubr.f32.mxu0 0.0
      %2893 = vmatmul.mubr.f32.gmra.mrb[0].mxu0 %v2708
      %v2894 = vpop.f32.mrb[0].mxu0
      %v2895 = vadd.f32 0.0, %v2894
      %v2896 = vpop.f32.mrb[0].mxu0
      %2897 = vmatprep.mubr.f32.mxu0 0.0
      %2898 = vmatmul.mubr.f32.gmra.mrb[0].mxu0 %v2711
      %v2899 = vpop.f32.mrb[0].mxu0
      %v2900 = vadd.f32 0.0, %v2899
      %v2901 = vpop.f32.mrb[0].mxu0
      %2902 = vmatprep.mubr.f32.mxu0 0.0
      %2903 = vmatmul.mubr.f32.gmra.mrb[0].mxu0 %v2714
      %v2904 = vpop.f32.mrb[0].mxu0
      %v2905 = vadd.f32 0.0, %v2904
      %v2906 = vpop.f32.mrb[0].mxu0
      %2907 = vmatprep.mubr.f32.mxu0 0.0
      %2908 = vmatmul.mubr.f32.gmra.mrb[0].mxu0 %v2717
      %v2909 = vpop.f32.mrb[0].mxu0
      %v2910 = vadd.f32 0.0, %v2909
      %v2911 = vpop.f32.mrb[0].mxu0
      %2912 = vmatprep.mubr.f32.mxu0 0.0
      %2913 = vmatmul.mubr.f32.gmra.mrb[0].mxu0 %v2720
      %v2914 = vpop.f32.mrb[0].mxu0
      %v2915 = vadd.f32 0.0, %v2914
      %v2916 = vpop.f32.mrb[0].mxu0
      %2917 = vmatprep.mubr.f32.mxu0 0.0
      %2918 = vmatmul.mubr.f32.gmra.mrb[0].mxu0 %v2723
      %v2919 = vpop.f32.mrb[0].mxu0
      %v2920 = vadd.f32 0.0, %v2919
      %v2921 = vpop.f32.mrb[0].mxu0
      %2922 = vmatprep.mubr.f32.mxu0 0.0
      %2923 = vmatmul.mubr.f32.gmra.mrb[0].mxu0 %v2726
      %v2924 = vpop.f32.mrb[0].mxu0
      %v2925 = vadd.f32 0.0, %v2924
      %v2926 = vpop.f32.mrb[0].mxu0
      %2927 = vmatprep.mubr.f32.mxu0 0.0
      %2928 = vmatmul.mubr.f32.gmra.mrb[0].mxu0 %v2729
      %v2929 = vpop.f32.mrb[0].mxu0
      %v2930 = vadd.f32 0.0, %v2929
      %v2931 = vpop.f32.mrb[0].mxu0
      %2932 = vmatprep.mubr.f32.mxu0 0.0
      %2933 = vmatmul.mubr.f32.gmra.mrb[0].mxu0 %v2732
      %v2934 = vpop.f32.mrb[0].mxu0
      %v2935 = vadd.f32 0.0, %v2934
      %v2936 = vpop.f32.mrb[0].mxu0
      %2937 = vmatprep.mubr.f32.mxu0 0.0
      %2938 = vmatmul.mubr.f32.gmra.mrb[0].mxu0 %v2735
      %v2939 = vpop.f32.mrb[0].mxu0
      %v2940 = vadd.f32 0.0, %v2939
      %v2941 = vpop.f32.mrb[0].mxu0
      %2942 = vmatprep.mubr.f32.mxu0 0.0
      %2943 = vmatmul.mubr.f32.gmra.mrb[0].mxu0 %v2738
      %v2944 = vpop.f32.mrb[0].mxu0
      %v2945 = vadd.f32 0.0, %v2944
      %v2946 = vpop.f32.mrb[0].mxu0
      %2947 = vmatprep.mubr.f32.mxu0 0.0
      %2948 = vmatmul.mubr.f32.gmra.mrb[0].mxu0 %v2741
      %v2949 = vpop.f32.mrb[0].mxu0
      %v2950 = vadd.f32 0.0, %v2949
      %v2951 = vpop.f32.mrb[0].mxu0
      %2952 = vmatprep.mubr.f32.mxu0 0.0
      %2953 = vmatmul.mubr.f32.gmra.mrb[0].mxu0 %v2744
      %v2954 = vpop.f32.mrb[0].mxu0
      %v2955 = vadd.f32 0.0, %v2954
      %v2956 = vpop.f32.mrb[0].mxu0
      %2957 = vmatprep.mubr.f32.mxu0 0.0
      %2958 = vmatmul.mubr.f32.gmra.mrb[0].mxu0 %v2747
      %v2959 = vpop.f32.mrb[0].mxu0
      %v2960 = vadd.f32 0.0, %v2959
      %v2961 = vpop.f32.mrb[0].mxu0
      %2962 = vmatprep.mubr.f32.mxu0 0.0
      %2963 = vmatmul.mubr.f32.gmra.mrb[0].mxu0 %v2750
      %v2964 = vpop.f32.mrb[0].mxu0
      %v2965 = vadd.f32 0.0, %v2964
      %v2966 = vpop.f32.mrb[0].mxu0
      %2967 = vmatprep.mubr.f32.mxu0 0.0
      %2968 = vmatmul.mubr.f32.gmra.mrb[0].mxu0 %v2753
      %v2969 = vpop.f32.mrb[0].mxu0
      %v2970 = vadd.f32 0.0, %v2969
      %v2971 = vpop.f32.mrb[0].mxu0
      %2972 = vmatprep.mubr.f32.mxu0 0.0
      %2973 = vmatmul.mubr.f32.gmra.mrb[0].mxu0 %v2756
      %v2974 = vpop.f32.mrb[0].mxu0
      %v2975 = vadd.f32 0.0, %v2974
      %v2976 = vpop.f32.mrb[0].mxu0
      %2977 = vmatprep.mubr.f32.mxu0 0.0
      %2978 = vmatmul.mubr.f32.gmra.mrb[0].mxu0 %v2759
      %v2979 = vpop.f32.mrb[0].mxu0
      %v2980 = vadd.f32 0.0, %v2979
      %v2981 = vpop.f32.mrb[0].mxu0
      %2982 = vmatprep.mubr.f32.mxu0 0.0
      %2983 = vmatmul.mubr.f32.gmra.mrb[0].mxu0 %v2762
      %v2984 = vpop.f32.mrb[0].mxu0
      %v2985 = vadd.f32 0.0, %v2984
      %v2986 = vpop.f32.mrb[0].mxu0
      %2987 = vmatprep.mubr.f32.mxu0 0.0
      %2988 = vmatmul.mubr.f32.gmra.mrb[0].mxu0 %v2765
      %v2989 = vpop.f32.mrb[0].mxu0
      %v2990 = vadd.f32 0.0, %v2989
      %v2991 = vpop.f32.mrb[0].mxu0
      %2992 = vmatprep.mubr.f32.mxu0 0.0
      %2993 = vmatmul.mubr.f32.gmra.mrb[0].mxu0 %v2768
      %v2994 = vpop.f32.mrb[0].mxu0
      %v2995 = vadd.f32 0.0, %v2994
      %v2996 = vpop.f32.mrb[0].mxu0
      %2997 = vdwg.mxu0
      %v2998 = vadd.f32 %v2590, %v2840
      %v2999 = vadd.f32 %v2591, %v2845
      %v3000 = vadd.f32 %v2592, %v2850
      %v3001 = vadd.f32 %v2593, %v2855
      %v3002 = vadd.f32 %v2594, %v2860
      %v3003 = vadd.f32 %v2595, %v2865
      %v3004 = vadd.f32 %v2596, %v2870
      %v3005 = vadd.f32 %v2597, %v2875
      %v3006 = vadd.f32 %v2598, %v2880
      %v3007 = vadd.f32 %v2599, %v2885
      %v3008 = vadd.f32 %v2600, %v2890
      %v3009 = vadd.f32 %v2601, %v2895
      %v3010 = vadd.f32 %v2602, %v2900
      %v3011 = vadd.f32 %v2603, %v2905
      %v3012 = vadd.f32 %v2604, %v2910
      %v3013 = vadd.f32 %v2605, %v2915
      %v3014 = vadd.f32 %v2606, %v2920
      %v3015 = vadd.f32 %v2607, %v2925
      %v3016 = vadd.f32 %v2608, %v2930
      %v3017 = vadd.f32 %v2609, %v2935
      %v3018 = vadd.f32 %v2610, %v2940
      %v3019 = vadd.f32 %v2611, %v2945
      %v3020 = vadd.f32 %v2612, %v2950
      %v3021 = vadd.f32 %v2613, %v2955
      %v3022 = vadd.f32 %v2614, %v2960
      %v3023 = vadd.f32 %v2615, %v2965
      %v3024 = vadd.f32 %v2616, %v2970
      %v3025 = vadd.f32 %v2617, %v2975
      %v3026 = vadd.f32 %v2618, %v2980
      %v3027 = vadd.f32 %v2619, %v2985
      %v3028 = vadd.f32 %v2620, %v2990
      %v3029 = vadd.f32 %v2621, %v2995
      %v3046 = vrot.slane %v2625, 2
      %v3047 = vrot.slane %v2626, 2
      %v3048 = vsel %vm315, %v3046, %v3047
      %v3049 = vrot.slane %v2627, 2
      %v3050 = vsel %vm315, %v3047, %v3049
      %v3051 = vrot.slane %v2628, 2
      %v3052 = vrot.slane %v2629, 2
      %v3053 = vsel %vm315, %v3051, %v3052
      %v3054 = vrot.slane %v2630, 2
      %v3055 = vsel %vm315, %v3052, %v3054
      %v3056 = vrot.slane %v2631, 2
      %v3057 = vrot.slane %v2632, 2
      %v3058 = vsel %vm315, %v3056, %v3057
      %v3059 = vrot.slane %v2633, 2
      %v3060 = vsel %vm315, %v3057, %v3059
      %v3061 = vrot.slane %v2634, 2
      %v3062 = vrot.slane %v2635, 2
      %v3063 = vsel %vm315, %v3061, %v3062
      %v3064 = vrot.slane %v2636, 2
      %v3065 = vsel %vm315, %v3062, %v3064
      %v3066 = vrot.slane %v2637, 2
      %v3067 = vrot.slane %v2638, 2
      %v3068 = vsel %vm315, %v3066, %v3067
      %v3069 = vrot.slane %v2639, 2
      %v3070 = vsel %vm315, %v3067, %v3069
      %v3071 = vrot.slane %v2640, 2
      %v3072 = vrot.slane %v2641, 2
      %v3073 = vsel %vm315, %v3071, %v3072
      %v3074 = vrot.slane %v2642, 2
      %v3075 = vsel %vm315, %v3072, %v3074
      %v3076 = vrot.slane %v2643, 2
      %v3077 = vrot.slane %v2644, 2
      %v3078 = vsel %vm315, %v3076, %v3077
      %v3079 = vrot.slane %v2645, 2
      %v3080 = vsel %vm315, %v3077, %v3079
      %v3081 = vrot.slane %v2646, 2
      %v3082 = vrot.slane %v2647, 2
      %v3083 = vsel %vm315, %v3081, %v3082
      %v3084 = vrot.slane %v2648, 2
      %v3085 = vsel %vm315, %v3082, %v3084
      %v3086 = vrot.slane %v2649, 2
      %v3087 = vrot.slane %v2650, 2
      %v3088 = vsel %vm315, %v3086, %v3087
      %v3089 = vrot.slane %v2651, 2
      %v3090 = vsel %vm315, %v3087, %v3089
      %v3091 = vrot.slane %v2652, 2
      %v3092 = vrot.slane %v2653, 2
      %v3093 = vsel %vm315, %v3091, %v3092
      %v3094 = vrot.slane %v2654, 2
      %v3095 = vsel %vm315, %v3092, %v3094
      %v3096 = vrot.slane %v2655, 2
      %v3097 = vrot.slane %v2656, 2
      %v3098 = vsel %vm315, %v3096, %v3097
      %v3099 = vrot.slane %v2657, 2
      %v3100 = vsel %vm315, %v3097, %v3099
      %v3101 = vrot.slane %v2658, 2
      %v3102 = vrot.slane %v2659, 2
      %v3103 = vsel %vm315, %v3101, %v3102
      %v3104 = vrot.slane %v2660, 2
      %v3105 = vsel %vm315, %v3102, %v3104
      %v3106 = vrot.slane %v2661, 2
      %v3107 = vrot.slane %v2662, 2
      %v3108 = vsel %vm315, %v3106, %v3107
      %v3109 = vrot.slane %v2663, 2
      %v3110 = vsel %vm315, %v3107, %v3109
      %v3111 = vrot.slane %v2664, 2
      %v3112 = vrot.slane %v2665, 2
      %v3113 = vsel %vm315, %v3111, %v3112
      %v3114 = vrot.slane %v2666, 2
      %v3115 = vsel %vm315, %v3112, %v3114
      %v3116 = vrot.slane %v2667, 2
      %v3117 = vrot.slane %v2668, 2
      %v3118 = vsel %vm315, %v3116, %v3117
      %v3119 = vrot.slane %v2669, 2
      %v3120 = vsel %vm315, %v3117, %v3119
      %v3121 = vrot.slane %v2670, 2
      %v3122 = vrot.slane %v2671, 2
      %v3123 = vsel %vm315, %v3121, %v3122
      %v3124 = vrot.slane %v2672, 2
      %v3125 = vsel %vm315, %v3122, %v3124
      %v3126 = vld [vmem:[%s1 + $0x1c] sm:$0xf]
      %v3127 = vsel %vm397, %v3048, 0
      %v3129 = vsel %vm397, %v3050, 0
      %v3131 = vsel %vm397, %v3053, 0
      %v3133 = vsel %vm397, %v3055, 0
      %v3135 = vsel %vm397, %v3058, 0
      %v3137 = vsel %vm397, %v3060, 0
      %v3139 = vsel %vm397, %v3063, 0
      %v3141 = vsel %vm397, %v3065, 0
      %v3143 = vsel %vm397, %v3068, 0
      %v3145 = vsel %vm397, %v3070, 0
      %v3147 = vsel %vm397, %v3073, 0
      %v3149 = vsel %vm397, %v3075, 0
      %v3151 = vsel %vm397, %v3078, 0
      %v3153 = vsel %vm397, %v3080, 0
      %v3155 = vsel %vm397, %v3083, 0
      %v3157 = vsel %vm397, %v3085, 0
      %v3159 = vsel %vm397, %v3088, 0
      %v3161 = vsel %vm397, %v3090, 0
      %v3163 = vsel %vm397, %v3093, 0
      %v3165 = vsel %vm397, %v3095, 0
      %v3167 = vsel %vm397, %v3098, 0
      %v3169 = vsel %vm397, %v3100, 0
      %v3171 = vsel %vm397, %v3103, 0
      %v3173 = vsel %vm397, %v3105, 0
      %v3175 = vsel %vm397, %v3108, 0
      %v3177 = vsel %vm397, %v3110, 0
      %v3179 = vsel %vm397, %v3113, 0
      %v3181 = vsel %vm397, %v3115, 0
      %v3183 = vsel %vm397, %v3118, 0
      %v3185 = vsel %vm397, %v3120, 0
      %v3187 = vsel %vm397, %v3123, 0
      %v3189 = vsel %vm397, %v3125, 0
      %v3192 = vsel %vm462, %v3126, 0
      %3194 = vmatprep.subr.mxu0 0.0
      %3195 = vmatpush1.msra.mxu0 %v3192
      %3196 = vmatprep.subr.mxu0 0.0
      %3197 = vmatpush1.msra.mxu0 0.0
      %3198 = vmatprep.subr.mxu0 0.0
      %3199 = vmatpush1.msra.mxu0 0.0
      %3200 = vmatprep.subr.mxu0 0.0
      %3201 = vmatpush1.msra.mxu0 0.0
      %3202 = vmatprep.subr.mxu0 0.0
      %3203 = vmatpush1.msra.mxu0 0.0
      %3204 = vmatprep.subr.mxu0 0.0
      %3205 = vmatpush1.msra.mxu0 0.0
      %3206 = vmatprep.subr.mxu0 0.0
      %3207 = vmatpush1.msra.mxu0 0.0
      %3208 = vmatprep.subr.mxu0 0.0
      %3209 = vmatpush1.msra.mxu0 0.0
      %3210 = vmatprep.subr.mxu0 0.0
      %3211 = vmatpush1.msra.mxu0 0.0
      %3212 = vmatprep.subr.mxu0 0.0
      %3213 = vmatpush1.msra.mxu0 0.0
      %3214 = vmatprep.subr.mxu0 0.0
      %3215 = vmatpush1.msra.mxu0 0.0
      %3216 = vmatprep.subr.mxu0 0.0
      %3217 = vmatpush1.msra.mxu0 0.0
      %3218 = vmatprep.subr.mxu0 0.0
      %3219 = vmatpush1.msra.mxu0 0.0
      %3220 = vmatprep.subr.mxu0 0.0
      %3221 = vmatpush1.msra.mxu0 0.0
      %3222 = vmatprep.subr.mxu0 0.0
      %3223 = vmatpush1.msra.mxu0 0.0
      %3224 = vmatprep.subr.mxu0 0.0
      %3225 = vmatpush1.msra.mxu0 0.0
      %3226 = vmatprep.subr.mxu0 0.0
      %3227 = vmatpush1.msra.mxu0 0.0
      %3228 = vmatprep.subr.mxu0 0.0
      %3229 = vmatpush1.msra.mxu0 0.0
      %3230 = vmatprep.subr.mxu0 0.0
      %3231 = vmatpush1.msra.mxu0 0.0
      %3232 = vmatprep.subr.mxu0 0.0
      %3233 = vmatpush1.msra.mxu0 0.0
      %3234 = vmatprep.subr.mxu0 0.0
      %3235 = vmatpush1.msra.mxu0 0.0
      %3236 = vmatprep.subr.mxu0 0.0
      %3237 = vmatpush1.msra.mxu0 0.0
      %3238 = vmatprep.subr.mxu0 0.0
      %3239 = vmatpush1.msra.mxu0 0.0
      %3240 = vmatprep.subr.mxu0 0.0
      %3241 = vmatpush1.msra.mxu0 0.0
      %3242 = vmatprep.subr.mxu0 0.0
      %3243 = vmatpush1.msra.mxu0 0.0
      %3244 = vmatprep.subr.mxu0 0.0
      %3245 = vmatpush1.msra.mxu0 0.0
      %3246 = vmatprep.subr.mxu0 0.0
      %3247 = vmatpush1.msra.mxu0 0.0
      %3248 = vmatprep.subr.mxu0 0.0
      %3249 = vmatpush1.msra.mxu0 0.0
      %3250 = vmatprep.subr.mxu0 0.0
      %3251 = vmatpush1.msra.mxu0 0.0
      %3252 = vmatprep.subr.mxu0 0.0
      %3253 = vmatpush1.msra.mxu0 0.0
      %3254 = vmatprep.subr.mxu0 0.0
      %3255 = vmatpush1.msra.mxu0 0.0
      %3256 = vmatprep.subr.mxu0 0.0
      %3257 = vmatpush1.msra.mxu0 0.0
      %3258 = vmatprep.mubr.f32.mxu0 0.0
      %3259 = vmatmul.mubr.f32.gmra.mrb[0].mxu0 %v3127
      %v3260 = vpop.f32.mrb[0].mxu0
      %v3261 = vadd.f32 0.0, %v3260
      %v3262 = vpop.f32.mrb[0].mxu0
      %3263 = vmatprep.mubr.f32.mxu0 0.0
      %3264 = vmatmul.mubr.f32.gmra.mrb[0].mxu0 %v3129
      %v3265 = vpop.f32.mrb[0].mxu0
      %v3266 = vadd.f32 0.0, %v3265
      %v3267 = vpop.f32.mrb[0].mxu0
      %3268 = vmatprep.mubr.f32.mxu0 0.0
      %3269 = vmatmul.mubr.f32.gmra.mrb[0].mxu0 %v3131
      %v3270 = vpop.f32.mrb[0].mxu0
      %v3271 = vadd.f32 0.0, %v3270
      %v3272 = vpop.f32.mrb[0].mxu0
      %3273 = vmatprep.mubr.f32.mxu0 0.0
      %3274 = vmatmul.mubr.f32.gmra.mrb[0].mxu0 %v3133
      %v3275 = vpop.f32.mrb[0].mxu0
      %v3276 = vadd.f32 0.0, %v3275
      %v3277 = vpop.f32.mrb[0].mxu0
      %3278 = vmatprep.mubr.f32.mxu0 0.0
      %3279 = vmatmul.mubr.f32.gmra.mrb[0].mxu0 %v3135
      %v3280 = vpop.f32.mrb[0].mxu0
      %v3281 = vadd.f32 0.0, %v3280
      %v3282 = vpop.f32.mrb[0].mxu0
      %3283 = vmatprep.mubr.f32.mxu0 0.0
      %3284 = vmatmul.mubr.f32.gmra.mrb[0].mxu0 %v3137
      %v3285 = vpop.f32.mrb[0].mxu0
      %v3286 = vadd.f32 0.0, %v3285
      %v3287 = vpop.f32.mrb[0].mxu0
      %3288 = vmatprep.mubr.f32.mxu0 0.0
      %3289 = vmatmul.mubr.f32.gmra.mrb[0].mxu0 %v3139
      %v3290 = vpop.f32.mrb[0].mxu0
      %v3291 = vadd.f32 0.0, %v3290
      %v3292 = vpop.f32.mrb[0].mxu0
      %3293 = vmatprep.mubr.f32.mxu0 0.0
      %3294 = vmatmul.mubr.f32.gmra.mrb[0].mxu0 %v3141
      %v3295 = vpop.f32.mrb[0].mxu0
      %v3296 = vadd.f32 0.0, %v3295
      %v3297 = vpop.f32.mrb[0].mxu0
      %3298 = vmatprep.mubr.f32.mxu0 0.0
      %3299 = vmatmul.mubr.f32.gmra.mrb[0].mxu0 %v3143
      %v3300 = vpop.f32.mrb[0].mxu0
      %v3301 = vadd.f32 0.0, %v3300
      %v3302 = vpop.f32.mrb[0].mxu0
      %3303 = vmatprep.mubr.f32.mxu0 0.0
      %3304 = vmatmul.mubr.f32.gmra.mrb[0].mxu0 %v3145
      %v3305 = vpop.f32.mrb[0].mxu0
      %v3306 = vadd.f32 0.0, %v3305
      %v3307 = vpop.f32.mrb[0].mxu0
      %3308 = vmatprep.mubr.f32.mxu0 0.0
      %3309 = vmatmul.mubr.f32.gmra.mrb[0].mxu0 %v3147
      %v3310 = vpop.f32.mrb[0].mxu0
      %v3311 = vadd.f32 0.0, %v3310
      %v3312 = vpop.f32.mrb[0].mxu0
      %3313 = vmatprep.mubr.f32.mxu0 0.0
      %3314 = vmatmul.mubr.f32.gmra.mrb[0].mxu0 %v3149
      %v3315 = vpop.f32.mrb[0].mxu0
      %v3316 = vadd.f32 0.0, %v3315
      %v3317 = vpop.f32.mrb[0].mxu0
      %3318 = vmatprep.mubr.f32.mxu0 0.0
      %3319 = vmatmul.mubr.f32.gmra.mrb[0].mxu0 %v3151
      %v3320 = vpop.f32.mrb[0].mxu0
      %v3321 = vadd.f32 0.0, %v3320
      %v3322 = vpop.f32.mrb[0].mxu0
      %3323 = vmatprep.mubr.f32.mxu0 0.0
      %3324 = vmatmul.mubr.f32.gmra.mrb[0].mxu0 %v3153
      %v3325 = vpop.f32.mrb[0].mxu0
      %v3326 = vadd.f32 0.0, %v3325
      %v3327 = vpop.f32.mrb[0].mxu0
      %3328 = vmatprep.mubr.f32.mxu0 0.0
      %3329 = vmatmul.mubr.f32.gmra.mrb[0].mxu0 %v3155
      %v3330 = vpop.f32.mrb[0].mxu0
      %v3331 = vadd.f32 0.0, %v3330
      %v3332 = vpop.f32.mrb[0].mxu0
      %3333 = vmatprep.mubr.f32.mxu0 0.0
      %3334 = vmatmul.mubr.f32.gmra.mrb[0].mxu0 %v3157
      %v3335 = vpop.f32.mrb[0].mxu0
      %v3336 = vadd.f32 0.0, %v3335
      %v3337 = vpop.f32.mrb[0].mxu0
      %3338 = vmatprep.mubr.f32.mxu0 0.0
      %3339 = vmatmul.mubr.f32.gmra.mrb[0].mxu0 %v3159
      %v3340 = vpop.f32.mrb[0].mxu0
      %v3341 = vadd.f32 0.0, %v3340
      %v3342 = vpop.f32.mrb[0].mxu0
      %3343 = vmatprep.mubr.f32.mxu0 0.0
      %3344 = vmatmul.mubr.f32.gmra.mrb[0].mxu0 %v3161
      %v3345 = vpop.f32.mrb[0].mxu0
      %v3346 = vadd.f32 0.0, %v3345
      %v3347 = vpop.f32.mrb[0].mxu0
      %3348 = vmatprep.mubr.f32.mxu0 0.0
      %3349 = vmatmul.mubr.f32.gmra.mrb[0].mxu0 %v3163
      %v3350 = vpop.f32.mrb[0].mxu0
      %v3351 = vadd.f32 0.0, %v3350
      %v3352 = vpop.f32.mrb[0].mxu0
      %3353 = vmatprep.mubr.f32.mxu0 0.0
      %3354 = vmatmul.mubr.f32.gmra.mrb[0].mxu0 %v3165
      %v3355 = vpop.f32.mrb[0].mxu0
      %v3356 = vadd.f32 0.0, %v3355
      %v3357 = vpop.f32.mrb[0].mxu0
      %3358 = vmatprep.mubr.f32.mxu0 0.0
      %3359 = vmatmul.mubr.f32.gmra.mrb[0].mxu0 %v3167
      %v3360 = vpop.f32.mrb[0].mxu0
      %v3361 = vadd.f32 0.0, %v3360
      %v3362 = vpop.f32.mrb[0].mxu0
      %3363 = vmatprep.mubr.f32.mxu0 0.0
      %3364 = vmatmul.mubr.f32.gmra.mrb[0].mxu0 %v3169
      %v3365 = vpop.f32.mrb[0].mxu0
      %v3366 = vadd.f32 0.0, %v3365
      %v3367 = vpop.f32.mrb[0].mxu0
      %3368 = vmatprep.mubr.f32.mxu0 0.0
      %3369 = vmatmul.mubr.f32.gmra.mrb[0].mxu0 %v3171
      %v3370 = vpop.f32.mrb[0].mxu0
      %v3371 = vadd.f32 0.0, %v3370
      %v3372 = vpop.f32.mrb[0].mxu0
      %3373 = vmatprep.mubr.f32.mxu0 0.0
      %3374 = vmatmul.mubr.f32.gmra.mrb[0].mxu0 %v3173
      %v3375 = vpop.f32.mrb[0].mxu0
      %v3376 = vadd.f32 0.0, %v3375
      %v3377 = vpop.f32.mrb[0].mxu0
      %3378 = vmatprep.mubr.f32.mxu0 0.0
      %3379 = vmatmul.mubr.f32.gmra.mrb[0].mxu0 %v3175
      %v3380 = vpop.f32.mrb[0].mxu0
      %v3381 = vadd.f32 0.0, %v3380
      %v3382 = vpop.f32.mrb[0].mxu0
      %3383 = vmatprep.mubr.f32.mxu0 0.0
      %3384 = vmatmul.mubr.f32.gmra.mrb[0].mxu0 %v3177
      %v3385 = vpop.f32.mrb[0].mxu0
      %v3386 = vadd.f32 0.0, %v3385
      %v3387 = vpop.f32.mrb[0].mxu0
      %3388 = vmatprep.mubr.f32.mxu0 0.0
      %3389 = vmatmul.mubr.f32.gmra.mrb[0].mxu0 %v3179
      %v3390 = vpop.f32.mrb[0].mxu0
      %v3391 = vadd.f32 0.0, %v3390
      %v3392 = vpop.f32.mrb[0].mxu0
      %3393 = vmatprep.mubr.f32.mxu0 0.0
      %3394 = vmatmul.mubr.f32.gmra.mrb[0].mxu0 %v3181
      %v3395 = vpop.f32.mrb[0].mxu0
      %v3396 = vadd.f32 0.0, %v3395
      %v3397 = vpop.f32.mrb[0].mxu0
      %3398 = vmatprep.mubr.f32.mxu0 0.0
      %3399 = vmatmul.mubr.f32.gmra.mrb[0].mxu0 %v3183
      %v3400 = vpop.f32.mrb[0].mxu0
      %v3401 = vadd.f32 0.0, %v3400
      %v3402 = vpop.f32.mrb[0].mxu0
      %3403 = vmatprep.mubr.f32.mxu0 0.0
      %3404 = vmatmul.mubr.f32.gmra.mrb[0].mxu0 %v3185
      %v3405 = vpop.f32.mrb[0].mxu0
      %v3406 = vadd.f32 0.0, %v3405
      %v3407 = vpop.f32.mrb[0].mxu0
      %3408 = vmatprep.mubr.f32.mxu0 0.0
      %3409 = vmatmul.mubr.f32.gmra.mrb[0].mxu0 %v3187
      %v3410 = vpop.f32.mrb[0].mxu0
      %v3411 = vadd.f32 0.0, %v3410
      %v3412 = vpop.f32.mrb[0].mxu0
      %3413 = vmatprep.mubr.f32.mxu0 0.0
      %3414 = vmatmul.mubr.f32.gmra.mrb[0].mxu0 %v3189
      %v3415 = vpop.f32.mrb[0].mxu0
      %v3416 = vadd.f32 0.0, %v3415
      %v3417 = vpop.f32.mrb[0].mxu0
      %3418 = vdwg.mxu0
      %v3419 = vadd.f32 %v2998, %v3261
      %v3420 = vadd.f32 %v2999, %v3266
      %v3421 = vadd.f32 %v3000, %v3271
      %v3422 = vadd.f32 %v3001, %v3276
      %v3423 = vadd.f32 %v3002, %v3281
      %v3424 = vadd.f32 %v3003, %v3286
      %v3425 = vadd.f32 %v3004, %v3291
      %v3426 = vadd.f32 %v3005, %v3296
      %v3427 = vadd.f32 %v3006, %v3301
      %v3428 = vadd.f32 %v3007, %v3306
      %v3429 = vadd.f32 %v3008, %v3311
      %v3430 = vadd.f32 %v3009, %v3316
      %v3431 = vadd.f32 %v3010, %v3321
      %v3432 = vadd.f32 %v3011, %v3326
      %v3433 = vadd.f32 %v3012, %v3331
      %v3434 = vadd.f32 %v3013, %v3336
      %v3435 = vadd.f32 %v3014, %v3341
      %v3436 = vadd.f32 %v3015, %v3346
      %v3437 = vadd.f32 %v3016, %v3351
      %v3438 = vadd.f32 %v3017, %v3356
      %v3439 = vadd.f32 %v3018, %v3361
      %v3440 = vadd.f32 %v3019, %v3366
      %v3441 = vadd.f32 %v3020, %v3371
      %v3442 = vadd.f32 %v3021, %v3376
      %v3443 = vadd.f32 %v3022, %v3381
      %v3444 = vadd.f32 %v3023, %v3386
      %v3445 = vadd.f32 %v3024, %v3391
      %v3446 = vadd.f32 %v3025, %v3396
      %v3447 = vadd.f32 %v3026, %v3401
      %v3448 = vadd.f32 %v3027, %v3406
      %v3449 = vadd.f32 %v3028, %v3411
      %v3450 = vadd.f32 %v3029, %v3416
      %v3451 = vrot.slane %v2625, 4
      %v3452 = vrot.slane %v2626, 4
      %v3453 = vsel %vm462, %v3451, %v3452
      %v3454 = vrot.slane %v2627, 4
      %v3455 = vsel %vm462, %v3452, %v3454
      %v3456 = vrot.slane %v2628, 4
      %v3457 = vrot.slane %v2629, 4
      %v3458 = vsel %vm462, %v3456, %v3457
      %v3459 = vrot.slane %v2630, 4
      %v3460 = vsel %vm462, %v3457, %v3459
      %v3461 = vrot.slane %v2631, 4
      %v3462 = vrot.slane %v2632, 4
      %v3463 = vsel %vm462, %v3461, %v3462
      %v3464 = vrot.slane %v2633, 4
      %v3465 = vsel %vm462, %v3462, %v3464
      %v3466 = vrot.slane %v2634, 4
      %v3467 = vrot.slane %v2635, 4
      %v3468 = vsel %vm462, %v3466, %v3467
      %v3469 = vrot.slane %v2636, 4
      %v3470 = vsel %vm462, %v3467, %v3469
      %v3471 = vrot.slane %v2637, 4
      %v3472 = vrot.slane %v2638, 4
      %v3473 = vsel %vm462, %v3471, %v3472
      %v3474 = vrot.slane %v2639, 4
      %v3475 = vsel %vm462, %v3472, %v3474
      %v3476 = vrot.slane %v2640, 4
      %v3477 = vrot.slane %v2641, 4
      %v3478 = vsel %vm462, %v3476, %v3477
      %v3479 = vrot.slane %v2642, 4
      %v3480 = vsel %vm462, %v3477, %v3479
      %v3481 = vrot.slane %v2643, 4
      %v3482 = vrot.slane %v2644, 4
      %v3483 = vsel %vm462, %v3481, %v3482
      %v3484 = vrot.slane %v2645, 4
      %v3485 = vsel %vm462, %v3482, %v3484
      %v3486 = vrot.slane %v2646, 4
      %v3487 = vrot.slane %v2647, 4
      %v3488 = vsel %vm462, %v3486, %v3487
      %v3489 = vrot.slane %v2648, 4
      %v3490 = vsel %vm462, %v3487, %v3489
      %v3491 = vrot.slane %v2649, 4
      %v3492 = vrot.slane %v2650, 4
      %v3493 = vsel %vm462, %v3491, %v3492
      %v3494 = vrot.slane %v2651, 4
      %v3495 = vsel %vm462, %v3492, %v3494
      %v3496 = vrot.slane %v2652, 4
      %v3497 = vrot.slane %v2653, 4
      %v3498 = vsel %vm462, %v3496, %v3497
      %v3499 = vrot.slane %v2654, 4
      %v3500 = vsel %vm462, %v3497, %v3499
      %v3501 = vrot.slane %v2655, 4
      %v3502 = vrot.slane %v2656, 4
      %v3503 = vsel %vm462, %v3501, %v3502
      %v3504 = vrot.slane %v2657, 4
      %v3505 = vsel %vm462, %v3502, %v3504
      %v3506 = vrot.slane %v2658, 4
      %v3507 = vrot.slane %v2659, 4
      %v3508 = vsel %vm462, %v3506, %v3507
      %v3509 = vrot.slane %v2660, 4
      %v3510 = vsel %vm462, %v3507, %v3509
      %v3511 = vrot.slane %v2661, 4
      %v3512 = vrot.slane %v2662, 4
      %v3513 = vsel %vm462, %v3511, %v3512
      %v3514 = vrot.slane %v2663, 4
      %v3515 = vsel %vm462, %v3512, %v3514
      %v3516 = vrot.slane %v2664, 4
      %v3517 = vrot.slane %v2665, 4
      %v3518 = vsel %vm462, %v3516, %v3517
      %v3519 = vrot.slane %v2666, 4
      %v3520 = vsel %vm462, %v3517, %v3519
      %v3521 = vrot.slane %v2667, 4
      %v3522 = vrot.slane %v2668, 4
      %v3523 = vsel %vm462, %v3521, %v3522
      %v3524 = vrot.slane %v2669, 4
      %v3525 = vsel %vm462, %v3522, %v3524
      %v3526 = vrot.slane %v2670, 4
      %v3527 = vrot.slane %v2671, 4
      %v3528 = vsel %vm462, %v3526, %v3527
      %v3529 = vrot.slane %v2672, 4
      %v3530 = vsel %vm462, %v3527, %v3529
      %v3531 = vld [vmem:[%s1 + $0x20] sm:$0xf]
      %v3532 = vsel %vm397, %v3453, 0
      %v3534 = vsel %vm397, %v3455, 0
      %v3536 = vsel %vm397, %v3458, 0
      %v3538 = vsel %vm397, %v3460, 0
      %v3540 = vsel %vm397, %v3463, 0
      %v3542 = vsel %vm397, %v3465, 0
      %v3544 = vsel %vm397, %v3468, 0
      %v3546 = vsel %vm397, %v3470, 0
      %v3548 = vsel %vm397, %v3473, 0
      %v3550 = vsel %vm397, %v3475, 0
      %v3552 = vsel %vm397, %v3478, 0
      %v3554 = vsel %vm397, %v3480, 0
      %v3556 = vsel %vm397, %v3483, 0
      %v3558 = vsel %vm397, %v3485, 0
      %v3560 = vsel %vm397, %v3488, 0
      %v3562 = vsel %vm397, %v3490, 0
      %v3564 = vsel %vm397, %v3493, 0
      %v3566 = vsel %vm397, %v3495, 0
      %v3568 = vsel %vm397, %v3498, 0
      %v3570 = vsel %vm397, %v3500, 0
      %v3572 = vsel %vm397, %v3503, 0
      %v3574 = vsel %vm397, %v3505, 0
      %v3576 = vsel %vm397, %v3508, 0
      %v3578 = vsel %vm397, %v3510, 0
      %v3580 = vsel %vm397, %v3513, 0
      %v3582 = vsel %vm397, %v3515, 0
      %v3584 = vsel %vm397, %v3518, 0
      %v3586 = vsel %vm397, %v3520, 0
      %v3588 = vsel %vm397, %v3523, 0
      %v3590 = vsel %vm397, %v3525, 0
      %v3592 = vsel %vm397, %v3528, 0
      %v3594 = vsel %vm397, %v3530, 0
      %v3597 = vsel %vm462, %v3531, 0
      %3599 = vmatprep.subr.mxu0 0.0
      %3600 = vmatpush1.msra.mxu0 %v3597
      %3601 = vmatprep.subr.mxu0 0.0
      %3602 = vmatpush1.msra.mxu0 0.0
      %3603 = vmatprep.subr.mxu0 0.0
      %3604 = vmatpush1.msra.mxu0 0.0
      %3605 = vmatprep.subr.mxu0 0.0
      %3606 = vmatpush1.msra.mxu0 0.0
      %3607 = vmatprep.subr.mxu0 0.0
      %3608 = vmatpush1.msra.mxu0 0.0
      %3609 = vmatprep.subr.mxu0 0.0
      %3610 = vmatpush1.msra.mxu0 0.0
      %3611 = vmatprep.subr.mxu0 0.0
      %3612 = vmatpush1.msra.mxu0 0.0
      %3613 = vmatprep.subr.mxu0 0.0
      %3614 = vmatpush1.msra.mxu0 0.0
      %3615 = vmatprep.subr.mxu0 0.0
      %3616 = vmatpush1.msra.mxu0 0.0
      %3617 = vmatprep.subr.mxu0 0.0
      %3618 = vmatpush1.msra.mxu0 0.0
      %3619 = vmatprep.subr.mxu0 0.0
      %3620 = vmatpush1.msra.mxu0 0.0
      %3621 = vmatprep.subr.mxu0 0.0
      %3622 = vmatpush1.msra.mxu0 0.0
      %3623 = vmatprep.subr.mxu0 0.0
      %3624 = vmatpush1.msra.mxu0 0.0
      %3625 = vmatprep.subr.mxu0 0.0
      %3626 = vmatpush1.msra.mxu0 0.0
      %3627 = vmatprep.subr.mxu0 0.0
      %3628 = vmatpush1.msra.mxu0 0.0
      %3629 = vmatprep.subr.mxu0 0.0
      %3630 = vmatpush1.msra.mxu0 0.0
      %3631 = vmatprep.subr.mxu0 0.0
      %3632 = vmatpush1.msra.mxu0 0.0
      %3633 = vmatprep.subr.mxu0 0.0
      %3634 = vmatpush1.msra.mxu0 0.0
      %3635 = vmatprep.subr.mxu0 0.0
      %3636 = vmatpush1.msra.mxu0 0.0
      %3637 = vmatprep.subr.mxu0 0.0
      %3638 = vmatpush1.msra.mxu0 0.0
      %3639 = vmatprep.subr.mxu0 0.0
      %3640 = vmatpush1.msra.mxu0 0.0
      %3641 = vmatprep.subr.mxu0 0.0
      %3642 = vmatpush1.msra.mxu0 0.0
      %3643 = vmatprep.subr.mxu0 0.0
      %3644 = vmatpush1.msra.mxu0 0.0
      %3645 = vmatprep.subr.mxu0 0.0
      %3646 = vmatpush1.msra.mxu0 0.0
      %3647 = vmatprep.subr.mxu0 0.0
      %3648 = vmatpush1.msra.mxu0 0.0
      %3649 = vmatprep.subr.mxu0 0.0
      %3650 = vmatpush1.msra.mxu0 0.0
      %3651 = vmatprep.subr.mxu0 0.0
      %3652 = vmatpush1.msra.mxu0 0.0
      %3653 = vmatprep.subr.mxu0 0.0
      %3654 = vmatpush1.msra.mxu0 0.0
      %3655 = vmatprep.subr.mxu0 0.0
      %3656 = vmatpush1.msra.mxu0 0.0
      %3657 = vmatprep.subr.mxu0 0.0
      %3658 = vmatpush1.msra.mxu0 0.0
      %3659 = vmatprep.subr.mxu0 0.0
      %3660 = vmatpush1.msra.mxu0 0.0
      %3661 = vmatprep.subr.mxu0 0.0
      %3662 = vmatpush1.msra.mxu0 0.0
      %3663 = vmatprep.mubr.f32.mxu0 0.0
      %3664 = vmatmul.mubr.f32.gmra.mrb[0].mxu0 %v3532
      %v3665 = vpop.f32.mrb[0].mxu0
      %v3666 = vadd.f32 0.0, %v3665
      %v3667 = vpop.f32.mrb[0].mxu0
      %3668 = vmatprep.mubr.f32.mxu0 0.0
      %3669 = vmatmul.mubr.f32.gmra.mrb[0].mxu0 %v3534
      %v3670 = vpop.f32.mrb[0].mxu0
      %v3671 = vadd.f32 0.0, %v3670
      %v3672 = vpop.f32.mrb[0].mxu0
      %3673 = vmatprep.mubr.f32.mxu0 0.0
      %3674 = vmatmul.mubr.f32.gmra.mrb[0].mxu0 %v3536
      %v3675 = vpop.f32.mrb[0].mxu0
      %v3676 = vadd.f32 0.0, %v3675
      %v3677 = vpop.f32.mrb[0].mxu0
      %3678 = vmatprep.mubr.f32.mxu0 0.0
      %3679 = vmatmul.mubr.f32.gmra.mrb[0].mxu0 %v3538
      %v3680 = vpop.f32.mrb[0].mxu0
      %v3681 = vadd.f32 0.0, %v3680
      %v3682 = vpop.f32.mrb[0].mxu0
      %3683 = vmatprep.mubr.f32.mxu0 0.0
      %3684 = vmatmul.mubr.f32.gmra.mrb[0].mxu0 %v3540
      %v3685 = vpop.f32.mrb[0].mxu0
      %v3686 = vadd.f32 0.0, %v3685
      %v3687 = vpop.f32.mrb[0].mxu0
      %3688 = vmatprep.mubr.f32.mxu0 0.0
      %3689 = vmatmul.mubr.f32.gmra.mrb[0].mxu0 %v3542
      %v3690 = vpop.f32.mrb[0].mxu0
      %v3691 = vadd.f32 0.0, %v3690
      %v3692 = vpop.f32.mrb[0].mxu0
      %3693 = vmatprep.mubr.f32.mxu0 0.0
      %3694 = vmatmul.mubr.f32.gmra.mrb[0].mxu0 %v3544
      %v3695 = vpop.f32.mrb[0].mxu0
      %v3696 = vadd.f32 0.0, %v3695
      %v3697 = vpop.f32.mrb[0].mxu0
      %3698 = vmatprep.mubr.f32.mxu0 0.0
      %3699 = vmatmul.mubr.f32.gmra.mrb[0].mxu0 %v3546
      %v3700 = vpop.f32.mrb[0].mxu0
      %v3701 = vadd.f32 0.0, %v3700
      %v3702 = vpop.f32.mrb[0].mxu0
      %3703 = vmatprep.mubr.f32.mxu0 0.0
      %3704 = vmatmul.mubr.f32.gmra.mrb[0].mxu0 %v3548
      %v3705 = vpop.f32.mrb[0].mxu0
      %v3706 = vadd.f32 0.0, %v3705
      %v3707 = vpop.f32.mrb[0].mxu0
      %3708 = vmatprep.mubr.f32.mxu0 0.0
      %3709 = vmatmul.mubr.f32.gmra.mrb[0].mxu0 %v3550
      %v3710 = vpop.f32.mrb[0].mxu0
      %v3711 = vadd.f32 0.0, %v3710
      %v3712 = vpop.f32.mrb[0].mxu0
      %3713 = vmatprep.mubr.f32.mxu0 0.0
      %3714 = vmatmul.mubr.f32.gmra.mrb[0].mxu0 %v3552
      %v3715 = vpop.f32.mrb[0].mxu0
      %v3716 = vadd.f32 0.0, %v3715
      %v3717 = vpop.f32.mrb[0].mxu0
      %3718 = vmatprep.mubr.f32.mxu0 0.0
      %3719 = vmatmul.mubr.f32.gmra.mrb[0].mxu0 %v3554
      %v3720 = vpop.f32.mrb[0].mxu0
      %v3721 = vadd.f32 0.0, %v3720
      %v3722 = vpop.f32.mrb[0].mxu0
      %3723 = vmatprep.mubr.f32.mxu0 0.0
      %3724 = vmatmul.mubr.f32.gmra.mrb[0].mxu0 %v3556
      %v3725 = vpop.f32.mrb[0].mxu0
      %v3726 = vadd.f32 0.0, %v3725
      %v3727 = vpop.f32.mrb[0].mxu0
      %3728 = vmatprep.mubr.f32.mxu0 0.0
      %3729 = vmatmul.mubr.f32.gmra.mrb[0].mxu0 %v3558
      %v3730 = vpop.f32.mrb[0].mxu0
      %v3731 = vadd.f32 0.0, %v3730
      %v3732 = vpop.f32.mrb[0].mxu0
      %3733 = vmatprep.mubr.f32.mxu0 0.0
      %3734 = vmatmul.mubr.f32.gmra.mrb[0].mxu0 %v3560
      %v3735 = vpop.f32.mrb[0].mxu0
      %v3736 = vadd.f32 0.0, %v3735
      %v3737 = vpop.f32.mrb[0].mxu0
      %3738 = vmatprep.mubr.f32.mxu0 0.0
      %3739 = vmatmul.mubr.f32.gmra.mrb[0].mxu0 %v3562
      %v3740 = vpop.f32.mrb[0].mxu0
      %v3741 = vadd.f32 0.0, %v3740
      %v3742 = vpop.f32.mrb[0].mxu0
      %3743 = vmatprep.mubr.f32.mxu0 0.0
      %3744 = vmatmul.mubr.f32.gmra.mrb[0].mxu0 %v3564
      %v3745 = vpop.f32.mrb[0].mxu0
      %v3746 = vadd.f32 0.0, %v3745
      %v3747 = vpop.f32.mrb[0].mxu0
      %3748 = vmatprep.mubr.f32.mxu0 0.0
      %3749 = vmatmul.mubr.f32.gmra.mrb[0].mxu0 %v3566
      %v3750 = vpop.f32.mrb[0].mxu0
      %v3751 = vadd.f32 0.0, %v3750
      %v3752 = vpop.f32.mrb[0].mxu0
      %3753 = vmatprep.mubr.f32.mxu0 0.0
      %3754 = vmatmul.mubr.f32.gmra.mrb[0].mxu0 %v3568
      %v3755 = vpop.f32.mrb[0].mxu0
      %v3756 = vadd.f32 0.0, %v3755
      %v3757 = vpop.f32.mrb[0].mxu0
      %3758 = vmatprep.mubr.f32.mxu0 0.0
      %3759 = vmatmul.mubr.f32.gmra.mrb[0].mxu0 %v3570
      %v3760 = vpop.f32.mrb[0].mxu0
      %v3761 = vadd.f32 0.0, %v3760
      %v3762 = vpop.f32.mrb[0].mxu0
      %3763 = vmatprep.mubr.f32.mxu0 0.0
      %3764 = vmatmul.mubr.f32.gmra.mrb[0].mxu0 %v3572
      %v3765 = vpop.f32.mrb[0].mxu0
      %v3766 = vadd.f32 0.0, %v3765
      %v3767 = vpop.f32.mrb[0].mxu0
      %3768 = vmatprep.mubr.f32.mxu0 0.0
      %3769 = vmatmul.mubr.f32.gmra.mrb[0].mxu0 %v3574
      %v3770 = vpop.f32.mrb[0].mxu0
      %v3771 = vadd.f32 0.0, %v3770
      %v3772 = vpop.f32.mrb[0].mxu0
      %3773 = vmatprep.mubr.f32.mxu0 0.0
      %3774 = vmatmul.mubr.f32.gmra.mrb[0].mxu0 %v3576
      %v3775 = vpop.f32.mrb[0].mxu0
      %v3776 = vadd.f32 0.0, %v3775
      %v3777 = vpop.f32.mrb[0].mxu0
      %3778 = vmatprep.mubr.f32.mxu0 0.0
      %3779 = vmatmul.mubr.f32.gmra.mrb[0].mxu0 %v3578
      %v3780 = vpop.f32.mrb[0].mxu0
      %v3781 = vadd.f32 0.0, %v3780
      %v3782 = vpop.f32.mrb[0].mxu0
      %3783 = vmatprep.mubr.f32.mxu0 0.0
      %3784 = vmatmul.mubr.f32.gmra.mrb[0].mxu0 %v3580
      %v3785 = vpop.f32.mrb[0].mxu0
      %v3786 = vadd.f32 0.0, %v3785
      %v3787 = vpop.f32.mrb[0].mxu0
      %3788 = vmatprep.mubr.f32.mxu0 0.0
      %3789 = vmatmul.mubr.f32.gmra.mrb[0].mxu0 %v3582
      %v3790 = vpop.f32.mrb[0].mxu0
      %v3791 = vadd.f32 0.0, %v3790
      %v3792 = vpop.f32.mrb[0].mxu0
      %3793 = vmatprep.mubr.f32.mxu0 0.0
      %3794 = vmatmul.mubr.f32.gmra.mrb[0].mxu0 %v3584
      %v3795 = vpop.f32.mrb[0].mxu0
      %v3796 = vadd.f32 0.0, %v3795
      %v3797 = vpop.f32.mrb[0].mxu0
      %3798 = vmatprep.mubr.f32.mxu0 0.0
      %3799 = vmatmul.mubr.f32.gmra.mrb[0].mxu0 %v3586
      %v3800 = vpop.f32.mrb[0].mxu0
      %v3801 = vadd.f32 0.0, %v3800
      %v3802 = vpop.f32.mrb[0].mxu0
      %3803 = vmatprep.mubr.f32.mxu0 0.0
      %3804 = vmatmul.mubr.f32.gmra.mrb[0].mxu0 %v3588
      %v3805 = vpop.f32.mrb[0].mxu0
      %v3806 = vadd.f32 0.0, %v3805
      %v3807 = vpop.f32.mrb[0].mxu0
      %3808 = vmatprep.mubr.f32.mxu0 0.0
      %3809 = vmatmul.mubr.f32.gmra.mrb[0].mxu0 %v3590
      %v3810 = vpop.f32.mrb[0].mxu0
      %v3811 = vadd.f32 0.0, %v3810
      %v3812 = vpop.f32.mrb[0].mxu0
      %3813 = vmatprep.mubr.f32.mxu0 0.0
      %3814 = vmatmul.mubr.f32.gmra.mrb[0].mxu0 %v3592
      %v3815 = vpop.f32.mrb[0].mxu0
      %v3816 = vadd.f32 0.0, %v3815
      %v3817 = vpop.f32.mrb[0].mxu0
      %3818 = vmatprep.mubr.f32.mxu0 0.0
      %3819 = vmatmul.mubr.f32.gmra.mrb[0].mxu0 %v3594
      %v3820 = vpop.f32.mrb[0].mxu0
      %v3821 = vadd.f32 0.0, %v3820
      %v3822 = vpop.f32.mrb[0].mxu0
      %3823 = vdwg.mxu0
      %v3824 = vadd.f32 %v3419, %v3666
      %v3825 = vadd.f32 %v3420, %v3671
      %v3826 = vadd.f32 %v3421, %v3676
      %v3827 = vadd.f32 %v3422, %v3681
      %v3828 = vadd.f32 %v3423, %v3686
      %v3829 = vadd.f32 %v3424, %v3691
      %v3830 = vadd.f32 %v3425, %v3696
      %v3831 = vadd.f32 %v3426, %v3701
      %v3832 = vadd.f32 %v3427, %v3706
      %v3833 = vadd.f32 %v3428, %v3711
      %v3834 = vadd.f32 %v3429, %v3716
      %v3835 = vadd.f32 %v3430, %v3721
      %v3836 = vadd.f32 %v3431, %v3726
      %v3837 = vadd.f32 %v3432, %v3731
      %v3838 = vadd.f32 %v3433, %v3736
      %v3839 = vadd.f32 %v3434, %v3741
      %v3840 = vadd.f32 %v3435, %v3746
      %v3841 = vadd.f32 %v3436, %v3751
      %v3842 = vadd.f32 %v3437, %v3756
      %v3843 = vadd.f32 %v3438, %v3761
      %v3844 = vadd.f32 %v3439, %v3766
      %v3845 = vadd.f32 %v3440, %v3771
      %v3846 = vadd.f32 %v3441, %v3776
      %v3847 = vadd.f32 %v3442, %v3781
      %v3848 = vadd.f32 %v3443, %v3786
      %v3849 = vadd.f32 %v3444, %v3791
      %v3850 = vadd.f32 %v3445, %v3796
      %v3851 = vadd.f32 %v3446, %v3801
      %v3852 = vadd.f32 %v3447, %v3806
      %v3853 = vadd.f32 %v3448, %v3811
      %v3854 = vadd.f32 %v3449, %v3816
      %v3855 = vadd.f32 %v3450, %v3821
      %3856 = vst [vmem:[%s206] sm:$0xff] %v3824
      %3857 = vst [vmem:[%s206 + $0x8] sm:$0xff] %v3825
      %3858 = vst [vmem:[%s206 + $0x10] sm:$0xff] %v3826
      %3859 = vst [vmem:[%s206 + $0x18] sm:$0xff] %v3827
      %3860 = vst [vmem:[%s206 + $0x20] sm:$0xff] %v3828
      %3861 = vst [vmem:[%s206 + $0x28] sm:$0xff] %v3829
      %3862 = vst [vmem:[%s206 + $0x30] sm:$0xff] %v3830
      %3863 = vst [vmem:[%s206 + $0x38] sm:$0xff] %v3831
      %3864 = vst [vmem:[%s206 + $0x40] sm:$0xff] %v3832
      %3865 = vst [vmem:[%s206 + $0x48] sm:$0xff] %v3833
      %3866 = vst [vmem:[%s206 + $0x50] sm:$0xff] %v3834
      %3867 = vst [vmem:[%s206 + $0x58] sm:$0xff] %v3835
      %3868 = vst [vmem:[%s206 + $0x60] sm:$0xff] %v3836
      %3869 = vst [vmem:[%s206 + $0x68] sm:$0xff] %v3837
      %3870 = vst [vmem:[%s206 + $0x70] sm:$0xff] %v3838
      %3871 = vst [vmem:[%s206 + $0x78] sm:$0xff] %v3839
      %3872 = vst [vmem:[%s206 + $0x80] sm:$0xff] %v3840
      %3873 = vst [vmem:[%s206 + $0x88] sm:$0xff] %v3841
      %3874 = vst [vmem:[%s206 + $0x90] sm:$0xff] %v3842
      %3875 = vst [vmem:[%s206 + $0x98] sm:$0xff] %v3843
      %3876 = vst [vmem:[%s206 + $0xa0] sm:$0xff] %v3844
      %3877 = vst [vmem:[%s206 + $0xa8] sm:$0xff] %v3845
      %3878 = vst [vmem:[%s206 + $0xb0] sm:$0xff] %v3846
      %3879 = vst [vmem:[%s206 + $0xb8] sm:$0xff] %v3847
      %3880 = vst [vmem:[%s206 + $0xc0] sm:$0xff] %v3848
      %3881 = vst [vmem:[%s206 + $0xc8] sm:$0xff] %v3849
      %3882 = vst [vmem:[%s206 + $0xd0] sm:$0xff] %v3850
      %3883 = vst [vmem:[%s206 + $0xd8] sm:$0xff] %v3851
      %3884 = vst [vmem:[%s206 + $0xe0] sm:$0xff] %v3852
      %3885 = vst [vmem:[%s206 + $0xe8] sm:$0xff] %v3853
      %3886 = vst [vmem:[%s206 + $0xf0] sm:$0xff] %v3854
      %3887 = vst [vmem:[%s206 + $0xf8] sm:$0xff] %v3855
      %v3888 = vadd.f32 %v3824, %v3825
      %v3889 = vadd.f32 %v3888, %v3826
      %v3890 = vadd.f32 %v3889, %v3827
      %v3891 = vadd.f32 %v3890, %v3828
      %v3892 = vadd.f32 %v3891, %v3829
      %v3893 = vadd.f32 %v3892, %v3830
      %v3894 = vadd.f32 %v3893, %v3831
      %v3895 = vadd.f32 %v3894, %v3832
      %v3896 = vadd.f32 %v3895, %v3833
      %v3897 = vadd.f32 %v3896, %v3834
      %v3898 = vadd.f32 %v3897, %v3835
      %v3899 = vadd.f32 %v3898, %v3836
      %v3900 = vadd.f32 %v3899, %v3837
      %v3901 = vadd.f32 %v3900, %v3838
      %v3902 = vadd.f32 %v3901, %v3839
      %v3903 = vadd.f32 %v3902, %v3840
      %v3904 = vadd.f32 %v3903, %v3841
      %v3905 = vadd.f32 %v3904, %v3842
      %v3906 = vadd.f32 %v3905, %v3843
      %v3907 = vadd.f32 %v3906, %v3844
      %v3908 = vadd.f32 %v3907, %v3845
      %v3909 = vadd.f32 %v3908, %v3846
      %v3910 = vadd.f32 %v3909, %v3847
      %v3911 = vadd.f32 %v3910, %v3848
      %v3912 = vadd.f32 %v3911, %v3849
      %v3913 = vadd.f32 %v3912, %v3850
      %v3914 = vadd.f32 %v3913, %v3851
      %v3915 = vadd.f32 %v3914, %v3852
      %v3916 = vadd.f32 %v3915, %v3853
      %v3917 = vadd.f32 %v3916, %v3854
      %v3918 = vadd.f32 %v3917, %v3855
      %v3919 = vrot.slane %v3918, 4
      %v3920 = vadd.f32 %v3918, %v3919
      %v3921 = vrot.slane %v3920, 2
      %v3922 = vadd.f32 %v3920, %v3921
      %v3923 = vrot.slane %v3922, 1
      %v3924 = vadd.f32 %v3922, %v3923
      %v3925 = vmul.f32 %v3924, 0.00390625
      %v3926 = vsub.f32 %v3824, %v3925
      %v3927 = vsub.f32 %v3825, %v3925
      %v3928 = vsub.f32 %v3826, %v3925
      %v3929 = vsub.f32 %v3827, %v3925
      %v3930 = vsub.f32 %v3828, %v3925
      %v3931 = vsub.f32 %v3829, %v3925
      %v3932 = vsub.f32 %v3830, %v3925
      %v3933 = vsub.f32 %v3831, %v3925
      %v3934 = vsub.f32 %v3832, %v3925
      %v3935 = vsub.f32 %v3833, %v3925
      %v3936 = vsub.f32 %v3834, %v3925
      %v3937 = vsub.f32 %v3835, %v3925
      %v3938 = vsub.f32 %v3836, %v3925
      %v3939 = vsub.f32 %v3837, %v3925
      %v3940 = vsub.f32 %v3838, %v3925
      %v3941 = vsub.f32 %v3839, %v3925
      %v3942 = vsub.f32 %v3840, %v3925
      %v3943 = vsub.f32 %v3841, %v3925
      %v3944 = vsub.f32 %v3842, %v3925
      %v3945 = vsub.f32 %v3843, %v3925
      %v3946 = vsub.f32 %v3844, %v3925
      %v3947 = vsub.f32 %v3845, %v3925
      %v3948 = vsub.f32 %v3846, %v3925
      %v3949 = vsub.f32 %v3847, %v3925
      %v3950 = vsub.f32 %v3848, %v3925
      %v3951 = vsub.f32 %v3849, %v3925
      %v3952 = vsub.f32 %v3850, %v3925
      %v3953 = vsub.f32 %v3851, %v3925
      %v3954 = vsub.f32 %v3852, %v3925
      %v3955 = vsub.f32 %v3853, %v3925
      %v3956 = vsub.f32 %v3854, %v3925
      %v3957 = vsub.f32 %v3855, %v3925
      %v3958 = vmul.f32 %v3926, %v3926
      %v3959 = vmul.f32 %v3927, %v3927
      %v3960 = vmul.f32 %v3928, %v3928
      %v3961 = vmul.f32 %v3929, %v3929
      %v3962 = vmul.f32 %v3930, %v3930
      %v3963 = vmul.f32 %v3931, %v3931
      %v3964 = vmul.f32 %v3932, %v3932
      %v3965 = vmul.f32 %v3933, %v3933
      %v3966 = vmul.f32 %v3934, %v3934
      %v3967 = vmul.f32 %v3935, %v3935
      %v3968 = vmul.f32 %v3936, %v3936
      %v3969 = vmul.f32 %v3937, %v3937
      %v3970 = vmul.f32 %v3938, %v3938
      %v3971 = vmul.f32 %v3939, %v3939
      %v3972 = vmul.f32 %v3940, %v3940
      %v3973 = vmul.f32 %v3941, %v3941
      %v3974 = vmul.f32 %v3942, %v3942
      %v3975 = vmul.f32 %v3943, %v3943
      %v3976 = vmul.f32 %v3944, %v3944
      %v3977 = vmul.f32 %v3945, %v3945
      %v3978 = vmul.f32 %v3946, %v3946
      %v3979 = vmul.f32 %v3947, %v3947
      %v3980 = vmul.f32 %v3948, %v3948
      %v3981 = vmul.f32 %v3949, %v3949
      %v3982 = vmul.f32 %v3950, %v3950
      %v3983 = vmul.f32 %v3951, %v3951
      %v3984 = vmul.f32 %v3952, %v3952
      %v3985 = vmul.f32 %v3953, %v3953
      %v3986 = vmul.f32 %v3954, %v3954
      %v3987 = vmul.f32 %v3955, %v3955
      %v3988 = vmul.f32 %v3956, %v3956
      %v3989 = vmul.f32 %v3957, %v3957
      %v3990 = vadd.f32 %v3958, %v3959
      %v3991 = vadd.f32 %v3990, %v3960
      %v3992 = vadd.f32 %v3991, %v3961
      %v3993 = vadd.f32 %v3992, %v3962
      %v3994 = vadd.f32 %v3993, %v3963
      %v3995 = vadd.f32 %v3994, %v3964
      %v3996 = vadd.f32 %v3995, %v3965
      %v3997 = vadd.f32 %v3996, %v3966
      %v3998 = vadd.f32 %v3997, %v3967
      %v3999 = vadd.f32 %v3998, %v3968
      %v4000 = vadd.f32 %v3999, %v3969
      %v4001 = vadd.f32 %v4000, %v3970
      %v4002 = vadd.f32 %v4001, %v3971
      %v4003 = vadd.f32 %v4002, %v3972
      %v4004 = vadd.f32 %v4003, %v3973
      %v4005 = vadd.f32 %v4004, %v3974
      %v4006 = vadd.f32 %v4005, %v3975
      %v4007 = vadd.f32 %v4006, %v3976
      %v4008 = vadd.f32 %v4007, %v3977
      %v4009 = vadd.f32 %v4008, %v3978
      %v4010 = vadd.f32 %v4009, %v3979
      %v4011 = vadd.f32 %v4010, %v3980
      %v4012 = vadd.f32 %v4011, %v3981
      %v4013 = vadd.f32 %v4012, %v3982
      %v4014 = vadd.f32 %v4013, %v3983
      %v4015 = vadd.f32 %v4014, %v3984
      %v4016 = vadd.f32 %v4015, %v3985
      %v4017 = vadd.f32 %v4016, %v3986
      %v4018 = vadd.f32 %v4017, %v3987
      %v4019 = vadd.f32 %v4018, %v3988
      %v4020 = vadd.f32 %v4019, %v3989
      %v4021 = vrot.slane %v4020, 4
      %v4022 = vadd.f32 %v4020, %v4021
      %v4023 = vrot.slane %v4022, 2
      %v4024 = vadd.f32 %v4022, %v4023
      %v4025 = vrot.slane %v4024, 1
      %v4026 = vadd.f32 %v4024, %v4025
      %4027 = vst [vmem:[%s214] sm:$0x1] %v3924
      %4028 = vst [vmem:[%s214 + $0x1] sm:$0x1] %v4026
      %s4029 = smul.u32 16, %s20
      %p4030 = scmp.lt.s32.totalorder %s19, 1
      %s4031 = scalar_select %p4030, %s19, 1
      %p4032 = scmp.lt.s32.totalorder %s4029, 15
      %s4033 = scalar_select %p4032, %s4029, 15
      %s4034 = smul.addr %s4033, 2
      %s4035 = smul.addr %s4031, 32
      %s4036 = sadd.s32 %s4034, %s4035
      %s4037 = smul.addr %s4036, 8
      %s4038 = scalar_lea.vmem %s2, %s4037
      %p4039 = scmp.lt.s32.totalorder %s19, 1
      %s4040 = scalar_select %p4039, %s19, 1
      %p4041 = scmp.lt.s32.totalorder %s20, 0
      %s4042 = scalar_select %p4041, %s20, 0
      %s4043 = sadd.s32 %s4042, %s4040
      %s4044 = smul.addr %s4043, 2
      %s4045 = scalar_lea.vmem %s3, %s4044
      // Predicated region
      $region29: #{aspp_forward.2} parent=27 // pred_check
        %p4046 = pneg %p94
      $region30: #{aspp_forward.2} parent=27 // pred_check_branch
        %4048 = sbr.rel (%p4046) target = $region32
      $region31: #{aspp_forward.2} parent=27 // pred_region
        %s4049 = smul.u32 16, %s20
      $region32: #{aspp_forward.2} parent=27 // pred_fallthru
        _
      // Predicated region
      $region33: #{aspp_forward.2} parent=27 // pred_check
        %p4050 = pneg %p122
      $region34: #{aspp_forward.2} parent=27 // pred_check_branch
        %4052 = sbr.rel (%p4050) target = $region36
      $region35: #{aspp_forward.2} parent=27 // pred_region
        _
      $region36: #{aspp_forward.2} parent=27 // pred_fallthru
        _
    $region28: #{aspp_forward.2} parent=5 // pred_fallthru
      _
    %p4053 = scmp.le.s32.totalorder 2, %s10
    // Predicated region
    $region37: #{aspp_forward.2} parent=5 // pred_check
      %p4054 = pneg %p4053
    $region38: #{aspp_forward.2} parent=5 // pred_check_branch
      %4056 = sbr.rel (%p4054) target = $region40
    $region39: #{aspp_forward.2} parent=5 // pred_region
      %s4057 = ssub.s32 %s10, 2
      // Predicated region
      $region41: #{aspp_forward.2} parent=39 // pred_check
        %p4058 = pneg %p100
      $region42: #{aspp_forward.2} parent=39 // pred_check_branch
        %4060 = sbr.rel (%p4058) target = $region44
      $region43: #{aspp_forward.2} parent=39 // pred_region
        %s4061 = smul.u32 16, %s22
        %p4062 = scmp.lt.s32.totalorder %s21, 1
        %s4063 = scalar_select %p4062, %s21, 1
        %p4064 = scmp.lt.s32.totalorder %s4061, 15
        %s4065 = scalar_select %p4064, %s4061, 15
        %s4066 = smul.addr %s4065, 2
        %s4067 = smul.addr %s4063, 32
        %s4068 = sadd.s32 %s4066, %s4067
        %s4069 = smul.addr %s4068, 8
        %s4070 = scalar_lea.vmem %s2, %s4069
      $region44: #{aspp_forward.2} parent=39 // pred_fallthru
        _
      // Predicated region
      $region45: #{aspp_forward.2} parent=39 // pred_check
        %p4071 = pneg %p128
      $region46: #{aspp_forward.2} parent=39 // pred_check_branch
        %4073 = sbr.rel (%p4071) target = $region48
      $region47: #{aspp_forward.2} parent=39 // pred_region
        %p4074 = scmp.lt.s32.totalorder %s21, 1
        %s4075 = scalar_select %p4074, %s21, 1
        %p4076 = scmp.lt.s32.totalorder %s22, 0
        %s4077 = scalar_select %p4076, %s22, 0
        %s4078 = sadd.s32 %s4077, %s4075
        %s4079 = smul.addr %s4078, 2
        %s4080 = scalar_lea.vmem %s3, %s4079
      $region48: #{aspp_forward.2} parent=39 // pred_fallthru
        _
    $region40: #{aspp_forward.2} parent=5 // pred_fallthru
      _
  $region6: #{aspp_forward.2} parent=0 // loop_footer
    %s14 = sadd.s32 1, %s10
  $region7: #{aspp_forward.2} parent=0 // loop_footer_branch
    %9 = sbr.rel target = $region3
  $region8: #{aspp_forward.2} parent=0 // loop_exit
    _

</llo_original>
